<compile_context>
chip_gen: v7x
topology: tpu7x:2x2x1
jax: 0.10.0
libtpu: 0.0.40
codegen_flags: <defaults>
</compile_context>

<pallas_src>
import functools

import jax
import jax.numpy as jnp
from jax import lax
from jax.experimental import pallas as pl
from jax.experimental.pallas import tpu as pltpu


# ----------------------------------------------------------------------------
# Fused Pallas kernel: conv1..conv4 (im2col matmuls) for B lane-packed images
# ----------------------------------------------------------------------------
def _fused_kernel(in_ref, masks_ref,
                  w1_ref, b1_ref, w2_ref, b2_ref,
                  w3_ref, b3_ref, w4_ref, b4_ref,
                  o_ref, *, W):
    L = in_ref.shape[-1]                 # B * H * W  (lane axis)

    # Static per-tap lane shifts + mask-row indices (shared by all 4 layers).
    taps = []
    mrow = 0
    for kh in range(3):
        for kw in range(3):
            oh, ow = kh - 1, kw - 1
            shift = (-(oh * W + ow)) % L
            if oh == 0 and ow == 0:
                taps.append((0, None))            # center tap: all valid
            else:
                taps.append((shift, mrow))
                mrow += 1

    def conv3x3(a, w_ref, b_ref, relu):
        # a: (Cin, L) f32;  w_ref: (Cout, 9*Cin) tap-major;  b_ref: (Cout, 1)
        pieces = []
        for shift, m in taps:
            shifted = a if shift == 0 else pltpu.roll(a, shift, 1)
            if m is not None:
                shifted = shifted * masks_ref[pl.ds(m, 1), :]
            pieces.append(shifted)
        stack = jnp.concatenate(pieces, axis=0)    # (9*Cin, L) im2col stack
        out = jnp.dot(w_ref[...], stack, preferred_element_type=jnp.float32)
        out = out + b_ref[...]                     # single VPU add per layer
        return jnp.maximum(out, 0.0) if relu else out

    a = in_ref[0]                                  # (8, L) lane-dense input
    a = conv3x3(a, w1_ref, b1_ref, relu=True)
    a = conv3x3(a, w2_ref, b2_ref, relu=True)
    a = conv3x3(a, w3_ref, b3_ref, relu=True)
    a = conv3x3(a, w4_ref, b4_ref, relu=False)     # (1, L)
    o_ref[0] = a


# ----------------------------------------------------------------------------
# Wrapper: matches BackwardPass.forward (NCHW in / NCHW out)
# ----------------------------------------------------------------------------
def backward_pass_forward(params, x_nchw, t, y, *, T, image_size,
                          block_batch=None):
    N = x_nchw.shape[0]
    H = W = image_size
    HW = H * W

    # Images per grid step: amortize per-step overhead, but keep >=2 grid
    # steps when possible so v7x's two TensorCores both get work.
    if block_batch is None:
        B = max(1, min(8, N // 2))
    else:
        B = max(1, block_batch)
    G = -(-N // B)
    N_pad = G * B
    L = B * HW

    # --- Build lane-dense [image, t/T, emb] input slab in the wrapper -------
    xf = x_nchw.astype(jnp.float32).reshape(N, HW)
    tmap = jnp.broadcast_to((t.astype(jnp.float32) / T)[:, None], (N, HW))
    emb = params["emb"].astype(jnp.float32)[y.astype(jnp.int32)]      # (N, HW)
    slab = jnp.stack([xf, tmap, emb], axis=1)                         # (N,3,HW)
    slab = jnp.pad(slab, ((0, N_pad - N), (0, 5), (0, 0)))            # 3->8 ch
    # (G, B, 8, HW) -> (G, 8, B, HW) -> (G, 8, B*HW): lane-concat the B images.
    slab = slab.reshape(G, B, 8, HW).transpose(0, 2, 1, 3).reshape(G, 8, L)

    # --- Precompute 8 non-center SAME-padding border masks over B*HW lanes --
    pos = jnp.arange(L, dtype=jnp.int32) % HW
    hh, ww = pos // W, pos % W
    mrows = []
    for kh in range(3):
        for kw in range(3):
            oh, ow = kh - 1, kw - 1
            if oh == 0 and ow == 0:
                continue
            valid = ((hh + oh >= 0) & (hh + oh < H) &
                     (ww + ow >= 0) & (ww + ow < W))
            mrows.append(valid.astype(jnp.float32))
    masks = jnp.stack(mrows, axis=0)                                   # (8, L)

    # --- Pack PyTorch OIHW weights -> (Cout, 9*Cin) tap-major ---------------
    def pack_w(w):
        cout, cin = w.shape[0], w.shape[1]
        if cin % 8:                                   # pad layer-1 Cin 3 -> 8
            w = jnp.pad(w, ((0, 0), (0, 8 - cin % 8), (0, 0), (0, 0)))
            cin = w.shape[1]
        return (jnp.transpose(w, (0, 2, 3, 1))
                .reshape(cout, 9 * cin).astype(jnp.float32))

    def pack_b(b):
        return b.reshape(-1, 1).astype(jnp.float32)

    ws = [pack_w(params[f"w{i}"]) for i in range(1, 5)]
    bs = [pack_b(params[f"b{i}"]) for i in range(1, 5)]

    def resident(shape):              # constant block index: weights / masks
        return pl.BlockSpec(shape, lambda g: (0,) * len(shape))

    in_specs = [pl.BlockSpec((1, 8, L), lambda g: (g, 0, 0)),    # input slab
                resident(masks.shape)]
    for w_, b_ in zip(ws, bs):
        in_specs.append(resident(w_.shape))
        in_specs.append(resident(b_.shape))

    kern = functools.partial(_fused_kernel, W=W)
    out = pl.pallas_call(
        kern,
        out_shape=jax.ShapeDtypeStruct((G, 1, L), jnp.float32),
        grid_spec=pltpu.PrefetchScalarGridSpec(
            num_scalar_prefetch=0,
            grid=(G,),
            in_specs=in_specs,
            out_specs=pl.BlockSpec((1, 1, L), lambda g: (g, 0, 0)),
        ),
        compiler_params=pltpu.CompilerParams(
            dimension_semantics=("parallel",)),
    )(slab, masks,
      ws[0], bs[0], ws[1], bs[1], ws[2], bs[2], ws[3], bs[3])
    return out.reshape(N_pad, 1, H, W)[:N]


# ----------------------------------------------------------------------------
# Pure-JAX reference (lax.conv) for correctness checking
# ----------------------------------------------------------------------------
def reference_forward(params, x_nchw, t, y, *, T, image_size):
    N = x_nchw.shape[0]
    tf = (t.astype(jnp.float32) / T).reshape(N, 1, 1, 1)
    t_map = jnp.broadcast_to(tf, x_nchw.shape)
    emb = params["emb"][y].reshape(N, 1, image_size, image_size)
    h = jnp.concatenate([x_nchw.astype(jnp.float32), t_map, emb], axis=1)

    def conv(x, w, b):
        o = lax.conv_general_dilated(
            x, w, window_strides=(1, 1), padding="SAME",
            dimension_numbers=("NCHW", "OIHW", "NCHW"),
            precision=lax.Precision.HIGHEST)
        return o + b.reshape(1, -1, 1, 1)

    h = jax.nn.relu(conv(h, params["w1"], params["b1"]))
    h = jax.nn.relu(conv(h, params["w2"], params["b2"]))
    h = jax.nn.relu(conv(h, params["w3"], params["b3"]))
    return conv(h, params["w4"], params["b4"])


# ----------------------------------------------------------------------------
# Deterministic parameter init (same shapes as the PyTorch module)
# ----------------------------------------------------------------------------
def init_params(key, num_classes, image_size):
    ks = jax.random.split(key, 5)

    def conv_init(k, cout, cin):
        kw, kb = jax.random.split(k)
        bound = 1.0 / jnp.sqrt(cin * 9.0)
        w = jax.random.uniform(kw, (cout, cin, 3, 3), jnp.float32, -bound, bound)
        b = jax.random.uniform(kb, (cout,), jnp.float32, -bound, bound)
        return w, b

    w1, b1 = conv_init(ks[0], 32, 3)
    w2, b2 = conv_init(ks[1], 64, 32)
    w3, b3 = conv_init(ks[2], 32, 64)
    w4, b4 = conv_init(ks[3], 1, 32)
    emb = jax.random.normal(
        ks[4], (num_classes + 1, image_size * image_size), jnp.float32)
    return dict(w1=w1, b1=b1, w2=w2, b2=b2, w3=w3, b3=b3, w4=w4, b4=b4, emb=emb)


if __name__ == "__main__":
    num_classes, image_size, T = 10, 16, 100
    N = 4   # -> B=2 images per step, grid=(2,): exercises lane-batched path

    key = jax.random.PRNGKey(0)
    kp, kx, kt, ky = jax.random.split(key, 4)

    params = init_params(kp, num_classes, image_size)
    x = jax.random.normal(kx, (N, 1, image_size, image_size), jnp.float32)  # NCHW
    t = jax.random.randint(kt, (N,), 0, T)
    y = jax.random.randint(ky, (N,), 0, num_classes + 1)

    out = backward_pass_forward(params, x, t, y, T=T, image_size=image_size)
    out = jax.block_until_ready(out)

    ref = reference_forward(params, x, t, y, T=T, image_size=image_size)
    ref = jax.block_until_ready(ref)

    assert out.shape == (N, 1, image_size, image_size), out.shape
    if not jnp.allclose(out, ref, atol=2e-3, rtol=2e-3):
        raise AssertionError(
            f"mismatch: max abs err = {float(jnp.max(jnp.abs(out - ref)))}")
    print("KERNEL_OK")
</pallas_src>

<mosaic_0001>
module attributes {stable_mosaic.version = 11 : i64} {
  func.func @_fused_kernel(%arg0: i32, %arg1: memref<1x8x512xf32, #tpu.memory_space<vmem>>, %arg2: memref<8x512xf32, #tpu.memory_space<vmem>>, %arg3: memref<32x72xf32, #tpu.memory_space<vmem>>, %arg4: memref<32x1xf32, #tpu.memory_space<vmem>>, %arg5: memref<64x288xf32, #tpu.memory_space<vmem>>, %arg6: memref<64x1xf32, #tpu.memory_space<vmem>>, %arg7: memref<32x576xf32, #tpu.memory_space<vmem>>, %arg8: memref<32x1xf32, #tpu.memory_space<vmem>>, %arg9: memref<1x288xf32, #tpu.memory_space<vmem>>, %arg10: memref<1x1xf32, #tpu.memory_space<vmem>>, %arg11: memref<1x1x512xf32, #tpu.memory_space<vmem>>) attributes {dimension_semantics = [#tpu.dimension_semantics<parallel>], iteration_bounds = array<i64: 2>, scalar_prefetch = 0 : i64, scratch_operands = 0 : i64, tpu.core_type = #tpu.core_type<tc>, window_params = [{transform_indices = @transform_0, window_bounds = array<i64: 1, 8, 512>}, {pipeline_mode = #tpu.pipeline_mode<synchronous>, transform_indices = @transform_1, window_bounds = array<i64: 8, 512>}, {pipeline_mode = #tpu.pipeline_mode<synchronous>, transform_indices = @transform_2, window_bounds = array<i64: 32, 72>}, {pipeline_mode = #tpu.pipeline_mode<synchronous>, transform_indices = @transform_3, window_bounds = array<i64: 32, 1>}, {pipeline_mode = #tpu.pipeline_mode<synchronous>, transform_indices = @transform_4, window_bounds = array<i64: 64, 288>}, {pipeline_mode = #tpu.pipeline_mode<synchronous>, transform_indices = @transform_5, window_bounds = array<i64: 64, 1>}, {pipeline_mode = #tpu.pipeline_mode<synchronous>, transform_indices = @transform_6, window_bounds = array<i64: 32, 576>}, {pipeline_mode = #tpu.pipeline_mode<synchronous>, transform_indices = @transform_7, window_bounds = array<i64: 32, 1>}, {pipeline_mode = #tpu.pipeline_mode<synchronous>, transform_indices = @transform_8, window_bounds = array<i64: 1, 288>}, {pipeline_mode = #tpu.pipeline_mode<synchronous>, transform_indices = @transform_9, window_bounds = array<i64: 1, 1>}, {transform_indices = @transform_10, window_bounds = array<i64: 1, 1, 512>}]} {
    %c0 = arith.constant 0 : index
    %c0_0 = arith.constant 0 : index
    %c0_1 = arith.constant 0 : index
    %0 = vector.load %arg1[%c0, %c0_0, %c0_1] : memref<1x8x512xf32, #tpu.memory_space<vmem>>, vector<1x8x512xf32>
    %1 = vector.shape_cast %0 : vector<1x8x512xf32> to vector<8x512xf32>
    %c17_i32 = arith.constant 17 : i32
    %2 = tpu.dynamic_rotate %1 by %c17_i32 dim 1 : vector<8x512xf32>, i32 -> vector<8x512xf32>
    %c0_2 = arith.constant 0 : index
    %c0_3 = arith.constant 0 : index
    %3 = vector.load %arg2[%c0_2, %c0_3] : memref<8x512xf32, #tpu.memory_space<vmem>>, vector<1x512xf32>
    %4 = vector.broadcast %3 : vector<1x512xf32> to vector<8x512xf32>
    %5 = arith.mulf %2, %4 : vector<8x512xf32>
    %c16_i32 = arith.constant 16 : i32
    %6 = tpu.dynamic_rotate %1 by %c16_i32 dim 1 : vector<8x512xf32>, i32 -> vector<8x512xf32>
    %c1 = arith.constant 1 : index
    %c0_4 = arith.constant 0 : index
    %7 = vector.load %arg2[%c1, %c0_4] : memref<8x512xf32, #tpu.memory_space<vmem>>, vector<1x512xf32>
    %8 = vector.broadcast %7 : vector<1x512xf32> to vector<8x512xf32>
    %9 = arith.mulf %6, %8 : vector<8x512xf32>
    %c15_i32 = arith.constant 15 : i32
    %10 = tpu.dynamic_rotate %1 by %c15_i32 dim 1 : vector<8x512xf32>, i32 -> vector<8x512xf32>
    %c2 = arith.constant 2 : index
    %c0_5 = arith.constant 0 : index
    %11 = vector.load %arg2[%c2, %c0_5] : memref<8x512xf32, #tpu.memory_space<vmem>>, vector<1x512xf32>
    %12 = vector.broadcast %11 : vector<1x512xf32> to vector<8x512xf32>
    %13 = arith.mulf %10, %12 : vector<8x512xf32>
    %c1_i32 = arith.constant 1 : i32
    %14 = tpu.dynamic_rotate %1 by %c1_i32 dim 1 : vector<8x512xf32>, i32 -> vector<8x512xf32>
    %c3 = arith.constant 3 : index
    %c0_6 = arith.constant 0 : index
    %15 = vector.load %arg2[%c3, %c0_6] : memref<8x512xf32, #tpu.memory_space<vmem>>, vector<1x512xf32>
    %16 = vector.broadcast %15 : vector<1x512xf32> to vector<8x512xf32>
    %17 = arith.mulf %14, %16 : vector<8x512xf32>
    %c511_i32 = arith.constant 511 : i32
    %18 = tpu.dynamic_rotate %1 by %c511_i32 dim 1 : vector<8x512xf32>, i32 -> vector<8x512xf32>
    %c4 = arith.constant 4 : index
    %c0_7 = arith.constant 0 : index
    %19 = vector.load %arg2[%c4, %c0_7] : memref<8x512xf32, #tpu.memory_space<vmem>>, vector<1x512xf32>
    %20 = vector.broadcast %19 : vector<1x512xf32> to vector<8x512xf32>
    %21 = arith.mulf %18, %20 : vector<8x512xf32>
    %c497_i32 = arith.constant 497 : i32
    %22 = tpu.dynamic_rotate %1 by %c497_i32 dim 1 : vector<8x512xf32>, i32 -> vector<8x512xf32>
    %c5 = arith.constant 5 : index
    %c0_8 = arith.constant 0 : index
    %23 = vector.load %arg2[%c5, %c0_8] : memref<8x512xf32, #tpu.memory_space<vmem>>, vector<1x512xf32>
    %24 = vector.broadcast %23 : vector<1x512xf32> to vector<8x512xf32>
    %25 = arith.mulf %22, %24 : vector<8x512xf32>
    %c496_i32 = arith.constant 496 : i32
    %26 = tpu.dynamic_rotate %1 by %c496_i32 dim 1 : vector<8x512xf32>, i32 -> vector<8x512xf32>
    %c6 = arith.constant 6 : index
    %c0_9 = arith.constant 0 : index
    %27 = vector.load %arg2[%c6, %c0_9] : memref<8x512xf32, #tpu.memory_space<vmem>>, vector<1x512xf32>
    %28 = vector.broadcast %27 : vector<1x512xf32> to vector<8x512xf32>
    %29 = arith.mulf %26, %28 : vector<8x512xf32>
    %c495_i32 = arith.constant 495 : i32
    %30 = tpu.dynamic_rotate %1 by %c495_i32 dim 1 : vector<8x512xf32>, i32 -> vector<8x512xf32>
    %c7 = arith.constant 7 : index
    %c0_10 = arith.constant 0 : index
    %31 = vector.load %arg2[%c7, %c0_10] : memref<8x512xf32, #tpu.memory_space<vmem>>, vector<1x512xf32>
    %32 = vector.broadcast %31 : vector<1x512xf32> to vector<8x512xf32>
    %33 = arith.mulf %30, %32 : vector<8x512xf32>
    %34 = tpu.concatenate %5, %9, %13, %17, %1, %21, %25, %29, %33 in 0 : vector<8x512xf32>, vector<8x512xf32>, vector<8x512xf32>, vector<8x512xf32>, vector<8x512xf32>, vector<8x512xf32>, vector<8x512xf32>, vector<8x512xf32>, vector<8x512xf32> -> vector<72x512xf32>
    %c0_11 = arith.constant 0 : index
    %c0_12 = arith.constant 0 : index
    %35 = vector.load %arg3[%c0_11, %c0_12] : memref<32x72xf32, #tpu.memory_space<vmem>>, vector<32x72xf32>
    %cst = arith.constant dense<0.000000e+00> : vector<32x512xf32>
    %36 = tpu.matmul %35, %34, %cst {dimension_numbers = #tpu.dot_dimension_numbers<[1], [0], [0], [1], [0, 0, 1, 1], [], []>} : vector<32x72xf32>, vector<72x512xf32>, vector<32x512xf32> -> vector<32x512xf32>
    %c0_13 = arith.constant 0 : index
    %c0_14 = arith.constant 0 : index
    %37 = vector.load %arg4[%c0_13, %c0_14] : memref<32x1xf32, #tpu.memory_space<vmem>>, vector<32x1xf32>
    %38 = vector.broadcast %37 : vector<32x1xf32> to vector<32x512xf32>
    %39 = arith.addf %36, %38 : vector<32x512xf32>
    %cst_15 = arith.constant 0.000000e+00 : f32
    %40 = vector.broadcast %cst_15 : f32 to vector<32x512xf32>
    %41 = arith.maximumf %39, %40 : vector<32x512xf32>
    %c17_i32_16 = arith.constant 17 : i32
    %42 = tpu.dynamic_rotate %41 by %c17_i32_16 dim 1 : vector<32x512xf32>, i32 -> vector<32x512xf32>
    %c0_17 = arith.constant 0 : index
    %c0_18 = arith.constant 0 : index
    %43 = vector.load %arg2[%c0_17, %c0_18] : memref<8x512xf32, #tpu.memory_space<vmem>>, vector<1x512xf32>
    %44 = vector.broadcast %43 : vector<1x512xf32> to vector<32x512xf32>
    %45 = arith.mulf %42, %44 : vector<32x512xf32>
    %c16_i32_19 = arith.constant 16 : i32
    %46 = tpu.dynamic_rotate %41 by %c16_i32_19 dim 1 : vector<32x512xf32>, i32 -> vector<32x512xf32>
    %c1_20 = arith.constant 1 : index
    %c0_21 = arith.constant 0 : index
    %47 = vector.load %arg2[%c1_20, %c0_21] : memref<8x512xf32, #tpu.memory_space<vmem>>, vector<1x512xf32>
    %48 = vector.broadcast %47 : vector<1x512xf32> to vector<32x512xf32>
    %49 = arith.mulf %46, %48 : vector<32x512xf32>
    %c15_i32_22 = arith.constant 15 : i32
    %50 = tpu.dynamic_rotate %41 by %c15_i32_22 dim 1 : vector<32x512xf32>, i32 -> vector<32x512xf32>
    %c2_23 = arith.constant 2 : index
    %c0_24 = arith.constant 0 : index
    %51 = vector.load %arg2[%c2_23, %c0_24] : memref<8x512xf32, #tpu.memory_space<vmem>>, vector<1x512xf32>
    %52 = vector.broadcast %51 : vector<1x512xf32> to vector<32x512xf32>
    %53 = arith.mulf %50, %52 : vector<32x512xf32>
    %c1_i32_25 = arith.constant 1 : i32
    %54 = tpu.dynamic_rotate %41 by %c1_i32_25 dim 1 : vector<32x512xf32>, i32 -> vector<32x512xf32>
    %c3_26 = arith.constant 3 : index
    %c0_27 = arith.constant 0 : index
    %55 = vector.load %arg2[%c3_26, %c0_27] : memref<8x512xf32, #tpu.memory_space<vmem>>, vector<1x512xf32>
    %56 = vector.broadcast %55 : vector<1x512xf32> to vector<32x512xf32>
    %57 = arith.mulf %54, %56 : vector<32x512xf32>
    %c511_i32_28 = arith.constant 511 : i32
    %58 = tpu.dynamic_rotate %41 by %c511_i32_28 dim 1 : vector<32x512xf32>, i32 -> vector<32x512xf32>
    %c4_29 = arith.constant 4 : index
    %c0_30 = arith.constant 0 : index
    %59 = vector.load %arg2[%c4_29, %c0_30] : memref<8x512xf32, #tpu.memory_space<vmem>>, vector<1x512xf32>
    %60 = vector.broadcast %59 : vector<1x512xf32> to vector<32x512xf32>
    %61 = arith.mulf %58, %60 : vector<32x512xf32>
    %c497_i32_31 = arith.constant 497 : i32
    %62 = tpu.dynamic_rotate %41 by %c497_i32_31 dim 1 : vector<32x512xf32>, i32 -> vector<32x512xf32>
    %c5_32 = arith.constant 5 : index
    %c0_33 = arith.constant 0 : index
    %63 = vector.load %arg2[%c5_32, %c0_33] : memref<8x512xf32, #tpu.memory_space<vmem>>, vector<1x512xf32>
    %64 = vector.broadcast %63 : vector<1x512xf32> to vector<32x512xf32>
    %65 = arith.mulf %62, %64 : vector<32x512xf32>
    %c496_i32_34 = arith.constant 496 : i32
    %66 = tpu.dynamic_rotate %41 by %c496_i32_34 dim 1 : vector<32x512xf32>, i32 -> vector<32x512xf32>
    %c6_35 = arith.constant 6 : index
    %c0_36 = arith.constant 0 : index
    %67 = vector.load %arg2[%c6_35, %c0_36] : memref<8x512xf32, #tpu.memory_space<vmem>>, vector<1x512xf32>
    %68 = vector.broadcast %67 : vector<1x512xf32> to vector<32x512xf32>
    %69 = arith.mulf %66, %68 : vector<32x512xf32>
    %c495_i32_37 = arith.constant 495 : i32
    %70 = tpu.dynamic_rotate %41 by %c495_i32_37 dim 1 : vector<32x512xf32>, i32 -> vector<32x512xf32>
    %c7_38 = arith.constant 7 : index
    %c0_39 = arith.constant 0 : index
    %71 = vector.load %arg2[%c7_38, %c0_39] : memref<8x512xf32, #tpu.memory_space<vmem>>, vector<1x512xf32>
    %72 = vector.broadcast %71 : vector<1x512xf32> to vector<32x512xf32>
    %73 = arith.mulf %70, %72 : vector<32x512xf32>
    %74 = tpu.concatenate %45, %49, %53, %57, %41, %61, %65, %69, %73 in 0 : vector<32x512xf32>, vector<32x512xf32>, vector<32x512xf32>, vector<32x512xf32>, vector<32x512xf32>, vector<32x512xf32>, vector<32x512xf32>, vector<32x512xf32>, vector<32x512xf32> -> vector<288x512xf32>
    %c0_40 = arith.constant 0 : index
    %c0_41 = arith.constant 0 : index
    %75 = vector.load %arg5[%c0_40, %c0_41] : memref<64x288xf32, #tpu.memory_space<vmem>>, vector<64x288xf32>
    %cst_42 = arith.constant dense<0.000000e+00> : vector<64x512xf32>
    %76 = tpu.matmul %75, %74, %cst_42 {dimension_numbers = #tpu.dot_dimension_numbers<[1], [0], [0], [1], [0, 0, 1, 1], [], []>} : vector<64x288xf32>, vector<288x512xf32>, vector<64x512xf32> -> vector<64x512xf32>
    %c0_43 = arith.constant 0 : index
    %c0_44 = arith.constant 0 : index
    %77 = vector.load %arg6[%c0_43, %c0_44] : memref<64x1xf32, #tpu.memory_space<vmem>>, vector<64x1xf32>
    %78 = vector.broadcast %77 : vector<64x1xf32> to vector<64x512xf32>
    %79 = arith.addf %76, %78 : vector<64x512xf32>
    %cst_45 = arith.constant 0.000000e+00 : f32
    %80 = vector.broadcast %cst_45 : f32 to vector<64x512xf32>
    %81 = arith.maximumf %79, %80 : vector<64x512xf32>
    %c17_i32_46 = arith.constant 17 : i32
    %82 = tpu.dynamic_rotate %81 by %c17_i32_46 dim 1 : vector<64x512xf32>, i32 -> vector<64x512xf32>
    %c0_47 = arith.constant 0 : index
    %c0_48 = arith.constant 0 : index
    %83 = vector.load %arg2[%c0_47, %c0_48] : memref<8x512xf32, #tpu.memory_space<vmem>>, vector<1x512xf32>
    %84 = vector.broadcast %83 : vector<1x512xf32> to vector<64x512xf32>
    %85 = arith.mulf %82, %84 : vector<64x512xf32>
    %c16_i32_49 = arith.constant 16 : i32
    %86 = tpu.dynamic_rotate %81 by %c16_i32_49 dim 1 : vector<64x512xf32>, i32 -> vector<64x512xf32>
    %c1_50 = arith.constant 1 : index
    %c0_51 = arith.constant 0 : index
    %87 = vector.load %arg2[%c1_50, %c0_51] : memref<8x512xf32, #tpu.memory_space<vmem>>, vector<1x512xf32>
    %88 = vector.broadcast %87 : vector<1x512xf32> to vector<64x512xf32>
    %89 = arith.mulf %86, %88 : vector<64x512xf32>
    %c15_i32_52 = arith.constant 15 : i32
    %90 = tpu.dynamic_rotate %81 by %c15_i32_52 dim 1 : vector<64x512xf32>, i32 -> vector<64x512xf32>
    %c2_53 = arith.constant 2 : index
    %c0_54 = arith.constant 0 : index
    %91 = vector.load %arg2[%c2_53, %c0_54] : memref<8x512xf32, #tpu.memory_space<vmem>>, vector<1x512xf32>
    %92 = vector.broadcast %91 : vector<1x512xf32> to vector<64x512xf32>
    %93 = arith.mulf %90, %92 : vector<64x512xf32>
    %c1_i32_55 = arith.constant 1 : i32
    %94 = tpu.dynamic_rotate %81 by %c1_i32_55 dim 1 : vector<64x512xf32>, i32 -> vector<64x512xf32>
    %c3_56 = arith.constant 3 : index
    %c0_57 = arith.constant 0 : index
    %95 = vector.load %arg2[%c3_56, %c0_57] : memref<8x512xf32, #tpu.memory_space<vmem>>, vector<1x512xf32>
    %96 = vector.broadcast %95 : vector<1x512xf32> to vector<64x512xf32>
    %97 = arith.mulf %94, %96 : vector<64x512xf32>
    %c511_i32_58 = arith.constant 511 : i32
    %98 = tpu.dynamic_rotate %81 by %c511_i32_58 dim 1 : vector<64x512xf32>, i32 -> vector<64x512xf32>
    %c4_59 = arith.constant 4 : index
    %c0_60 = arith.constant 0 : index
    %99 = vector.load %arg2[%c4_59, %c0_60] : memref<8x512xf32, #tpu.memory_space<vmem>>, vector<1x512xf32>
    %100 = vector.broadcast %99 : vector<1x512xf32> to vector<64x512xf32>
    %101 = arith.mulf %98, %100 : vector<64x512xf32>
    %c497_i32_61 = arith.constant 497 : i32
    %102 = tpu.dynamic_rotate %81 by %c497_i32_61 dim 1 : vector<64x512xf32>, i32 -> vector<64x512xf32>
    %c5_62 = arith.constant 5 : index
    %c0_63 = arith.constant 0 : index
    %103 = vector.load %arg2[%c5_62, %c0_63] : memref<8x512xf32, #tpu.memory_space<vmem>>, vector<1x512xf32>
    %104 = vector.broadcast %103 : vector<1x512xf32> to vector<64x512xf32>
    %105 = arith.mulf %102, %104 : vector<64x512xf32>
    %c496_i32_64 = arith.constant 496 : i32
    %106 = tpu.dynamic_rotate %81 by %c496_i32_64 dim 1 : vector<64x512xf32>, i32 -> vector<64x512xf32>
    %c6_65 = arith.constant 6 : index
    %c0_66 = arith.constant 0 : index
    %107 = vector.load %arg2[%c6_65, %c0_66] : memref<8x512xf32, #tpu.memory_space<vmem>>, vector<1x512xf32>
    %108 = vector.broadcast %107 : vector<1x512xf32> to vector<64x512xf32>
    %109 = arith.mulf %106, %108 : vector<64x512xf32>
    %c495_i32_67 = arith.constant 495 : i32
    %110 = tpu.dynamic_rotate %81 by %c495_i32_67 dim 1 : vector<64x512xf32>, i32 -> vector<64x512xf32>
    %c7_68 = arith.constant 7 : index
    %c0_69 = arith.constant 0 : index
    %111 = vector.load %arg2[%c7_68, %c0_69] : memref<8x512xf32, #tpu.memory_space<vmem>>, vector<1x512xf32>
    %112 = vector.broadcast %111 : vector<1x512xf32> to vector<64x512xf32>
    %113 = arith.mulf %110, %112 : vector<64x512xf32>
    %114 = tpu.concatenate %85, %89, %93, %97, %81, %101, %105, %109, %113 in 0 : vector<64x512xf32>, vector<64x512xf32>, vector<64x512xf32>, vector<64x512xf32>, vector<64x512xf32>, vector<64x512xf32>, vector<64x512xf32>, vector<64x512xf32>, vector<64x512xf32> -> vector<576x512xf32>
    %c0_70 = arith.constant 0 : index
    %c0_71 = arith.constant 0 : index
    %115 = vector.load %arg7[%c0_70, %c0_71] : memref<32x576xf32, #tpu.memory_space<vmem>>, vector<32x576xf32>
    %cst_72 = arith.constant dense<0.000000e+00> : vector<32x512xf32>
    %116 = tpu.matmul %115, %114, %cst_72 {dimension_numbers = #tpu.dot_dimension_numbers<[1], [0], [0], [1], [0, 0, 1, 1], [], []>} : vector<32x576xf32>, vector<576x512xf32>, vector<32x512xf32> -> vector<32x512xf32>
    %c0_73 = arith.constant 0 : index
    %c0_74 = arith.constant 0 : index
    %117 = vector.load %arg8[%c0_73, %c0_74] : memref<32x1xf32, #tpu.memory_space<vmem>>, vector<32x1xf32>
    %118 = vector.broadcast %117 : vector<32x1xf32> to vector<32x512xf32>
    %119 = arith.addf %116, %118 : vector<32x512xf32>
    %cst_75 = arith.constant 0.000000e+00 : f32
    %120 = vector.broadcast %cst_75 : f32 to vector<32x512xf32>
    %121 = arith.maximumf %119, %120 : vector<32x512xf32>
    %c17_i32_76 = arith.constant 17 : i32
    %122 = tpu.dynamic_rotate %121 by %c17_i32_76 dim 1 : vector<32x512xf32>, i32 -> vector<32x512xf32>
    %c0_77 = arith.constant 0 : index
    %c0_78 = arith.constant 0 : index
    %123 = vector.load %arg2[%c0_77, %c0_78] : memref<8x512xf32, #tpu.memory_space<vmem>>, vector<1x512xf32>
    %124 = vector.broadcast %123 : vector<1x512xf32> to vector<32x512xf32>
    %125 = arith.mulf %122, %124 : vector<32x512xf32>
    %c16_i32_79 = arith.constant 16 : i32
    %126 = tpu.dynamic_rotate %121 by %c16_i32_79 dim 1 : vector<32x512xf32>, i32 -> vector<32x512xf32>
    %c1_80 = arith.constant 1 : index
    %c0_81 = arith.constant 0 : index
    %127 = vector.load %arg2[%c1_80, %c0_81] : memref<8x512xf32, #tpu.memory_space<vmem>>, vector<1x512xf32>
    %128 = vector.broadcast %127 : vector<1x512xf32> to vector<32x512xf32>
    %129 = arith.mulf %126, %128 : vector<32x512xf32>
    %c15_i32_82 = arith.constant 15 : i32
    %130 = tpu.dynamic_rotate %121 by %c15_i32_82 dim 1 : vector<32x512xf32>, i32 -> vector<32x512xf32>
    %c2_83 = arith.constant 2 : index
    %c0_84 = arith.constant 0 : index
    %131 = vector.load %arg2[%c2_83, %c0_84] : memref<8x512xf32, #tpu.memory_space<vmem>>, vector<1x512xf32>
    %132 = vector.broadcast %131 : vector<1x512xf32> to vector<32x512xf32>
    %133 = arith.mulf %130, %132 : vector<32x512xf32>
    %c1_i32_85 = arith.constant 1 : i32
    %134 = tpu.dynamic_rotate %121 by %c1_i32_85 dim 1 : vector<32x512xf32>, i32 -> vector<32x512xf32>
    %c3_86 = arith.constant 3 : index
    %c0_87 = arith.constant 0 : index
    %135 = vector.load %arg2[%c3_86, %c0_87] : memref<8x512xf32, #tpu.memory_space<vmem>>, vector<1x512xf32>
    %136 = vector.broadcast %135 : vector<1x512xf32> to vector<32x512xf32>
    %137 = arith.mulf %134, %136 : vector<32x512xf32>
    %c511_i32_88 = arith.constant 511 : i32
    %138 = tpu.dynamic_rotate %121 by %c511_i32_88 dim 1 : vector<32x512xf32>, i32 -> vector<32x512xf32>
    %c4_89 = arith.constant 4 : index
    %c0_90 = arith.constant 0 : index
    %139 = vector.load %arg2[%c4_89, %c0_90] : memref<8x512xf32, #tpu.memory_space<vmem>>, vector<1x512xf32>
    %140 = vector.broadcast %139 : vector<1x512xf32> to vector<32x512xf32>
    %141 = arith.mulf %138, %140 : vector<32x512xf32>
    %c497_i32_91 = arith.constant 497 : i32
    %142 = tpu.dynamic_rotate %121 by %c497_i32_91 dim 1 : vector<32x512xf32>, i32 -> vector<32x512xf32>
    %c5_92 = arith.constant 5 : index
    %c0_93 = arith.constant 0 : index
    %143 = vector.load %arg2[%c5_92, %c0_93] : memref<8x512xf32, #tpu.memory_space<vmem>>, vector<1x512xf32>
    %144 = vector.broadcast %143 : vector<1x512xf32> to vector<32x512xf32>
    %145 = arith.mulf %142, %144 : vector<32x512xf32>
    %c496_i32_94 = arith.constant 496 : i32
    %146 = tpu.dynamic_rotate %121 by %c496_i32_94 dim 1 : vector<32x512xf32>, i32 -> vector<32x512xf32>
    %c6_95 = arith.constant 6 : index
    %c0_96 = arith.constant 0 : index
    %147 = vector.load %arg2[%c6_95, %c0_96] : memref<8x512xf32, #tpu.memory_space<vmem>>, vector<1x512xf32>
    %148 = vector.broadcast %147 : vector<1x512xf32> to vector<32x512xf32>
    %149 = arith.mulf %146, %148 : vector<32x512xf32>
    %c495_i32_97 = arith.constant 495 : i32
    %150 = tpu.dynamic_rotate %121 by %c495_i32_97 dim 1 : vector<32x512xf32>, i32 -> vector<32x512xf32>
    %c7_98 = arith.constant 7 : index
    %c0_99 = arith.constant 0 : index
    %151 = vector.load %arg2[%c7_98, %c0_99] : memref<8x512xf32, #tpu.memory_space<vmem>>, vector<1x512xf32>
    %152 = vector.broadcast %151 : vector<1x512xf32> to vector<32x512xf32>
    %153 = arith.mulf %150, %152 : vector<32x512xf32>
    %154 = tpu.concatenate %125, %129, %133, %137, %121, %141, %145, %149, %153 in 0 : vector<32x512xf32>, vector<32x512xf32>, vector<32x512xf32>, vector<32x512xf32>, vector<32x512xf32>, vector<32x512xf32>, vector<32x512xf32>, vector<32x512xf32>, vector<32x512xf32> -> vector<288x512xf32>
    %c0_100 = arith.constant 0 : index
    %c0_101 = arith.constant 0 : index
    %155 = vector.load %arg9[%c0_100, %c0_101] : memref<1x288xf32, #tpu.memory_space<vmem>>, vector<1x288xf32>
    %cst_102 = arith.constant dense<0.000000e+00> : vector<1x512xf32>
    %156 = tpu.matmul %155, %154, %cst_102 {dimension_numbers = #tpu.dot_dimension_numbers<[1], [0], [0], [1], [0, 0, 1, 1], [], []>} : vector<1x288xf32>, vector<288x512xf32>, vector<1x512xf32> -> vector<1x512xf32>
    %c0_103 = arith.constant 0 : index
    %c0_104 = arith.constant 0 : index
    %157 = vector.load %arg10[%c0_103, %c0_104] : memref<1x1xf32, #tpu.memory_space<vmem>>, vector<1x1xf32>
    %158 = vector.broadcast %157 : vector<1x1xf32> to vector<1x512xf32>
    %159 = arith.addf %156, %158 : vector<1x512xf32>
    %c0_105 = arith.constant 0 : index
    %c0_106 = arith.constant 0 : index
    %c0_107 = arith.constant 0 : index
    %160 = vector.load %arg11[%c0_105, %c0_106, %c0_107] : memref<1x1x512xf32, #tpu.memory_space<vmem>>, vector<1x1x512xf32>
    %161 = vector.shape_cast %160 : vector<1x1x512xf32> to vector<1x512xf32>
    %162 = vector.shape_cast %159 : vector<1x512xf32> to vector<1x1x512xf32>
    tpu.vector_store %arg11[%c0_105, %c0_106, %c0_107], %162 {strides = array<i32>} : memref<1x1x512xf32, #tpu.memory_space<vmem>>, vector<1x1x512xf32>,
    return
  }
  func.func @transform_0(%arg0: i32) -> (i32, i32, i32) {
    %c0_i32 = arith.constant 0 : i32
    %c0_i32_0 = arith.constant 0 : i32
    %c0_i32_1 = arith.constant 0 : i32
    return %arg0, %c0_i32, %c0_i32_0 : i32, i32, i32
  }
  func.func @transform_1(%arg0: i32) -> (i32, i32) {
    %c0_i32 = arith.constant 0 : i32
    %c0_i32_0 = arith.constant 0 : i32
    %c0_i32_1 = arith.constant 0 : i32
    return %c0_i32, %c0_i32_0 : i32, i32
  }
  func.func @transform_2(%arg0: i32) -> (i32, i32) {
    %c0_i32 = arith.constant 0 : i32
    %c0_i32_0 = arith.constant 0 : i32
    %c0_i32_1 = arith.constant 0 : i32
    return %c0_i32, %c0_i32_0 : i32, i32
  }
  func.func @transform_3(%arg0: i32) -> (i32, i32) {
    %c0_i32 = arith.constant 0 : i32
    %c0_i32_0 = arith.constant 0 : i32
    %c0_i32_1 = arith.constant 0 : i32
    return %c0_i32, %c0_i32_0 : i32, i32
  }
  func.func @transform_4(%arg0: i32) -> (i32, i32) {
    %c0_i32 = arith.constant 0 : i32
    %c0_i32_0 = arith.constant 0 : i32
    %c0_i32_1 = arith.constant 0 : i32
    return %c0_i32, %c0_i32_0 : i32, i32
  }
  func.func @transform_5(%arg0: i32) -> (i32, i32) {
    %c0_i32 = arith.constant 0 : i32
    %c0_i32_0 = arith.constant 0 : i32
    %c0_i32_1 = arith.constant 0 : i32
    return %c0_i32, %c0_i32_0 : i32, i32
  }
  func.func @transform_6(%arg0: i32) -> (i32, i32) {
    %c0_i32 = arith.constant 0 : i32
    %c0_i32_0 = arith.constant 0 : i32
    %c0_i32_1 = arith.constant 0 : i32
    return %c0_i32, %c0_i32_0 : i32, i32
  }
  func.func @transform_7(%arg0: i32) -> (i32, i32) {
    %c0_i32 = arith.constant 0 : i32
    %c0_i32_0 = arith.constant 0 : i32
    %c0_i32_1 = arith.constant 0 : i32
    return %c0_i32, %c0_i32_0 : i32, i32
  }
  func.func @transform_8(%arg0: i32) -> (i32, i32) {
    %c0_i32 = arith.constant 0 : i32
    %c0_i32_0 = arith.constant 0 : i32
    %c0_i32_1 = arith.constant 0 : i32
    return %c0_i32, %c0_i32_0 : i32, i32
  }
  func.func @transform_9(%arg0: i32) -> (i32, i32) {
    %c0_i32 = arith.constant 0 : i32
    %c0_i32_0 = arith.constant 0 : i32
    %c0_i32_1 = arith.constant 0 : i32
    return %c0_i32, %c0_i32_0 : i32, i32
  }
  func.func @transform_10(%arg0: i32) -> (i32, i32, i32) {
    %c0_i32 = arith.constant 0 : i32
    %c0_i32_0 = arith.constant 0 : i32
    %c0_i32_1 = arith.constant 0 : i32
    return %arg0, %c0_i32, %c0_i32_0 : i32, i32, i32
  }
}

</mosaic_0001>

<llo_original>
// kernel: tpu_custom_call.1
$region0: #{tpu_custom_call.1}
  #allocation0 [shape = 'u32[]', space=smem, size = 0x4, offset = 0x4, fixed_abs, tag = 'smem constant byte address 0x4 - core index']
  #allocation1 [shape = 'u32[144,128]{1,0:T(1,128)}', space=vmem, size = 0x12000, scoped, tag = 'internal scratch']
  #allocation2 [shape = 'f32[1,1]{1,0:T(1,128)S(1)}', space=vmem, size = 0x200, scoped, tag = 'scoped memory for tpu_custom_call.1']
  %s0 = inlined_call_operand.vmem [shape: f32[2,8,512], index: 0, kind: input, shape index: {}]
  %s1 = inlined_call_operand.vmem [shape: f32[8,512], index: 1, kind: input, shape index: {}]
  %s2 = inlined_call_operand.vmem [shape: f32[32,72], index: 2, kind: input, shape index: {}]
  %s3 = inlined_call_operand.vmem [shape: f32[32,1], index: 3, kind: input, shape index: {}]
  %s4 = inlined_call_operand.hbm [shape: f32[64,288], index: 4, kind: input, shape index: {}]
  %s5 = inlined_call_operand.vmem [shape: f32[64,1], index: 5, kind: input, shape index: {}]
  %s6 = inlined_call_operand.hbm [shape: f32[32,576], index: 6, kind: input, shape index: {}]
  %s7 = inlined_call_operand.vmem [shape: f32[32,1], index: 7, kind: input, shape index: {}]
  %s8 = inlined_call_operand.vmem [shape: f32[1,288], index: 8, kind: input, shape index: {}]
  %s9 = inlined_call_operand.<no memory space> [shape: f32[1,1], index: 9, kind: input, shape index: {}]
  %s10 = inlined_call_operand.hbm [shape: f32[2,1,512], index: 10, kind: output, shape index: {}]
  %s11 = sld [smem:[#allocation0]]
  $region81: #{tpu_custom_call.1} parent=0
    _
  %s13 = ssub.s32 1, %s11
  %s14 = scalar_select 0, %s13, %s11
  %v15 = vstv %s9
  %16 = vst [vmem:[#allocation2] sm:$0x1] %v15
  $region1: #{tpu_custom_call.1} parent=0
    #allocation3 [shape = 'u8[98304]{0}', space=vmem, size = 0x18000, scoped, tag = 'input window, operand 4, single buffered']
    #allocation4 [shape = 's32[2]{0}', space=sflag, size = 0x8, scoped, tag = 'scoped memory for tpu_custom_call.1']
    #allocation5 [shape = 's32[2]{0}', space=sflag, size = 0x8, scoped, tag = 'scoped memory for tpu_custom_call.1']
    #allocation6 [shape = 'u8[81920]{0}', space=vmem, size = 0x14000, scoped, tag = 'input window, operand 6, single buffered']
    #allocation7 [shape = 's32[1]{0}', space=sflag, size = 0x4, scoped, tag = 'scoped memory for tpu_custom_call.1']
    #allocation8 [shape = 'u8[4096]{0}', space=vmem, size = 0x1000, scoped, tag = 'output window, operand 0']
    %17 = vsyncpa [#allocation4], 0
    %18 = vsyncpa [#allocation7], 0
    %19 = vsyncpa [#allocation5], 0
    %s20 = scalar_lea.sflag [#allocation5], 1
    %21 = vsyncpa %s20, 0
    loop: start=0, step=1, limit=4
    $region2: #{tpu_custom_call.1} parent=1 // loop_pre_header
      _
    $region3: #{tpu_custom_call.1} parent=1 // loop_header
      %s23 = sphi 0, %s27
      %p24 = scmp.ge.s32.totalorder %s23, 4
      %s33 = sphi 0, %s35
      %s36 = sphi 0, %s33
      %s37 = sphi 0, %s36
      %s53 = sphi 0, %s37
      %s57 = sphi 0, %s57
      %s59 = sphi 0, %s57
      %s60 = sphi 0, %s59
      %s74 = sphi 0, %s60
      %s78 = sphi 0, %s78
      %s80 = sphi 0, %s78
      %s81 = sphi 0, %s80
      %s95 = sphi 0, %s81
      %s99 = sphi 0, %s99
      %s101 = sphi 0, %s99
      %s102 = sphi 0, %s101
      %s116 = sphi 0, %s102
      %s120 = sphi 0, %s120
      %s122 = sphi 0, %s120
      %s123 = sphi 0, %s122
      %s137 = sphi 0, %s123
      %s141 = sphi 0, %s141
      %s143 = sphi 0, %s141
      %s144 = sphi 0, %s143
      %s158 = sphi 0, %s144
      %s162 = sphi 0, %s162
      %s164 = sphi 0, %s162
      %s165 = sphi 0, %s164
      %s179 = sphi 0, %s165
      %s183 = sphi 0, %s183
      %s185 = sphi 0, %s183
      %s186 = sphi 0, %s185
      %s200 = sphi 0, %s186
      %s204 = sphi 0, %s204
      %s206 = sphi 0, %s204
      %s207 = sphi 0, %s206
      %s221 = sphi 0, %s207
      %s225 = sphi 0, %s225
      %s227 = sphi 0, %s225
      %s228 = sphi 0, %s227
      %s242 = sphi 0, %s228
      %s248 = sphi 0, %s250
      %s251 = sphi 0, %s248
      %s252 = sphi 0, %s251
      %s268 = sphi 0, %s252
    $region4: #{tpu_custom_call.1} parent=1 // loop_header_branch
      %26 = sbr.rel (%p24) target = $region8
    $region5: #{tpu_custom_call.1} parent=1 // loop_body
      %s28 = ssub.s32 %s23, 1
      %s29 = ssub.s32 %s23, 2
      %s30 = sadd.s32 %s23, 1
      %s31 = ssub.s32 %s23, %s30
      %p32 = scmp.eq.s32.totalorder %s31, 0
      %s34 = sadd.s32 %s33, 1
      %s35 = scalar_select %p32, %s33, %s34
      %p38 = pneg %p32
      %p39 = scmp.eq.s32.totalorder %s23, 1
      %p40 = por %p38, %p39
      %p41 = scmp.ne.s32.totalorder %s33, %s36
      %p42 = scmp.eq.s32.totalorder %s23, 0
      %p43 = por %p41, %p42
      %p44 = scmp.ne.s32.totalorder %s33, %s36
      %p45 = scmp.eq.s32.totalorder %s28, 1
      %p46 = por %p44, %p45
      %p47 = scmp.ne.s32.totalorder %s36, %s37
      %p48 = scmp.eq.s32.totalorder %s28, 0
      %p49 = por %p47, %p48
      %p50 = scmp.ne.s32.totalorder %s36, %s37
      %p51 = scmp.eq.s32.totalorder %s29, 1
      %p52 = por %p50, %p51
      %p54 = scmp.ne.s32.totalorder %s37, %s53
      %p55 = scmp.eq.s32.totalorder %s29, 0
      %p56 = por %p54, %p55
      %s58 = sadd.s32 %s57, 1
      %p61 = scmp.eq.s32.totalorder %s23, 1
      %p62 = scmp.ne.s32.totalorder %s57, %s59
      %p63 = scmp.eq.s32.totalorder %s23, 0
      %p64 = por %p62, %p63
      %p65 = scmp.ne.s32.totalorder %s57, %s59
      %p66 = scmp.eq.s32.totalorder %s28, 1
      %p67 = por %p65, %p66
      %p68 = scmp.ne.s32.totalorder %s59, %s60
      %p69 = scmp.eq.s32.totalorder %s28, 0
      %p70 = por %p68, %p69
      %p71 = scmp.ne.s32.totalorder %s59, %s60
      %p72 = scmp.eq.s32.totalorder %s29, 1
      %p73 = por %p71, %p72
      %p75 = scmp.ne.s32.totalorder %s60, %s74
      %p76 = scmp.eq.s32.totalorder %s29, 0
      %p77 = por %p75, %p76
      %s79 = sadd.s32 %s78, 1
      %p82 = scmp.eq.s32.totalorder %s23, 1
      %p83 = scmp.ne.s32.totalorder %s78, %s80
      %p84 = scmp.eq.s32.totalorder %s23, 0
      %p85 = por %p83, %p84
      %p86 = scmp.ne.s32.totalorder %s78, %s80
      %p87 = scmp.eq.s32.totalorder %s28, 1
      %p88 = por %p86, %p87
      %p89 = scmp.ne.s32.totalorder %s80, %s81
      %p90 = scmp.eq.s32.totalorder %s28, 0
      %p91 = por %p89, %p90
      %p92 = scmp.ne.s32.totalorder %s80, %s81
      %p93 = scmp.eq.s32.totalorder %s29, 1
      %p94 = por %p92, %p93
      %p96 = scmp.ne.s32.totalorder %s81, %s95
      %p97 = scmp.eq.s32.totalorder %s29, 0
      %p98 = por %p96, %p97
      %s100 = sadd.s32 %s99, 1
      %p103 = scmp.eq.s32.totalorder %s23, 1
      %p104 = scmp.ne.s32.totalorder %s99, %s101
      %p105 = scmp.eq.s32.totalorder %s23, 0
      %p106 = por %p104, %p105
      %p107 = scmp.ne.s32.totalorder %s99, %s101
      %p108 = scmp.eq.s32.totalorder %s28, 1
      %p109 = por %p107, %p108
      %p110 = scmp.ne.s32.totalorder %s101, %s102
      %p111 = scmp.eq.s32.totalorder %s28, 0
      %p112 = por %p110, %p111
      %p113 = scmp.ne.s32.totalorder %s101, %s102
      %p114 = scmp.eq.s32.totalorder %s29, 1
      %p115 = por %p113, %p114
      %p117 = scmp.ne.s32.totalorder %s102, %s116
      %p118 = scmp.eq.s32.totalorder %s29, 0
      %p119 = por %p117, %p118
      %s121 = sadd.s32 %s120, 1
      %p124 = scmp.eq.s32.totalorder %s23, 1
      %p125 = scmp.ne.s32.totalorder %s120, %s122
      %p126 = scmp.eq.s32.totalorder %s23, 0
      %p127 = por %p125, %p126
      %p128 = scmp.ne.s32.totalorder %s120, %s122
      %p129 = scmp.eq.s32.totalorder %s28, 1
      %p130 = por %p128, %p129
      %p131 = scmp.ne.s32.totalorder %s122, %s123
      %p132 = scmp.eq.s32.totalorder %s28, 0
      %p133 = por %p131, %p132
      %p134 = scmp.ne.s32.totalorder %s122, %s123
      %p135 = scmp.eq.s32.totalorder %s29, 1
      %p136 = por %p134, %p135
      %p138 = scmp.ne.s32.totalorder %s123, %s137
      %p139 = scmp.eq.s32.totalorder %s29, 0
      %p140 = por %p138, %p139
      %s142 = sadd.s32 %s141, 1
      %p145 = scmp.eq.s32.totalorder %s23, 1
      %p146 = scmp.ne.s32.totalorder %s141, %s143
      %p147 = scmp.eq.s32.totalorder %s23, 0
      %p148 = por %p146, %p147
      %p149 = scmp.ne.s32.totalorder %s141, %s143
      %p150 = scmp.eq.s32.totalorder %s28, 1
      %p151 = por %p149, %p150
      %p152 = scmp.ne.s32.totalorder %s143, %s144
      %p153 = scmp.eq.s32.totalorder %s28, 0
      %p154 = por %p152, %p153
      %p155 = scmp.ne.s32.totalorder %s143, %s144
      %p156 = scmp.eq.s32.totalorder %s29, 1
      %p157 = por %p155, %p156
      %p159 = scmp.ne.s32.totalorder %s144, %s158
      %p160 = scmp.eq.s32.totalorder %s29, 0
      %p161 = por %p159, %p160
      %s163 = sadd.s32 %s162, 1
      %p166 = scmp.eq.s32.totalorder %s23, 1
      %p167 = scmp.ne.s32.totalorder %s162, %s164
      %p168 = scmp.eq.s32.totalorder %s23, 0
      %p169 = por %p167, %p168
      %p170 = scmp.ne.s32.totalorder %s162, %s164
      %p171 = scmp.eq.s32.totalorder %s28, 1
      %p172 = por %p170, %p171
      %p173 = scmp.ne.s32.totalorder %s164, %s165
      %p174 = scmp.eq.s32.totalorder %s28, 0
      %p175 = por %p173, %p174
      %p176 = scmp.ne.s32.totalorder %s164, %s165
      %p177 = scmp.eq.s32.totalorder %s29, 1
      %p178 = por %p176, %p177
      %p180 = scmp.ne.s32.totalorder %s165, %s179
      %p181 = scmp.eq.s32.totalorder %s29, 0
      %p182 = por %p180, %p181
      %s184 = sadd.s32 %s183, 1
      %p187 = scmp.eq.s32.totalorder %s23, 1
      %p188 = scmp.ne.s32.totalorder %s183, %s185
      %p189 = scmp.eq.s32.totalorder %s23, 0
      %p190 = por %p188, %p189
      %p191 = scmp.ne.s32.totalorder %s183, %s185
      %p192 = scmp.eq.s32.totalorder %s28, 1
      %p193 = por %p191, %p192
      %p194 = scmp.ne.s32.totalorder %s185, %s186
      %p195 = scmp.eq.s32.totalorder %s28, 0
      %p196 = por %p194, %p195
      %p197 = scmp.ne.s32.totalorder %s185, %s186
      %p198 = scmp.eq.s32.totalorder %s29, 1
      %p199 = por %p197, %p198
      %p201 = scmp.ne.s32.totalorder %s186, %s200
      %p202 = scmp.eq.s32.totalorder %s29, 0
      %p203 = por %p201, %p202
      %s205 = sadd.s32 %s204, 1
      %p208 = scmp.eq.s32.totalorder %s23, 1
      %p209 = scmp.ne.s32.totalorder %s204, %s206
      %p210 = scmp.eq.s32.totalorder %s23, 0
      %p211 = por %p209, %p210
      %p212 = scmp.ne.s32.totalorder %s204, %s206
      %p213 = scmp.eq.s32.totalorder %s28, 1
      %p214 = por %p212, %p213
      %p215 = scmp.ne.s32.totalorder %s206, %s207
      %p216 = scmp.eq.s32.totalorder %s28, 0
      %p217 = por %p215, %p216
      %p218 = scmp.ne.s32.totalorder %s206, %s207
      %p219 = scmp.eq.s32.totalorder %s29, 1
      %p220 = por %p218, %p219
      %p222 = scmp.ne.s32.totalorder %s207, %s221
      %p223 = scmp.eq.s32.totalorder %s29, 0
      %p224 = por %p222, %p223
      %s226 = sadd.s32 %s225, 1
      %p229 = scmp.eq.s32.totalorder %s23, 1
      %p230 = scmp.ne.s32.totalorder %s225, %s227
      %p231 = scmp.eq.s32.totalorder %s23, 0
      %p232 = por %p230, %p231
      %p233 = scmp.ne.s32.totalorder %s225, %s227
      %p234 = scmp.eq.s32.totalorder %s28, 1
      %p235 = por %p233, %p234
      %p236 = scmp.ne.s32.totalorder %s227, %s228
      %p237 = scmp.eq.s32.totalorder %s28, 0
      %p238 = por %p236, %p237
      %p239 = scmp.ne.s32.totalorder %s227, %s228
      %p240 = scmp.eq.s32.totalorder %s29, 1
      %p241 = por %p239, %p240
      %p243 = scmp.ne.s32.totalorder %s228, %s242
      %p244 = scmp.eq.s32.totalorder %s29, 0
      %p245 = por %p243, %p244
      %s246 = ssub.s32 %s23, %s30
      %p247 = scmp.eq.s32.totalorder %s246, 0
      %s249 = sadd.s32 %s248, 1
      %s250 = scalar_select %p247, %s248, %s249
      %p253 = pneg %p247
      %p254 = scmp.eq.s32.totalorder %s23, 1
      %p255 = por %p253, %p254
      %p256 = scmp.ne.s32.totalorder %s248, %s251
      %p257 = scmp.eq.s32.totalorder %s23, 0
      %p258 = por %p256, %p257
      %p259 = scmp.ne.s32.totalorder %s248, %s251
      %p260 = scmp.eq.s32.totalorder %s28, 1
      %p261 = por %p259, %p260
      %p262 = scmp.ne.s32.totalorder %s251, %s252
      %p263 = scmp.eq.s32.totalorder %s28, 0
      %p264 = por %p262, %p263
      %p265 = scmp.ne.s32.totalorder %s251, %s252
      %p266 = scmp.eq.s32.totalorder %s29, 1
      %p267 = por %p265, %p266
      %p269 = scmp.ne.s32.totalorder %s252, %s268
      %p270 = scmp.eq.s32.totalorder %s29, 0
      %p271 = por %p269, %p270
      %p272 = scmp.le.s32.totalorder 1, %s23
      %p273 = scmp.lt.s32.totalorder %s23, 3
      %p274 = pnand %p272, %p273
      %p275 = pneg %p274
      // Predicated region
      $region9: #{tpu_custom_call.1} parent=5 // pred_check
        _
      $region10: #{tpu_custom_call.1} parent=5 // pred_check_branch
        %277 = sbr.rel (%p274) target = $region12
      $region11: #{tpu_custom_call.1} parent=5 // pred_region
        %s278 = ssub.s32 %s23, 1
        // Predicated region
        $region13: #{tpu_custom_call.1} parent=11 // pred_check
          %p279 = pneg %p70
        $region14: #{tpu_custom_call.1} parent=11 // pred_check_branch
          %281 = sbr.rel (%p279) target = $region16
        $region15: #{tpu_custom_call.1} parent=11 // pred_region
          _
        $region16: #{tpu_custom_call.1} parent=11 // pred_fallthru
          _
        // Predicated region
        $region17: #{tpu_custom_call.1} parent=11 // pred_check
          %p282 = pneg %p91
        $region18: #{tpu_custom_call.1} parent=11 // pred_check_branch
          %284 = sbr.rel (%p282) target = $region20
        $region19: #{tpu_custom_call.1} parent=11 // pred_region
          _
        $region20: #{tpu_custom_call.1} parent=11 // pred_fallthru
          _
        // Predicated region
        $region21: #{tpu_custom_call.1} parent=11 // pred_check
          %p285 = pneg %p112
        $region22: #{tpu_custom_call.1} parent=11 // pred_check_branch
          %287 = sbr.rel (%p285) target = $region24
        $region23: #{tpu_custom_call.1} parent=11 // pred_region
          _
        $region24: #{tpu_custom_call.1} parent=11 // pred_fallthru
          _
        // Predicated region
        $region25: #{tpu_custom_call.1} parent=11 // pred_check
          %p288 = pneg %p133
        $region26: #{tpu_custom_call.1} parent=11 // pred_check_branch
          %290 = sbr.rel (%p288) target = $region28
        $region27: #{tpu_custom_call.1} parent=11 // pred_region
          %s292 = ssub.s32 3072, 3072
          %293 = vsyncadd [#allocation4], %s292
          %s294 = sshll.u32 [#allocation3], 4
          %s295 = int_to_ptr.vmem [resolvable:$true] %s294
          %300 = dma.hbm_to_vmem [thread:$0]  %s4, 3072, %s295, [#allocation4], 384, 384, 24
        $region28: #{tpu_custom_call.1} parent=11 // pred_fallthru
          _
        // Predicated region
        $region29: #{tpu_custom_call.1} parent=11 // pred_check
          %p301 = pneg %p154
        $region30: #{tpu_custom_call.1} parent=11 // pred_check_branch
          %303 = sbr.rel (%p301) target = $region32
        $region31: #{tpu_custom_call.1} parent=11 // pred_region
          _
        $region32: #{tpu_custom_call.1} parent=11 // pred_fallthru
          _
        // Predicated region
        $region33: #{tpu_custom_call.1} parent=11 // pred_check
          %p304 = pneg %p175
        $region34: #{tpu_custom_call.1} parent=11 // pred_check_branch
          %306 = sbr.rel (%p304) target = $region36
        $region35: #{tpu_custom_call.1} parent=11 // pred_region
          %s308 = ssub.s32 2560, 2560
          %309 = vsyncadd [#allocation7], %s308
          %s310 = sshll.u32 [#allocation6], 4
          %s311 = int_to_ptr.vmem [resolvable:$true] %s310
          %316 = dma.hbm_to_vmem [thread:$0]  %s6, 2560, %s311, [#allocation7], 640, 640, 40
        $region36: #{tpu_custom_call.1} parent=11 // pred_fallthru
          _
        // Predicated region
        $region37: #{tpu_custom_call.1} parent=11 // pred_check
          %p317 = pneg %p196
        $region38: #{tpu_custom_call.1} parent=11 // pred_check_branch
          %319 = sbr.rel (%p317) target = $region40
        $region39: #{tpu_custom_call.1} parent=11 // pred_region
          _
        $region40: #{tpu_custom_call.1} parent=11 // pred_fallthru
          _
        // Predicated region
        $region41: #{tpu_custom_call.1} parent=11 // pred_check
          %p320 = pneg %p217
        $region42: #{tpu_custom_call.1} parent=11 // pred_check_branch
          %322 = sbr.rel (%p320) target = $region44
        $region43: #{tpu_custom_call.1} parent=11 // pred_region
          _
        $region44: #{tpu_custom_call.1} parent=11 // pred_fallthru
          _
        // Predicated region
        $region45: #{tpu_custom_call.1} parent=11 // pred_check
          %p323 = pneg %p238
        $region46: #{tpu_custom_call.1} parent=11 // pred_check_branch
          %325 = sbr.rel (%p323) target = $region48
        $region47: #{tpu_custom_call.1} parent=11 // pred_region
          _
        $region48: #{tpu_custom_call.1} parent=11 // pred_fallthru
          _
      $region12: #{tpu_custom_call.1} parent=5 // pred_fallthru
        _
      %p326 = scmp.lt.s32.totalorder %s23, 2
      // Predicated region
      $region49: #{tpu_custom_call.1} parent=5 // pred_check
        %p327 = pneg %p326
      $region50: #{tpu_custom_call.1} parent=5 // pred_check_branch
        %329 = sbr.rel (%p327) target = $region52
      $region51: #{tpu_custom_call.1} parent=5 // pred_region
        // Predicated region
        $region53: #{tpu_custom_call.1} parent=51 // pred_check
          %p330 = pneg %p43
        $region54: #{tpu_custom_call.1} parent=51 // pred_check_branch
          %332 = sbr.rel (%p330) target = $region56
        $region55: #{tpu_custom_call.1} parent=51 // pred_region
          %p333 = scmp.lt.s32.totalorder %s23, 1
          %s334 = scalar_select %p333, %s23, 1
          %s335 = smul.addr %s334, 4
          %s336 = smul.addr %s335, 8
          %s337 = scalar_lea.vmem %s0, %s336
        $region56: #{tpu_custom_call.1} parent=51 // pred_fallthru
          _
      $region52: #{tpu_custom_call.1} parent=5 // pred_fallthru
        _
      %p338 = scmp.le.s32.totalorder 1, %s23
      %p339 = scmp.lt.s32.totalorder %s23, 3
      %p340 = pnand %p338, %p339
      %p341 = pneg %p340
      // Predicated region
      $region57: #{tpu_custom_call.1} parent=5 // pred_check
        _
      $region58: #{tpu_custom_call.1} parent=5 // pred_check_branch
        %343 = sbr.rel (%p340) target = $region60
      $region59: #{tpu_custom_call.1} parent=5 // pred_region
        %s344 = ssub.s32 %s23, 1
        // Predicated region
        $region61: #{tpu_custom_call.1} parent=59 // pred_check
          %p345 = pneg %p133
        $region62: #{tpu_custom_call.1} parent=59 // pred_check_branch
          %347 = sbr.rel (%p345) target = $region64
        $region63: #{tpu_custom_call.1} parent=59 // pred_region
          %348 = dma.done [#allocation4], 3072
        $region64: #{tpu_custom_call.1} parent=59 // pred_fallthru
          _
        // Predicated region
        $region65: #{tpu_custom_call.1} parent=59 // pred_check
          %p349 = pneg %p175
        $region66: #{tpu_custom_call.1} parent=59 // pred_check_branch
          %351 = sbr.rel (%p349) target = $region68
        $region67: #{tpu_custom_call.1} parent=59 // pred_region
          %352 = dma.done [#allocation7], 2560
        $region68: #{tpu_custom_call.1} parent=59 // pred_fallthru
          _
        %p353 = scmp.lt.s32.totalorder %s28, 1
        %s354 = scalar_select %p353, %s28, 1
        %s355 = smul.addr %s354, 4
        %s356 = smul.addr %s355, 8
        %s357 = scalar_lea.vmem %s0, %s356
        %p358 = pneg %p49
        %p359 = pneg %p46
        %p360 = pneg %p70
        %p361 = pneg %p67
        %p362 = pneg %p91
        %p363 = pneg %p88
        %p364 = pneg %p112
        %p365 = pneg %p109
        %p366 = pneg %p133
        %p367 = pneg %p130
        %p368 = pneg %p154
        %p369 = pneg %p151
        %p370 = pneg %p175
        %p371 = pneg %p172
        %p372 = pneg %p196
        %p373 = pneg %p193
        %p374 = pneg %p217
        %p375 = pneg %p214
        %p376 = pneg %p238
        %p377 = pneg %p235
        %p378 = pneg %p264
        %p379 = pneg %p261
        %s380 = sand.u32 %s251, 1
        %s381 = scalar_lea.sflag [#allocation5], %s380
        %s382 = sand.u32 %s251, 1
        %s383 = smul.addr %s382, 4
        %s384 = scalar_lea.vmem [#allocation8], %s383
        %p385 = scmp.lt.s32.totalorder %s28, 1
        %s386 = scalar_select %p385, %s28, 1
        %s387 = smul.addr %s386, 4
        %s388 = smul.addr %s387, 8
        %s389 = scalar_lea.vmem %s0, %s388
        %v390 = vld [vmem:[%s389] sm:$0xff]
        %v391 = vld [vmem:[%s389 + $0x8] sm:$0xff]
        %v392 = vld [vmem:[%s389 + $0x10] sm:$0xff]
        %v393 = vld [vmem:[%s389 + $0x18] sm:$0xff]
        %394 = vrot.lane.b32.xlu0 %v390, 17
        %v395 = vpop.permute.xlu0 %394
        %396 = vrot.lane.b32.xlu0 %v391, 17
        %v397 = vpop.permute.xlu0 %396
        %398 = vrot.lane.b32.xlu0 %v392, 17
        %v399 = vpop.permute.xlu0 %398
        %400 = vrot.lane.b32.xlu0 %v393, 17
        %v401 = vpop.permute.xlu0 %400
        %v402 = vlaneseq
        %v403 = vand.u32 %v402, 127
        %vm404 = vcmp.lt.s32.totalorder %v403, 17
        %v405 = vsel %vm404, %v399, %v401
        %v406 = vsel %vm404, %v397, %v399
        %v407 = vsel %vm404, %v395, %v397
        %v408 = vsel %vm404, %v401, %v395
        %v409 = vld [vmem:[%s1] ss:$8 sm:$0xf]
        %v411 = vlaneseq
        %v412 = vshrl.u32 %v411, 7
        %v413 = vsub.s32 0, %v412
        %v414 = vrot.slane %v409, %v413
        %v415 = vlaneseq
        %v416 = vshrl.u32 %v415, 7
        %v417 = vsub.s32 1, %v416
        %v418 = vrot.slane %v409, %v417
        %v419 = vlaneseq
        %v420 = vshrl.u32 %v419, 7
        %v421 = vsub.s32 2, %v420
        %v422 = vrot.slane %v409, %v421
        %v423 = vlaneseq
        %v424 = vshrl.u32 %v423, 7
        %v425 = vsub.s32 3, %v424
        %v426 = vrot.slane %v409, %v425
        %v431 = vmul.f32 %v408, %v414
        %v432 = vmul.f32 %v407, %v418
        %v433 = vmul.f32 %v406, %v422
        %v434 = vmul.f32 %v405, %v426
        %435 = vrot.lane.b32.xlu0 %v390, 16
        %v436 = vpop.permute.xlu0 %435
        %437 = vrot.lane.b32.xlu0 %v391, 16
        %v438 = vpop.permute.xlu0 %437
        %439 = vrot.lane.b32.xlu0 %v392, 16
        %v440 = vpop.permute.xlu0 %439
        %441 = vrot.lane.b32.xlu0 %v393, 16
        %v442 = vpop.permute.xlu0 %441
        %vm443 = vcmp.lt.s32.totalorder %v403, 16
        %v444 = vsel %vm443, %v440, %v442
        %v445 = vsel %vm443, %v438, %v440
        %v446 = vsel %vm443, %v436, %v438
        %v447 = vsel %vm443, %v442, %v436
        %s448 = scalar_lea.vmem %s1, 1
        %v449 = vld [vmem:[%s448] ss:$8 sm:$0xf]
        %v451 = vlaneseq
        %v452 = vshrl.u32 %v451, 7
        %v453 = vsub.s32 0, %v452
        %v454 = vrot.slane %v449, %v453
        %v455 = vlaneseq
        %v456 = vshrl.u32 %v455, 7
        %v457 = vsub.s32 1, %v456
        %v458 = vrot.slane %v449, %v457
        %v459 = vlaneseq
        %v460 = vshrl.u32 %v459, 7
        %v461 = vsub.s32 2, %v460
        %v462 = vrot.slane %v449, %v461
        %v463 = vlaneseq
        %v464 = vshrl.u32 %v463, 7
        %v465 = vsub.s32 3, %v464
        %v466 = vrot.slane %v449, %v465
        %v471 = vmul.f32 %v447, %v454
        %v472 = vmul.f32 %v446, %v458
        %v473 = vmul.f32 %v445, %v462
        %v474 = vmul.f32 %v444, %v466
        %475 = vrot.lane.b32.xlu0 %v390, 15
        %v476 = vpop.permute.xlu0 %475
        %477 = vrot.lane.b32.xlu0 %v391, 15
        %v478 = vpop.permute.xlu0 %477
        %479 = vrot.lane.b32.xlu0 %v392, 15
        %v480 = vpop.permute.xlu0 %479
        %481 = vrot.lane.b32.xlu0 %v393, 15
        %v482 = vpop.permute.xlu0 %481
        %vm483 = vcmp.lt.s32.totalorder %v403, 15
        %v484 = vsel %vm483, %v480, %v482
        %v485 = vsel %vm483, %v478, %v480
        %v486 = vsel %vm483, %v476, %v478
        %v487 = vsel %vm483, %v482, %v476
        %s488 = scalar_lea.vmem %s1, 2
        %v489 = vld [vmem:[%s488] ss:$8 sm:$0xf]
        %v491 = vlaneseq
        %v492 = vshrl.u32 %v491, 7
        %v493 = vsub.s32 0, %v492
        %v494 = vrot.slane %v489, %v493
        %v495 = vlaneseq
        %v496 = vshrl.u32 %v495, 7
        %v497 = vsub.s32 1, %v496
        %v498 = vrot.slane %v489, %v497
        %v499 = vlaneseq
        %v500 = vshrl.u32 %v499, 7
        %v501 = vsub.s32 2, %v500
        %v502 = vrot.slane %v489, %v501
        %v503 = vlaneseq
        %v504 = vshrl.u32 %v503, 7
        %v505 = vsub.s32 3, %v504
        %v506 = vrot.slane %v489, %v505
        %v511 = vmul.f32 %v487, %v494
        %v512 = vmul.f32 %v486, %v498
        %v513 = vmul.f32 %v485, %v502
        %v514 = vmul.f32 %v484, %v506
        %515 = vrot.lane.b32.xlu0 %v390, 1
        %v516 = vpop.permute.xlu0 %515
        %517 = vrot.lane.b32.xlu0 %v391, 1
        %v518 = vpop.permute.xlu0 %517
        %519 = vrot.lane.b32.xlu0 %v392, 1
        %v520 = vpop.permute.xlu0 %519
        %521 = vrot.lane.b32.xlu0 %v393, 1
        %v522 = vpop.permute.xlu0 %521
        %vm523 = vcmp.lt.s32.totalorder %v403, 1
        %v524 = vsel %vm523, %v520, %v522
        %v525 = vsel %vm523, %v518, %v520
        %v526 = vsel %vm523, %v516, %v518
        %v527 = vsel %vm523, %v522, %v516
        %s528 = scalar_lea.vmem %s1, 3
        %v529 = vld [vmem:[%s528] ss:$8 sm:$0xf]
        %v531 = vlaneseq
        %v532 = vshrl.u32 %v531, 7
        %v533 = vsub.s32 0, %v532
        %v534 = vrot.slane %v529, %v533
        %v535 = vlaneseq
        %v536 = vshrl.u32 %v535, 7
        %v537 = vsub.s32 1, %v536
        %v538 = vrot.slane %v529, %v537
        %v539 = vlaneseq
        %v540 = vshrl.u32 %v539, 7
        %v541 = vsub.s32 2, %v540
        %v542 = vrot.slane %v529, %v541
        %v543 = vlaneseq
        %v544 = vshrl.u32 %v543, 7
        %v545 = vsub.s32 3, %v544
        %v546 = vrot.slane %v529, %v545
        %v551 = vmul.f32 %v527, %v534
        %v552 = vmul.f32 %v526, %v538
        %v553 = vmul.f32 %v525, %v542
        %v554 = vmul.f32 %v524, %v546
        %555 = vrot.lane.b32.xlu0 %v390, 127
        %v556 = vpop.permute.xlu0 %555
        %557 = vrot.lane.b32.xlu0 %v391, 127
        %v558 = vpop.permute.xlu0 %557
        %559 = vrot.lane.b32.xlu0 %v392, 127
        %v560 = vpop.permute.xlu0 %559
        %561 = vrot.lane.b32.xlu0 %v393, 127
        %v562 = vpop.permute.xlu0 %561
        %vm563 = vcmp.lt.s32.totalorder %v403, 127
        %v564 = vsel %vm563, %v560, %v562
        %v565 = vsel %vm563, %v558, %v560
        %v566 = vsel %vm563, %v556, %v558
        %v567 = vsel %vm563, %v562, %v556
        %s568 = scalar_lea.vmem %s1, 4
        %v569 = vld [vmem:[%s568] ss:$8 sm:$0xf]
        %v571 = vlaneseq
        %v572 = vshrl.u32 %v571, 7
        %v573 = vsub.s32 0, %v572
        %v574 = vrot.slane %v569, %v573
        %v575 = vlaneseq
        %v576 = vshrl.u32 %v575, 7
        %v577 = vsub.s32 1, %v576
        %v578 = vrot.slane %v569, %v577
        %v579 = vlaneseq
        %v580 = vshrl.u32 %v579, 7
        %v581 = vsub.s32 2, %v580
        %v582 = vrot.slane %v569, %v581
        %v583 = vlaneseq
        %v584 = vshrl.u32 %v583, 7
        %v585 = vsub.s32 3, %v584
        %v586 = vrot.slane %v569, %v585
        %v591 = vmul.f32 %v566, %v574
        %v592 = vmul.f32 %v565, %v578
        %v593 = vmul.f32 %v564, %v582
        %v594 = vmul.f32 %v567, %v586
        %595 = vrot.lane.b32.xlu0 %v390, 113
        %v596 = vpop.permute.xlu0 %595
        %597 = vrot.lane.b32.xlu0 %v391, 113
        %v598 = vpop.permute.xlu0 %597
        %599 = vrot.lane.b32.xlu0 %v392, 113
        %v600 = vpop.permute.xlu0 %599
        %601 = vrot.lane.b32.xlu0 %v393, 113
        %v602 = vpop.permute.xlu0 %601
        %vm603 = vcmp.lt.s32.totalorder %v403, 113
        %v604 = vsel %vm603, %v600, %v602
        %v605 = vsel %vm603, %v598, %v600
        %v606 = vsel %vm603, %v596, %v598
        %v607 = vsel %vm603, %v602, %v596
        %s608 = scalar_lea.vmem %s1, 5
        %v609 = vld [vmem:[%s608] ss:$8 sm:$0xf]
        %v611 = vlaneseq
        %v612 = vshrl.u32 %v611, 7
        %v613 = vsub.s32 0, %v612
        %v614 = vrot.slane %v609, %v613
        %v615 = vlaneseq
        %v616 = vshrl.u32 %v615, 7
        %v617 = vsub.s32 1, %v616
        %v618 = vrot.slane %v609, %v617
        %v619 = vlaneseq
        %v620 = vshrl.u32 %v619, 7
        %v621 = vsub.s32 2, %v620
        %v622 = vrot.slane %v609, %v621
        %v623 = vlaneseq
        %v624 = vshrl.u32 %v623, 7
        %v625 = vsub.s32 3, %v624
        %v626 = vrot.slane %v609, %v625
        %v631 = vmul.f32 %v606, %v614
        %v632 = vmul.f32 %v605, %v618
        %v633 = vmul.f32 %v604, %v622
        %v634 = vmul.f32 %v607, %v626
        %635 = vrot.lane.b32.xlu0 %v390, 112
        %v636 = vpop.permute.xlu0 %635
        %637 = vrot.lane.b32.xlu0 %v391, 112
        %v638 = vpop.permute.xlu0 %637
        %639 = vrot.lane.b32.xlu0 %v392, 112
        %v640 = vpop.permute.xlu0 %639
        %641 = vrot.lane.b32.xlu0 %v393, 112
        %v642 = vpop.permute.xlu0 %641
        %vm643 = vcmp.lt.s32.totalorder %v403, 112
        %v644 = vsel %vm643, %v640, %v642
        %v645 = vsel %vm643, %v638, %v640
        %v646 = vsel %vm643, %v636, %v638
        %v647 = vsel %vm643, %v642, %v636
        %s648 = scalar_lea.vmem %s1, 6
        %v649 = vld [vmem:[%s648] ss:$8 sm:$0xf]
        %v651 = vlaneseq
        %v652 = vshrl.u32 %v651, 7
        %v653 = vsub.s32 0, %v652
        %v654 = vrot.slane %v649, %v653
        %v655 = vlaneseq
        %v656 = vshrl.u32 %v655, 7
        %v657 = vsub.s32 1, %v656
        %v658 = vrot.slane %v649, %v657
        %v659 = vlaneseq
        %v660 = vshrl.u32 %v659, 7
        %v661 = vsub.s32 2, %v660
        %v662 = vrot.slane %v649, %v661
        %v663 = vlaneseq
        %v664 = vshrl.u32 %v663, 7
        %v665 = vsub.s32 3, %v664
        %v666 = vrot.slane %v649, %v665
        %v671 = vmul.f32 %v646, %v654
        %v672 = vmul.f32 %v645, %v658
        %v673 = vmul.f32 %v644, %v662
        %v674 = vmul.f32 %v647, %v666
        %675 = vrot.lane.b32.xlu0 %v390, 111
        %v676 = vpop.permute.xlu0 %675
        %677 = vrot.lane.b32.xlu0 %v391, 111
        %v678 = vpop.permute.xlu0 %677
        %679 = vrot.lane.b32.xlu0 %v392, 111
        %v680 = vpop.permute.xlu0 %679
        %681 = vrot.lane.b32.xlu0 %v393, 111
        %v682 = vpop.permute.xlu0 %681
        %vm683 = vcmp.lt.s32.totalorder %v403, 111
        %v684 = vsel %vm683, %v680, %v682
        %v685 = vsel %vm683, %v678, %v680
        %v686 = vsel %vm683, %v676, %v678
        %v687 = vsel %vm683, %v682, %v676
        %s688 = scalar_lea.vmem %s1, 7
        %v689 = vld [vmem:[%s688] ss:$8 sm:$0xf]
        %v691 = vlaneseq
        %v692 = vshrl.u32 %v691, 7
        %v693 = vsub.s32 0, %v692
        %v694 = vrot.slane %v689, %v693
        %v695 = vlaneseq
        %v696 = vshrl.u32 %v695, 7
        %v697 = vsub.s32 1, %v696
        %v698 = vrot.slane %v689, %v697
        %v699 = vlaneseq
        %v700 = vshrl.u32 %v699, 7
        %v701 = vsub.s32 2, %v700
        %v702 = vrot.slane %v689, %v701
        %v703 = vlaneseq
        %v704 = vshrl.u32 %v703, 7
        %v705 = vsub.s32 3, %v704
        %v706 = vrot.slane %v689, %v705
        %v711 = vmul.f32 %v686, %v694
        %v712 = vmul.f32 %v685, %v698
        %v713 = vmul.f32 %v684, %v702
        %v714 = vmul.f32 %v687, %v706
        %v715 = vld [vmem:[%s2] sm:$0xff]
        %v716 = vld [vmem:[%s2 + $0x8] sm:$0xff]
        %v717 = vld [vmem:[%s2 + $0x10] sm:$0xff]
        %v718 = vld [vmem:[%s2 + $0x18] sm:$0xff]
        %v719 = vld [vmem:[%s3] sm:$0xff]
        %v720 = vld [vmem:[%s3 + $0x8] sm:$0xff]
        %v721 = vld [vmem:[%s3 + $0x10] sm:$0xff]
        %v722 = vld [vmem:[%s3 + $0x18] sm:$0xff]
        %724 = vset.pattern.permute.xlu0 0
        %725 = vperm.xlu0 %724, %v719
        %v726 = vpop.permute.xlu0 %725
        %729 = vset.pattern.permute.xlu0 0
        %730 = vperm.xlu0 %729, %v720
        %v731 = vpop.permute.xlu0 %730
        %734 = vset.pattern.permute.xlu0 0
        %735 = vperm.xlu0 %734, %v721
        %v736 = vpop.permute.xlu0 %735
        %739 = vset.pattern.permute.xlu0 0
        %740 = vperm.xlu0 %739, %v722
        %v741 = vpop.permute.xlu0 %740
        %vm743 = vcmask 588800
        %v745 = vsel %vm743, %v715, 0
        %v748 = vsel %vm743, %v716, 0
        %v751 = vsel %vm743, %v717, 0
        %v754 = vsel %vm743, %v718, 0
        %756 = vmatprep.subr.mxu0 %v432
        %757 = vmatpush1.msra.mxu0 %v431
        %758 = vmatprep.subr.mxu0 %v472
        %759 = vmatpush1.msra.mxu0 %v471
        %760 = vmatprep.subr.mxu0 %v512
        %761 = vmatpush1.msra.mxu0 %v511
        %762 = vmatprep.subr.mxu0 %v552
        %763 = vmatpush1.msra.mxu0 %v551
        %764 = vmatprep.subr.mxu0 %v391
        %765 = vmatpush1.msra.mxu0 %v390
        %766 = vmatprep.subr.mxu0 %v592
        %767 = vmatpush1.msra.mxu0 %v591
        %768 = vmatprep.subr.mxu0 %v632
        %769 = vmatpush1.msra.mxu0 %v631
        %770 = vmatprep.subr.mxu0 %v672
        %771 = vmatpush1.msra.mxu0 %v671
        %772 = vmatprep.subr.mxu0 %v712
        %773 = vmatpush1.msra.mxu0 %v711
        %774 = vmatprep.subr.mxu0 0.0
        %775 = vmatpush1.msra.mxu0 0.0
        %776 = vmatprep.subr.mxu0 0.0
        %777 = vmatpush1.msra.mxu0 0.0
        %778 = vmatprep.subr.mxu0 0.0
        %779 = vmatpush1.msra.mxu0 0.0
        %780 = vmatprep.subr.mxu0 0.0
        %781 = vmatpush1.msra.mxu0 0.0
        %782 = vmatprep.subr.mxu0 0.0
        %783 = vmatpush1.msra.mxu0 0.0
        %784 = vmatprep.subr.mxu0 0.0
        %785 = vmatpush1.msra.mxu0 0.0
        %786 = vmatprep.subr.mxu0 0.0
        %787 = vmatpush1.msra.mxu0 0.0
        %788 = vmatprep.subr.mxu0 0.0
        %789 = vmatpush1.msra.mxu0 0.0
        %790 = vmatprep.subr.mxu0 0.0
        %791 = vmatpush1.msra.mxu0 0.0
        %792 = vmatprep.subr.mxu0 0.0
        %793 = vmatpush1.msra.mxu0 0.0
        %794 = vmatprep.subr.mxu0 0.0
        %795 = vmatpush1.msra.mxu0 0.0
        %796 = vmatprep.subr.mxu0 0.0
        %797 = vmatpush1.msra.mxu0 0.0
        %798 = vmatprep.subr.mxu0 0.0
        %799 = vmatpush1.msra.mxu0 0.0
        %800 = vmatprep.subr.mxu0 0.0
        %801 = vmatpush1.msra.mxu0 0.0
        %802 = vmatprep.subr.mxu0 0.0
        %803 = vmatpush1.msra.mxu0 0.0
        %804 = vmatprep.subr.mxu0 0.0
        %805 = vmatpush1.msra.mxu0 0.0
        %806 = vmatprep.subr.mxu0 0.0
        %807 = vmatpush1.msra.mxu0 0.0
        %808 = vmatprep.subr.mxu0 0.0
        %809 = vmatpush1.msra.mxu0 0.0
        %810 = vmatprep.subr.mxu0 0.0
        %811 = vmatpush1.msra.mxu0 0.0
        %812 = vmatprep.subr.mxu0 0.0
        %813 = vmatpush1.msra.mxu0 0.0
        %814 = vmatprep.subr.mxu0 0.0
        %815 = vmatpush1.msra.mxu0 0.0
        %816 = vmatprep.subr.mxu0 0.0
        %817 = vmatpush1.msra.mxu0 0.0
        %818 = vmatprep.subr.mxu0 0.0
        %819 = vmatpush1.msra.mxu0 0.0
        %820 = vmatprep.mubr.f32.mxu0 0.0
        %821 = vmatmul.mubr.f32.gmra.mrb[0].mxu0 %v745
        %v822 = vpop.f32.mrb[0].mxu0
        %v823 = vadd.f32 %v726, %v822
        %v824 = vpop.f32.mrb[0].mxu0
        %v825 = vadd.f32 %v726, %v824
        %826 = vmatprep.mubr.f32.mxu0 0.0
        %827 = vmatmul.mubr.f32.gmra.mrb[0].mxu0 %v748
        %v828 = vpop.f32.mrb[0].mxu0
        %v829 = vadd.f32 %v731, %v828
        %v830 = vpop.f32.mrb[0].mxu0
        %v831 = vadd.f32 %v731, %v830
        %832 = vmatprep.mubr.f32.mxu0 0.0
        %833 = vmatmul.mubr.f32.gmra.mrb[0].mxu0 %v751
        %v834 = vpop.f32.mrb[0].mxu0
        %v835 = vadd.f32 %v736, %v834
        %v836 = vpop.f32.mrb[0].mxu0
        %v837 = vadd.f32 %v736, %v836
        %838 = vmatprep.mubr.f32.mxu0 0.0
        %839 = vmatmul.mubr.f32.gmra.mrb[0].mxu0 %v754
        %v840 = vpop.f32.mrb[0].mxu0
        %v841 = vadd.f32 %v741, %v840
        %v842 = vpop.f32.mrb[0].mxu0
        %v843 = vadd.f32 %v741, %v842
        %844 = vdwg.mxu0
        %845 = vmatprep.subr.mxu0 %v434
        %846 = vmatpush1.msra.mxu0 %v433
        %847 = vmatprep.subr.mxu0 %v474
        %848 = vmatpush1.msra.mxu0 %v473
        %849 = vmatprep.subr.mxu0 %v514
        %850 = vmatpush1.msra.mxu0 %v513
        %851 = vmatprep.subr.mxu0 %v554
        %852 = vmatpush1.msra.mxu0 %v553
        %853 = vmatprep.subr.mxu0 %v393
        %854 = vmatpush1.msra.mxu0 %v392
        %855 = vmatprep.subr.mxu0 %v594
        %856 = vmatpush1.msra.mxu0 %v593
        %857 = vmatprep.subr.mxu0 %v634
        %858 = vmatpush1.msra.mxu0 %v633
        %859 = vmatprep.subr.mxu0 %v674
        %860 = vmatpush1.msra.mxu0 %v673
        %861 = vmatprep.subr.mxu0 %v714
        %862 = vmatpush1.msra.mxu0 %v713
        %863 = vmatprep.subr.mxu0 0.0
        %864 = vmatpush1.msra.mxu0 0.0
        %865 = vmatprep.subr.mxu0 0.0
        %866 = vmatpush1.msra.mxu0 0.0
        %867 = vmatprep.subr.mxu0 0.0
        %868 = vmatpush1.msra.mxu0 0.0
        %869 = vmatprep.subr.mxu0 0.0
        %870 = vmatpush1.msra.mxu0 0.0
        %871 = vmatprep.subr.mxu0 0.0
        %872 = vmatpush1.msra.mxu0 0.0
        %873 = vmatprep.subr.mxu0 0.0
        %874 = vmatpush1.msra.mxu0 0.0
        %875 = vmatprep.subr.mxu0 0.0
        %876 = vmatpush1.msra.mxu0 0.0
        %877 = vmatprep.subr.mxu0 0.0
        %878 = vmatpush1.msra.mxu0 0.0
        %879 = vmatprep.subr.mxu0 0.0
        %880 = vmatpush1.msra.mxu0 0.0
        %881 = vmatprep.subr.mxu0 0.0
        %882 = vmatpush1.msra.mxu0 0.0
        %883 = vmatprep.subr.mxu0 0.0
        %884 = vmatpush1.msra.mxu0 0.0
        %885 = vmatprep.subr.mxu0 0.0
        %886 = vmatpush1.msra.mxu0 0.0
        %887 = vmatprep.subr.mxu0 0.0
        %888 = vmatpush1.msra.mxu0 0.0
        %889 = vmatprep.subr.mxu0 0.0
        %890 = vmatpush1.msra.mxu0 0.0
        %891 = vmatprep.subr.mxu0 0.0
        %892 = vmatpush1.msra.mxu0 0.0
        %893 = vmatprep.subr.mxu0 0.0
        %894 = vmatpush1.msra.mxu0 0.0
        %895 = vmatprep.subr.mxu0 0.0
        %896 = vmatpush1.msra.mxu0 0.0
        %897 = vmatprep.subr.mxu0 0.0
        %898 = vmatpush1.msra.mxu0 0.0
        %899 = vmatprep.subr.mxu0 0.0
        %900 = vmatpush1.msra.mxu0 0.0
        %901 = vmatprep.subr.mxu0 0.0
        %902 = vmatpush1.msra.mxu0 0.0
        %903 = vmatprep.subr.mxu0 0.0
        %904 = vmatpush1.msra.mxu0 0.0
        %905 = vmatprep.subr.mxu0 0.0
        %906 = vmatpush1.msra.mxu0 0.0
        %907 = vmatprep.subr.mxu0 0.0
        %908 = vmatpush1.msra.mxu0 0.0
        %909 = vmatprep.mubr.f32.mxu0 0.0
        %910 = vmatmul.mubr.f32.gmra.mrb[0].mxu0 %v745
        %v911 = vpop.f32.mrb[0].mxu0
        %v912 = vadd.f32 %v726, %v911
        %v913 = vpop.f32.mrb[0].mxu0
        %v914 = vadd.f32 %v726, %v913
        %915 = vmatprep.mubr.f32.mxu0 0.0
        %916 = vmatmul.mubr.f32.gmra.mrb[0].mxu0 %v748
        %v917 = vpop.f32.mrb[0].mxu0
        %v918 = vadd.f32 %v731, %v917
        %v919 = vpop.f32.mrb[0].mxu0
        %v920 = vadd.f32 %v731, %v919
        %921 = vmatprep.mubr.f32.mxu0 0.0
        %922 = vmatmul.mubr.f32.gmra.mrb[0].mxu0 %v751
        %v923 = vpop.f32.mrb[0].mxu0
        %v924 = vadd.f32 %v736, %v923
        %v925 = vpop.f32.mrb[0].mxu0
        %v926 = vadd.f32 %v736, %v925
        %927 = vmatprep.mubr.f32.mxu0 0.0
        %928 = vmatmul.mubr.f32.gmra.mrb[0].mxu0 %v754
        %v929 = vpop.f32.mrb[0].mxu0
        %v930 = vadd.f32 %v741, %v929
        %v931 = vpop.f32.mrb[0].mxu0
        %v932 = vadd.f32 %v741, %v931
        %933 = vdwg.mxu0
        %v934 = vmax.f32 %v823, 0.0
        %v935 = vmax.f32 %v825, 0.0
        %v936 = vmax.f32 %v912, 0.0
        %v937 = vmax.f32 %v914, 0.0
        %v938 = vmax.f32 %v829, 0.0
        %v939 = vmax.f32 %v831, 0.0
        %v940 = vmax.f32 %v918, 0.0
        %v941 = vmax.f32 %v920, 0.0
        %v942 = vmax.f32 %v835, 0.0
        %v943 = vmax.f32 %v837, 0.0
        %v944 = vmax.f32 %v924, 0.0
        %v945 = vmax.f32 %v926, 0.0
        %v946 = vmax.f32 %v841, 0.0
        %v947 = vmax.f32 %v843, 0.0
        %v948 = vmax.f32 %v930, 0.0
        %v949 = vmax.f32 %v932, 0.0
        %950 = vrot.lane.b32.xlu0 %v934, 17
        %v951 = vpop.permute.xlu0 %950
        %952 = vrot.lane.b32.xlu0 %v938, 17
        %v953 = vpop.permute.xlu0 %952
        %954 = vrot.lane.b32.xlu0 %v942, 17
        %v955 = vpop.permute.xlu0 %954
        %956 = vrot.lane.b32.xlu0 %v946, 17
        %v957 = vpop.permute.xlu0 %956
        %958 = vrot.lane.b32.xlu0 %v935, 17
        %v959 = vpop.permute.xlu0 %958
        %960 = vrot.lane.b32.xlu0 %v939, 17
        %v961 = vpop.permute.xlu0 %960
        %962 = vrot.lane.b32.xlu0 %v943, 17
        %v963 = vpop.permute.xlu0 %962
        %964 = vrot.lane.b32.xlu0 %v947, 17
        %v965 = vpop.permute.xlu0 %964
        %966 = vrot.lane.b32.xlu0 %v936, 17
        %v967 = vpop.permute.xlu0 %966
        %968 = vrot.lane.b32.xlu0 %v940, 17
        %v969 = vpop.permute.xlu0 %968
        %970 = vrot.lane.b32.xlu0 %v944, 17
        %v971 = vpop.permute.xlu0 %970
        %972 = vrot.lane.b32.xlu0 %v948, 17
        %v973 = vpop.permute.xlu0 %972
        %974 = vrot.lane.b32.xlu0 %v937, 17
        %v975 = vpop.permute.xlu0 %974
        %976 = vrot.lane.b32.xlu0 %v941, 17
        %v977 = vpop.permute.xlu0 %976
        %978 = vrot.lane.b32.xlu0 %v945, 17
        %v979 = vpop.permute.xlu0 %978
        %980 = vrot.lane.b32.xlu0 %v949, 17
        %v981 = vpop.permute.xlu0 %980
        %v982 = vsel %vm404, %v967, %v975
        %v983 = vsel %vm404, %v969, %v977
        %v984 = vsel %vm404, %v971, %v979
        %v985 = vsel %vm404, %v973, %v981
        %v986 = vsel %vm404, %v959, %v967
        %v987 = vsel %vm404, %v961, %v969
        %v988 = vsel %vm404, %v963, %v971
        %v989 = vsel %vm404, %v965, %v973
        %v990 = vsel %vm404, %v951, %v959
        %v991 = vsel %vm404, %v953, %v961
        %v992 = vsel %vm404, %v955, %v963
        %v993 = vsel %vm404, %v957, %v965
        %v994 = vsel %vm404, %v975, %v951
        %v995 = vsel %vm404, %v977, %v953
        %v996 = vsel %vm404, %v979, %v955
        %v997 = vsel %vm404, %v981, %v957
        %v998 = vmul.f32 %v994, %v414
        %v999 = vmul.f32 %v990, %v418
        %v1000 = vmul.f32 %v986, %v422
        %v1001 = vmul.f32 %v982, %v426
        %v1002 = vmul.f32 %v995, %v414
        %v1003 = vmul.f32 %v991, %v418
        %v1004 = vmul.f32 %v987, %v422
        %v1005 = vmul.f32 %v983, %v426
        %v1006 = vmul.f32 %v996, %v414
        %v1007 = vmul.f32 %v992, %v418
        %v1008 = vmul.f32 %v988, %v422
        %v1009 = vmul.f32 %v984, %v426
        %v1010 = vmul.f32 %v997, %v414
        %v1011 = vmul.f32 %v993, %v418
        %v1012 = vmul.f32 %v989, %v422
        %v1013 = vmul.f32 %v985, %v426
        %1014 = vrot.lane.b32.xlu0 %v934, 16
        %v1015 = vpop.permute.xlu0 %1014
        %1016 = vrot.lane.b32.xlu0 %v938, 16
        %v1017 = vpop.permute.xlu0 %1016
        %1018 = vrot.lane.b32.xlu0 %v942, 16
        %v1019 = vpop.permute.xlu0 %1018
        %1020 = vrot.lane.b32.xlu0 %v946, 16
        %v1021 = vpop.permute.xlu0 %1020
        %1022 = vrot.lane.b32.xlu0 %v935, 16
        %v1023 = vpop.permute.xlu0 %1022
        %1024 = vrot.lane.b32.xlu0 %v939, 16
        %v1025 = vpop.permute.xlu0 %1024
        %1026 = vrot.lane.b32.xlu0 %v943, 16
        %v1027 = vpop.permute.xlu0 %1026
        %1028 = vrot.lane.b32.xlu0 %v947, 16
        %v1029 = vpop.permute.xlu0 %1028
        %1030 = vrot.lane.b32.xlu0 %v936, 16
        %v1031 = vpop.permute.xlu0 %1030
        %1032 = vrot.lane.b32.xlu0 %v940, 16
        %v1033 = vpop.permute.xlu0 %1032
        %1034 = vrot.lane.b32.xlu0 %v944, 16
        %v1035 = vpop.permute.xlu0 %1034
        %1036 = vrot.lane.b32.xlu0 %v948, 16
        %v1037 = vpop.permute.xlu0 %1036
        %1038 = vrot.lane.b32.xlu0 %v937, 16
        %v1039 = vpop.permute.xlu0 %1038
        %1040 = vrot.lane.b32.xlu0 %v941, 16
        %v1041 = vpop.permute.xlu0 %1040
        %1042 = vrot.lane.b32.xlu0 %v945, 16
        %v1043 = vpop.permute.xlu0 %1042
        %1044 = vrot.lane.b32.xlu0 %v949, 16
        %v1045 = vpop.permute.xlu0 %1044
        %v1046 = vsel %vm443, %v1031, %v1039
        %v1047 = vsel %vm443, %v1033, %v1041
        %v1048 = vsel %vm443, %v1035, %v1043
        %v1049 = vsel %vm443, %v1037, %v1045
        %v1050 = vsel %vm443, %v1023, %v1031
        %v1051 = vsel %vm443, %v1025, %v1033
        %v1052 = vsel %vm443, %v1027, %v1035
        %v1053 = vsel %vm443, %v1029, %v1037
        %v1054 = vsel %vm443, %v1015, %v1023
        %v1055 = vsel %vm443, %v1017, %v1025
        %v1056 = vsel %vm443, %v1019, %v1027
        %v1057 = vsel %vm443, %v1021, %v1029
        %v1058 = vsel %vm443, %v1039, %v1015
        %v1059 = vsel %vm443, %v1041, %v1017
        %v1060 = vsel %vm443, %v1043, %v1019
        %v1061 = vsel %vm443, %v1045, %v1021
        %v1062 = vmul.f32 %v1058, %v454
        %v1063 = vmul.f32 %v1054, %v458
        %v1064 = vmul.f32 %v1050, %v462
        %v1065 = vmul.f32 %v1046, %v466
        %v1066 = vmul.f32 %v1059, %v454
        %v1067 = vmul.f32 %v1055, %v458
        %v1068 = vmul.f32 %v1051, %v462
        %v1069 = vmul.f32 %v1047, %v466
        %v1070 = vmul.f32 %v1060, %v454
        %v1071 = vmul.f32 %v1056, %v458
        %v1072 = vmul.f32 %v1052, %v462
        %v1073 = vmul.f32 %v1048, %v466
        %v1074 = vmul.f32 %v1061, %v454
        %v1075 = vmul.f32 %v1057, %v458
        %v1076 = vmul.f32 %v1053, %v462
        %v1077 = vmul.f32 %v1049, %v466
        %1078 = vrot.lane.b32.xlu0 %v934, 15
        %v1079 = vpop.permute.xlu0 %1078
        %1080 = vrot.lane.b32.xlu0 %v938, 15
        %v1081 = vpop.permute.xlu0 %1080
        %1082 = vrot.lane.b32.xlu0 %v942, 15
        %v1083 = vpop.permute.xlu0 %1082
        %1084 = vrot.lane.b32.xlu0 %v946, 15
        %v1085 = vpop.permute.xlu0 %1084
        %1086 = vrot.lane.b32.xlu0 %v935, 15
        %v1087 = vpop.permute.xlu0 %1086
        %1088 = vrot.lane.b32.xlu0 %v939, 15
        %v1089 = vpop.permute.xlu0 %1088
        %1090 = vrot.lane.b32.xlu0 %v943, 15
        %v1091 = vpop.permute.xlu0 %1090
        %1092 = vrot.lane.b32.xlu0 %v947, 15
        %v1093 = vpop.permute.xlu0 %1092
        %1094 = vrot.lane.b32.xlu0 %v936, 15
        %v1095 = vpop.permute.xlu0 %1094
        %1096 = vrot.lane.b32.xlu0 %v940, 15
        %v1097 = vpop.permute.xlu0 %1096
        %1098 = vrot.lane.b32.xlu0 %v944, 15
        %v1099 = vpop.permute.xlu0 %1098
        %1100 = vrot.lane.b32.xlu0 %v948, 15
        %v1101 = vpop.permute.xlu0 %1100
        %1102 = vrot.lane.b32.xlu0 %v937, 15
        %v1103 = vpop.permute.xlu0 %1102
        %1104 = vrot.lane.b32.xlu0 %v941, 15
        %v1105 = vpop.permute.xlu0 %1104
        %1106 = vrot.lane.b32.xlu0 %v945, 15
        %v1107 = vpop.permute.xlu0 %1106
        %1108 = vrot.lane.b32.xlu0 %v949, 15
        %v1109 = vpop.permute.xlu0 %1108
        %v1110 = vsel %vm483, %v1095, %v1103
        %v1111 = vsel %vm483, %v1097, %v1105
        %v1112 = vsel %vm483, %v1099, %v1107
        %v1113 = vsel %vm483, %v1101, %v1109
        %v1114 = vsel %vm483, %v1087, %v1095
        %v1115 = vsel %vm483, %v1089, %v1097
        %v1116 = vsel %vm483, %v1091, %v1099
        %v1117 = vsel %vm483, %v1093, %v1101
        %v1118 = vsel %vm483, %v1079, %v1087
        %v1119 = vsel %vm483, %v1081, %v1089
        %v1120 = vsel %vm483, %v1083, %v1091
        %v1121 = vsel %vm483, %v1085, %v1093
        %v1122 = vsel %vm483, %v1103, %v1079
        %v1123 = vsel %vm483, %v1105, %v1081
        %v1124 = vsel %vm483, %v1107, %v1083
        %v1125 = vsel %vm483, %v1109, %v1085
        %v1126 = vmul.f32 %v1122, %v494
        %v1127 = vmul.f32 %v1118, %v498
        %v1128 = vmul.f32 %v1114, %v502
        %v1129 = vmul.f32 %v1110, %v506
        %v1130 = vmul.f32 %v1123, %v494
        %v1131 = vmul.f32 %v1119, %v498
        %v1132 = vmul.f32 %v1115, %v502
        %v1133 = vmul.f32 %v1111, %v506
        %v1134 = vmul.f32 %v1124, %v494
        %v1135 = vmul.f32 %v1120, %v498
        %v1136 = vmul.f32 %v1116, %v502
        %v1137 = vmul.f32 %v1112, %v506
        %v1138 = vmul.f32 %v1125, %v494
        %v1139 = vmul.f32 %v1121, %v498
        %v1140 = vmul.f32 %v1117, %v502
        %v1141 = vmul.f32 %v1113, %v506
        %1142 = vrot.lane.b32.xlu0 %v934, 1
        %v1143 = vpop.permute.xlu0 %1142
        %1144 = vrot.lane.b32.xlu0 %v938, 1
        %v1145 = vpop.permute.xlu0 %1144
        %1146 = vrot.lane.b32.xlu0 %v942, 1
        %v1147 = vpop.permute.xlu0 %1146
        %1148 = vrot.lane.b32.xlu0 %v946, 1
        %v1149 = vpop.permute.xlu0 %1148
        %1150 = vrot.lane.b32.xlu0 %v935, 1
        %v1151 = vpop.permute.xlu0 %1150
        %1152 = vrot.lane.b32.xlu0 %v939, 1
        %v1153 = vpop.permute.xlu0 %1152
        %1154 = vrot.lane.b32.xlu0 %v943, 1
        %v1155 = vpop.permute.xlu0 %1154
        %1156 = vrot.lane.b32.xlu0 %v947, 1
        %v1157 = vpop.permute.xlu0 %1156
        %1158 = vrot.lane.b32.xlu0 %v936, 1
        %v1159 = vpop.permute.xlu0 %1158
        %1160 = vrot.lane.b32.xlu0 %v940, 1
        %v1161 = vpop.permute.xlu0 %1160
        %1162 = vrot.lane.b32.xlu0 %v944, 1
        %v1163 = vpop.permute.xlu0 %1162
        %1164 = vrot.lane.b32.xlu0 %v948, 1
        %v1165 = vpop.permute.xlu0 %1164
        %1166 = vrot.lane.b32.xlu0 %v937, 1
        %v1167 = vpop.permute.xlu0 %1166
        %1168 = vrot.lane.b32.xlu0 %v941, 1
        %v1169 = vpop.permute.xlu0 %1168
        %1170 = vrot.lane.b32.xlu0 %v945, 1
        %v1171 = vpop.permute.xlu0 %1170
        %1172 = vrot.lane.b32.xlu0 %v949, 1
        %v1173 = vpop.permute.xlu0 %1172
        %v1174 = vsel %vm523, %v1159, %v1167
        %v1175 = vsel %vm523, %v1161, %v1169
        %v1176 = vsel %vm523, %v1163, %v1171
        %v1177 = vsel %vm523, %v1165, %v1173
        %v1178 = vsel %vm523, %v1151, %v1159
        %v1179 = vsel %vm523, %v1153, %v1161
        %v1180 = vsel %vm523, %v1155, %v1163
        %v1181 = vsel %vm523, %v1157, %v1165
        %v1182 = vsel %vm523, %v1143, %v1151
        %v1183 = vsel %vm523, %v1145, %v1153
        %v1184 = vsel %vm523, %v1147, %v1155
        %v1185 = vsel %vm523, %v1149, %v1157
        %v1186 = vsel %vm523, %v1167, %v1143
        %v1187 = vsel %vm523, %v1169, %v1145
        %v1188 = vsel %vm523, %v1171, %v1147
        %v1189 = vsel %vm523, %v1173, %v1149
        %v1190 = vmul.f32 %v1186, %v534
        %v1191 = vmul.f32 %v1182, %v538
        %v1192 = vmul.f32 %v1178, %v542
        %v1193 = vmul.f32 %v1174, %v546
        %v1194 = vmul.f32 %v1187, %v534
        %v1195 = vmul.f32 %v1183, %v538
        %v1196 = vmul.f32 %v1179, %v542
        %v1197 = vmul.f32 %v1175, %v546
        %v1198 = vmul.f32 %v1188, %v534
        %v1199 = vmul.f32 %v1184, %v538
        %v1200 = vmul.f32 %v1180, %v542
        %v1201 = vmul.f32 %v1176, %v546
        %v1202 = vmul.f32 %v1189, %v534
        %v1203 = vmul.f32 %v1185, %v538
        %v1204 = vmul.f32 %v1181, %v542
        %v1205 = vmul.f32 %v1177, %v546
        %1206 = vrot.lane.b32.xlu0 %v934, 127
        %v1207 = vpop.permute.xlu0 %1206
        %1208 = vrot.lane.b32.xlu0 %v938, 127
        %v1209 = vpop.permute.xlu0 %1208
        %1210 = vrot.lane.b32.xlu0 %v942, 127
        %v1211 = vpop.permute.xlu0 %1210
        %1212 = vrot.lane.b32.xlu0 %v946, 127
        %v1213 = vpop.permute.xlu0 %1212
        %1214 = vrot.lane.b32.xlu0 %v935, 127
        %v1215 = vpop.permute.xlu0 %1214
        %1216 = vrot.lane.b32.xlu0 %v939, 127
        %v1217 = vpop.permute.xlu0 %1216
        %1218 = vrot.lane.b32.xlu0 %v943, 127
        %v1219 = vpop.permute.xlu0 %1218
        %1220 = vrot.lane.b32.xlu0 %v947, 127
        %v1221 = vpop.permute.xlu0 %1220
        %1222 = vrot.lane.b32.xlu0 %v936, 127
        %v1223 = vpop.permute.xlu0 %1222
        %1224 = vrot.lane.b32.xlu0 %v940, 127
        %v1225 = vpop.permute.xlu0 %1224
        %1226 = vrot.lane.b32.xlu0 %v944, 127
        %v1227 = vpop.permute.xlu0 %1226
        %1228 = vrot.lane.b32.xlu0 %v948, 127
        %v1229 = vpop.permute.xlu0 %1228
        %1230 = vrot.lane.b32.xlu0 %v937, 127
        %v1231 = vpop.permute.xlu0 %1230
        %1232 = vrot.lane.b32.xlu0 %v941, 127
        %v1233 = vpop.permute.xlu0 %1232
        %1234 = vrot.lane.b32.xlu0 %v945, 127
        %v1235 = vpop.permute.xlu0 %1234
        %1236 = vrot.lane.b32.xlu0 %v949, 127
        %v1237 = vpop.permute.xlu0 %1236
        %v1238 = vsel %vm563, %v1223, %v1231
        %v1239 = vsel %vm563, %v1225, %v1233
        %v1240 = vsel %vm563, %v1227, %v1235
        %v1241 = vsel %vm563, %v1229, %v1237
        %v1242 = vsel %vm563, %v1215, %v1223
        %v1243 = vsel %vm563, %v1217, %v1225
        %v1244 = vsel %vm563, %v1219, %v1227
        %v1245 = vsel %vm563, %v1221, %v1229
        %v1246 = vsel %vm563, %v1207, %v1215
        %v1247 = vsel %vm563, %v1209, %v1217
        %v1248 = vsel %vm563, %v1211, %v1219
        %v1249 = vsel %vm563, %v1213, %v1221
        %v1250 = vsel %vm563, %v1231, %v1207
        %v1251 = vsel %vm563, %v1233, %v1209
        %v1252 = vsel %vm563, %v1235, %v1211
        %v1253 = vsel %vm563, %v1237, %v1213
        %v1254 = vmul.f32 %v1246, %v574
        %v1255 = vmul.f32 %v1242, %v578
        %v1256 = vmul.f32 %v1238, %v582
        %v1257 = vmul.f32 %v1250, %v586
        %v1258 = vmul.f32 %v1247, %v574
        %v1259 = vmul.f32 %v1243, %v578
        %v1260 = vmul.f32 %v1239, %v582
        %v1261 = vmul.f32 %v1251, %v586
        %v1262 = vmul.f32 %v1248, %v574
        %v1263 = vmul.f32 %v1244, %v578
        %v1264 = vmul.f32 %v1240, %v582
        %v1265 = vmul.f32 %v1252, %v586
        %v1266 = vmul.f32 %v1249, %v574
        %v1267 = vmul.f32 %v1245, %v578
        %v1268 = vmul.f32 %v1241, %v582
        %v1269 = vmul.f32 %v1253, %v586
        %1270 = vrot.lane.b32.xlu0 %v934, 113
        %v1271 = vpop.permute.xlu0 %1270
        %1272 = vrot.lane.b32.xlu0 %v938, 113
        %v1273 = vpop.permute.xlu0 %1272
        %1274 = vrot.lane.b32.xlu0 %v942, 113
        %v1275 = vpop.permute.xlu0 %1274
        %1276 = vrot.lane.b32.xlu0 %v946, 113
        %v1277 = vpop.permute.xlu0 %1276
        %1278 = vrot.lane.b32.xlu0 %v935, 113
        %v1279 = vpop.permute.xlu0 %1278
        %1280 = vrot.lane.b32.xlu0 %v939, 113
        %v1281 = vpop.permute.xlu0 %1280
        %1282 = vrot.lane.b32.xlu0 %v943, 113
        %v1283 = vpop.permute.xlu0 %1282
        %1284 = vrot.lane.b32.xlu0 %v947, 113
        %v1285 = vpop.permute.xlu0 %1284
        %1286 = vrot.lane.b32.xlu0 %v936, 113
        %v1287 = vpop.permute.xlu0 %1286
        %1288 = vrot.lane.b32.xlu0 %v940, 113
        %v1289 = vpop.permute.xlu0 %1288
        %1290 = vrot.lane.b32.xlu0 %v944, 113
        %v1291 = vpop.permute.xlu0 %1290
        %1292 = vrot.lane.b32.xlu0 %v948, 113
        %v1293 = vpop.permute.xlu0 %1292
        %1294 = vrot.lane.b32.xlu0 %v937, 113
        %v1295 = vpop.permute.xlu0 %1294
        %1296 = vrot.lane.b32.xlu0 %v941, 113
        %v1297 = vpop.permute.xlu0 %1296
        %1298 = vrot.lane.b32.xlu0 %v945, 113
        %v1299 = vpop.permute.xlu0 %1298
        %1300 = vrot.lane.b32.xlu0 %v949, 113
        %v1301 = vpop.permute.xlu0 %1300
        %v1302 = vsel %vm603, %v1287, %v1295
        %v1303 = vsel %vm603, %v1289, %v1297
        %v1304 = vsel %vm603, %v1291, %v1299
        %v1305 = vsel %vm603, %v1293, %v1301
        %v1306 = vsel %vm603, %v1279, %v1287
        %v1307 = vsel %vm603, %v1281, %v1289
        %v1308 = vsel %vm603, %v1283, %v1291
        %v1309 = vsel %vm603, %v1285, %v1293
        %v1310 = vsel %vm603, %v1271, %v1279
        %v1311 = vsel %vm603, %v1273, %v1281
        %v1312 = vsel %vm603, %v1275, %v1283
        %v1313 = vsel %vm603, %v1277, %v1285
        %v1314 = vsel %vm603, %v1295, %v1271
        %v1315 = vsel %vm603, %v1297, %v1273
        %v1316 = vsel %vm603, %v1299, %v1275
        %v1317 = vsel %vm603, %v1301, %v1277
        %v1318 = vmul.f32 %v1310, %v614
        %v1319 = vmul.f32 %v1306, %v618
        %v1320 = vmul.f32 %v1302, %v622
        %v1321 = vmul.f32 %v1314, %v626
        %v1322 = vmul.f32 %v1311, %v614
        %v1323 = vmul.f32 %v1307, %v618
        %v1324 = vmul.f32 %v1303, %v622
        %v1325 = vmul.f32 %v1315, %v626
        %v1326 = vmul.f32 %v1312, %v614
        %v1327 = vmul.f32 %v1308, %v618
        %v1328 = vmul.f32 %v1304, %v622
        %v1329 = vmul.f32 %v1316, %v626
        %v1330 = vmul.f32 %v1313, %v614
        %v1331 = vmul.f32 %v1309, %v618
        %v1332 = vmul.f32 %v1305, %v622
        %v1333 = vmul.f32 %v1317, %v626
        %1334 = vrot.lane.b32.xlu0 %v934, 112
        %v1335 = vpop.permute.xlu0 %1334
        %1336 = vrot.lane.b32.xlu0 %v938, 112
        %v1337 = vpop.permute.xlu0 %1336
        %1338 = vrot.lane.b32.xlu0 %v942, 112
        %v1339 = vpop.permute.xlu0 %1338
        %1340 = vrot.lane.b32.xlu0 %v946, 112
        %v1341 = vpop.permute.xlu0 %1340
        %1342 = vrot.lane.b32.xlu0 %v935, 112
        %v1343 = vpop.permute.xlu0 %1342
        %1344 = vrot.lane.b32.xlu0 %v939, 112
        %v1345 = vpop.permute.xlu0 %1344
        %1346 = vrot.lane.b32.xlu0 %v943, 112
        %v1347 = vpop.permute.xlu0 %1346
        %1348 = vrot.lane.b32.xlu0 %v947, 112
        %v1349 = vpop.permute.xlu0 %1348
        %1350 = vrot.lane.b32.xlu0 %v936, 112
        %v1351 = vpop.permute.xlu0 %1350
        %1352 = vrot.lane.b32.xlu0 %v940, 112
        %v1353 = vpop.permute.xlu0 %1352
        %1354 = vrot.lane.b32.xlu0 %v944, 112
        %v1355 = vpop.permute.xlu0 %1354
        %1356 = vrot.lane.b32.xlu0 %v948, 112
        %v1357 = vpop.permute.xlu0 %1356
        %1358 = vrot.lane.b32.xlu0 %v937, 112
        %v1359 = vpop.permute.xlu0 %1358
        %1360 = vrot.lane.b32.xlu0 %v941, 112
        %v1361 = vpop.permute.xlu0 %1360
        %1362 = vrot.lane.b32.xlu0 %v945, 112
        %v1363 = vpop.permute.xlu0 %1362
        %1364 = vrot.lane.b32.xlu0 %v949, 112
        %v1365 = vpop.permute.xlu0 %1364
        %v1366 = vsel %vm643, %v1351, %v1359
        %v1367 = vsel %vm643, %v1353, %v1361
        %v1368 = vsel %vm643, %v1355, %v1363
        %v1369 = vsel %vm643, %v1357, %v1365
        %v1370 = vsel %vm643, %v1343, %v1351
        %v1371 = vsel %vm643, %v1345, %v1353
        %v1372 = vsel %vm643, %v1347, %v1355
        %v1373 = vsel %vm643, %v1349, %v1357
        %v1374 = vsel %vm643, %v1335, %v1343
        %v1375 = vsel %vm643, %v1337, %v1345
        %v1376 = vsel %vm643, %v1339, %v1347
        %v1377 = vsel %vm643, %v1341, %v1349
        %v1378 = vsel %vm643, %v1359, %v1335
        %v1379 = vsel %vm643, %v1361, %v1337
        %v1380 = vsel %vm643, %v1363, %v1339
        %v1381 = vsel %vm643, %v1365, %v1341
        %v1382 = vmul.f32 %v1374, %v654
        %v1383 = vmul.f32 %v1370, %v658
        %v1384 = vmul.f32 %v1366, %v662
        %v1385 = vmul.f32 %v1378, %v666
        %v1386 = vmul.f32 %v1375, %v654
        %v1387 = vmul.f32 %v1371, %v658
        %v1388 = vmul.f32 %v1367, %v662
        %v1389 = vmul.f32 %v1379, %v666
        %v1390 = vmul.f32 %v1376, %v654
        %v1391 = vmul.f32 %v1372, %v658
        %v1392 = vmul.f32 %v1368, %v662
        %v1393 = vmul.f32 %v1380, %v666
        %v1394 = vmul.f32 %v1377, %v654
        %v1395 = vmul.f32 %v1373, %v658
        %v1396 = vmul.f32 %v1369, %v662
        %v1397 = vmul.f32 %v1381, %v666
        %1398 = vrot.lane.b32.xlu0 %v934, 111
        %v1399 = vpop.permute.xlu0 %1398
        %1400 = vrot.lane.b32.xlu0 %v938, 111
        %v1401 = vpop.permute.xlu0 %1400
        %1402 = vrot.lane.b32.xlu0 %v942, 111
        %v1403 = vpop.permute.xlu0 %1402
        %1404 = vrot.lane.b32.xlu0 %v946, 111
        %v1405 = vpop.permute.xlu0 %1404
        %1406 = vrot.lane.b32.xlu0 %v935, 111
        %v1407 = vpop.permute.xlu0 %1406
        %1408 = vrot.lane.b32.xlu0 %v939, 111
        %v1409 = vpop.permute.xlu0 %1408
        %1410 = vrot.lane.b32.xlu0 %v943, 111
        %v1411 = vpop.permute.xlu0 %1410
        %1412 = vrot.lane.b32.xlu0 %v947, 111
        %v1413 = vpop.permute.xlu0 %1412
        %1414 = vrot.lane.b32.xlu0 %v936, 111
        %v1415 = vpop.permute.xlu0 %1414
        %1416 = vrot.lane.b32.xlu0 %v940, 111
        %v1417 = vpop.permute.xlu0 %1416
        %1418 = vrot.lane.b32.xlu0 %v944, 111
        %v1419 = vpop.permute.xlu0 %1418
        %1420 = vrot.lane.b32.xlu0 %v948, 111
        %v1421 = vpop.permute.xlu0 %1420
        %1422 = vrot.lane.b32.xlu0 %v937, 111
        %v1423 = vpop.permute.xlu0 %1422
        %1424 = vrot.lane.b32.xlu0 %v941, 111
        %v1425 = vpop.permute.xlu0 %1424
        %1426 = vrot.lane.b32.xlu0 %v945, 111
        %v1427 = vpop.permute.xlu0 %1426
        %1428 = vrot.lane.b32.xlu0 %v949, 111
        %v1429 = vpop.permute.xlu0 %1428
        %v1430 = vsel %vm683, %v1415, %v1423
        %v1431 = vsel %vm683, %v1417, %v1425
        %v1432 = vsel %vm683, %v1419, %v1427
        %v1433 = vsel %vm683, %v1421, %v1429
        %v1434 = vsel %vm683, %v1407, %v1415
        %v1435 = vsel %vm683, %v1409, %v1417
        %v1436 = vsel %vm683, %v1411, %v1419
        %v1437 = vsel %vm683, %v1413, %v1421
        %v1438 = vsel %vm683, %v1399, %v1407
        %v1439 = vsel %vm683, %v1401, %v1409
        %v1440 = vsel %vm683, %v1403, %v1411
        %v1441 = vsel %vm683, %v1405, %v1413
        %v1442 = vsel %vm683, %v1423, %v1399
        %v1443 = vsel %vm683, %v1425, %v1401
        %v1444 = vsel %vm683, %v1427, %v1403
        %v1445 = vsel %vm683, %v1429, %v1405
        %v1446 = vmul.f32 %v1438, %v694
        %v1447 = vmul.f32 %v1434, %v698
        %v1448 = vmul.f32 %v1430, %v702
        %v1449 = vmul.f32 %v1442, %v706
        %v1450 = vmul.f32 %v1439, %v694
        %v1451 = vmul.f32 %v1435, %v698
        %v1452 = vmul.f32 %v1431, %v702
        %v1453 = vmul.f32 %v1443, %v706
        %v1454 = vmul.f32 %v1440, %v694
        %v1455 = vmul.f32 %v1436, %v698
        %v1456 = vmul.f32 %v1432, %v702
        %v1457 = vmul.f32 %v1444, %v706
        %v1458 = vmul.f32 %v1441, %v694
        %v1459 = vmul.f32 %v1437, %v698
        %v1460 = vmul.f32 %v1433, %v702
        %v1461 = vmul.f32 %v1445, %v706
        %v1462 = vld [vmem:[#allocation3] sm:$0xff]
        %v1463 = vld [vmem:[#allocation3 + $0x8] sm:$0xff]
        %v1464 = vld [vmem:[#allocation3 + $0x10] sm:$0xff]
        %v1465 = vld [vmem:[#allocation3 + $0x18] sm:$0xff]
        %v1466 = vld [vmem:[#allocation3 + $0x20] sm:$0xff]
        %v1467 = vld [vmem:[#allocation3 + $0x28] sm:$0xff]
        %v1468 = vld [vmem:[#allocation3 + $0x30] sm:$0xff]
        %v1469 = vld [vmem:[#allocation3 + $0x38] sm:$0xff]
        %v1470 = vld [vmem:[#allocation3 + $0x40] sm:$0xff]
        %v1471 = vld [vmem:[#allocation3 + $0x48] sm:$0xff]
        %v1472 = vld [vmem:[#allocation3 + $0x50] sm:$0xff]
        %v1473 = vld [vmem:[#allocation3 + $0x58] sm:$0xff]
        %v1474 = vld [vmem:[#allocation3 + $0x60] sm:$0xff]
        %v1475 = vld [vmem:[#allocation3 + $0x68] sm:$0xff]
        %v1476 = vld [vmem:[#allocation3 + $0x70] sm:$0xff]
        %v1477 = vld [vmem:[#allocation3 + $0x78] sm:$0xff]
        %v1478 = vld [vmem:[#allocation3 + $0x80] sm:$0xff]
        %v1479 = vld [vmem:[#allocation3 + $0x88] sm:$0xff]
        %v1480 = vld [vmem:[#allocation3 + $0x90] sm:$0xff]
        %v1481 = vld [vmem:[#allocation3 + $0x98] sm:$0xff]
        %v1482 = vld [vmem:[#allocation3 + $0xa0] sm:$0xff]
        %v1483 = vld [vmem:[#allocation3 + $0xa8] sm:$0xff]
        %v1484 = vld [vmem:[#allocation3 + $0xb0] sm:$0xff]
        %v1485 = vld [vmem:[#allocation3 + $0xb8] sm:$0xff]
        %v1486 = vld [vmem:[%s5] sm:$0xff]
        %v1487 = vld [vmem:[%s5 + $0x8] sm:$0xff]
        %v1488 = vld [vmem:[%s5 + $0x10] sm:$0xff]
        %v1489 = vld [vmem:[%s5 + $0x18] sm:$0xff]
        %v1490 = vld [vmem:[%s5 + $0x20] sm:$0xff]
        %v1491 = vld [vmem:[%s5 + $0x28] sm:$0xff]
        %v1492 = vld [vmem:[%s5 + $0x30] sm:$0xff]
        %v1493 = vld [vmem:[%s5 + $0x38] sm:$0xff]
        %1495 = vset.pattern.permute.xlu0 0
        %1496 = vperm.xlu0 %1495, %v1486
        %v1497 = vpop.permute.xlu0 %1496
        %1500 = vset.pattern.permute.xlu0 0
        %1501 = vperm.xlu0 %1500, %v1487
        %v1502 = vpop.permute.xlu0 %1501
        %1505 = vset.pattern.permute.xlu0 0
        %1506 = vperm.xlu0 %1505, %v1488
        %v1507 = vpop.permute.xlu0 %1506
        %1510 = vset.pattern.permute.xlu0 0
        %1511 = vperm.xlu0 %1510, %v1489
        %v1512 = vpop.permute.xlu0 %1511
        %1515 = vset.pattern.permute.xlu0 0
        %1516 = vperm.xlu0 %1515, %v1490
        %v1517 = vpop.permute.xlu0 %1516
        %1520 = vset.pattern.permute.xlu0 0
        %1521 = vperm.xlu0 %1520, %v1491
        %v1522 = vpop.permute.xlu0 %1521
        %1525 = vset.pattern.permute.xlu0 0
        %1526 = vperm.xlu0 %1525, %v1492
        %v1527 = vpop.permute.xlu0 %1526
        %1530 = vset.pattern.permute.xlu0 0
        %1531 = vperm.xlu0 %1530, %v1493
        %v1532 = vpop.permute.xlu0 %1531
        %vm1534 = vcmask 261120
        %v1536 = vsel %vm1534, %v1464, 0
        %v1539 = vsel %vm1534, %v1467, 0
        %v1542 = vsel %vm1534, %v1470, 0
        %v1545 = vsel %vm1534, %v1473, 0
        %v1548 = vsel %vm1534, %v1476, 0
        %v1551 = vsel %vm1534, %v1479, 0
        %v1554 = vsel %vm1534, %v1482, 0
        %v1557 = vsel %vm1534, %v1485, 0
        %1559 = vmatprep.subr.mxu0 %v999
        %1560 = vmatpush1.msra.mxu0 %v998
        %1561 = vmatprep.subr.mxu0 %v1003
        %1562 = vmatpush1.msra.mxu0 %v1002
        %1563 = vmatprep.subr.mxu0 %v1007
        %1564 = vmatpush1.msra.mxu0 %v1006
        %1565 = vmatprep.subr.mxu0 %v1011
        %1566 = vmatpush1.msra.mxu0 %v1010
        %1567 = vmatprep.subr.mxu0 %v1063
        %1568 = vmatpush1.msra.mxu0 %v1062
        %1569 = vmatprep.subr.mxu0 %v1067
        %1570 = vmatpush1.msra.mxu0 %v1066
        %1571 = vmatprep.subr.mxu0 %v1071
        %1572 = vmatpush1.msra.mxu0 %v1070
        %1573 = vmatprep.subr.mxu0 %v1075
        %1574 = vmatpush1.msra.mxu0 %v1074
        %1575 = vmatprep.subr.mxu0 %v1127
        %1576 = vmatpush1.msra.mxu0 %v1126
        %1577 = vmatprep.subr.mxu0 %v1131
        %1578 = vmatpush1.msra.mxu0 %v1130
        %1579 = vmatprep.subr.mxu0 %v1135
        %1580 = vmatpush1.msra.mxu0 %v1134
        %1581 = vmatprep.subr.mxu0 %v1139
        %1582 = vmatpush1.msra.mxu0 %v1138
        %1583 = vmatprep.subr.mxu0 %v1191
        %1584 = vmatpush1.msra.mxu0 %v1190
        %1585 = vmatprep.subr.mxu0 %v1195
        %1586 = vmatpush1.msra.mxu0 %v1194
        %1587 = vmatprep.subr.mxu0 %v1199
        %1588 = vmatpush1.msra.mxu0 %v1198
        %1589 = vmatprep.subr.mxu0 %v1203
        %1590 = vmatpush1.msra.mxu0 %v1202
        %1591 = vmatprep.subr.mxu0 %v935
        %1592 = vmatpush1.msra.mxu0 %v934
        %1593 = vmatprep.subr.mxu0 %v939
        %1594 = vmatpush1.msra.mxu0 %v938
        %1595 = vmatprep.subr.mxu0 %v943
        %1596 = vmatpush1.msra.mxu0 %v942
        %1597 = vmatprep.subr.mxu0 %v947
        %1598 = vmatpush1.msra.mxu0 %v946
        %1599 = vmatprep.subr.mxu0 %v1255
        %1600 = vmatpush1.msra.mxu0 %v1254
        %1601 = vmatprep.subr.mxu0 %v1259
        %1602 = vmatpush1.msra.mxu0 %v1258
        %1603 = vmatprep.subr.mxu0 %v1263
        %1604 = vmatpush1.msra.mxu0 %v1262
        %1605 = vmatprep.subr.mxu0 %v1267
        %1606 = vmatpush1.msra.mxu0 %v1266
        %1607 = vmatprep.subr.mxu0 %v1319
        %1608 = vmatpush1.msra.mxu0 %v1318
        %1609 = vmatprep.subr.mxu0 %v1323
        %1610 = vmatpush1.msra.mxu0 %v1322
        %1611 = vmatprep.subr.mxu0 %v1327
        %1612 = vmatpush1.msra.mxu0 %v1326
        %1613 = vmatprep.subr.mxu0 %v1331
        %1614 = vmatpush1.msra.mxu0 %v1330
        %1615 = vmatprep.subr.mxu0 %v1383
        %1616 = vmatpush1.msra.mxu0 %v1382
        %1617 = vmatprep.subr.mxu0 %v1387
        %1618 = vmatpush1.msra.mxu0 %v1386
        %1619 = vmatprep.subr.mxu0 %v1391
        %1620 = vmatpush1.msra.mxu0 %v1390
        %1621 = vmatprep.subr.mxu0 %v1395
        %1622 = vmatpush1.msra.mxu0 %v1394
        %1623 = vmatprep.mubr.f32.mxu0 %v1463
        %1624 = vmatmul.mubr.f32.gmra.mrb[0].mxu0 %v1462
        %v1625 = vpop.f32.mrb[0].mxu0
        %v1626 = vadd.f32 %v1497, %v1625
        %v1627 = vpop.f32.mrb[0].mxu0
        %v1628 = vadd.f32 %v1497, %v1627
        %1629 = vmatprep.mubr.f32.mxu0 %v1466
        %1630 = vmatmul.mubr.f32.gmra.mrb[0].mxu0 %v1465
        %v1631 = vpop.f32.mrb[0].mxu0
        %v1632 = vadd.f32 %v1502, %v1631
        %v1633 = vpop.f32.mrb[0].mxu0
        %v1634 = vadd.f32 %v1502, %v1633
        %1635 = vmatprep.mubr.f32.mxu0 %v1469
        %1636 = vmatmul.mubr.f32.gmra.mrb[0].mxu0 %v1468
        %v1637 = vpop.f32.mrb[0].mxu0
        %v1638 = vadd.f32 %v1507, %v1637
        %v1639 = vpop.f32.mrb[0].mxu0
        %v1640 = vadd.f32 %v1507, %v1639
        %1641 = vmatprep.mubr.f32.mxu0 %v1472
        %1642 = vmatmul.mubr.f32.gmra.mrb[0].mxu0 %v1471
        %v1643 = vpop.f32.mrb[0].mxu0
        %v1644 = vadd.f32 %v1512, %v1643
        %v1645 = vpop.f32.mrb[0].mxu0
        %v1646 = vadd.f32 %v1512, %v1645
        %1647 = vmatprep.mubr.f32.mxu0 %v1475
        %1648 = vmatmul.mubr.f32.gmra.mrb[0].mxu0 %v1474
        %v1649 = vpop.f32.mrb[0].mxu0
        %v1650 = vadd.f32 %v1517, %v1649
        %v1651 = vpop.f32.mrb[0].mxu0
        %v1652 = vadd.f32 %v1517, %v1651
        %1653 = vmatprep.mubr.f32.mxu0 %v1478
        %1654 = vmatmul.mubr.f32.gmra.mrb[0].mxu0 %v1477
        %v1655 = vpop.f32.mrb[0].mxu0
        %v1656 = vadd.f32 %v1522, %v1655
        %v1657 = vpop.f32.mrb[0].mxu0
        %v1658 = vadd.f32 %v1522, %v1657
        %1659 = vmatprep.mubr.f32.mxu0 %v1481
        %1660 = vmatmul.mubr.f32.gmra.mrb[0].mxu0 %v1480
        %v1661 = vpop.f32.mrb[0].mxu0
        %v1662 = vadd.f32 %v1527, %v1661
        %v1663 = vpop.f32.mrb[0].mxu0
        %v1664 = vadd.f32 %v1527, %v1663
        %1665 = vmatprep.mubr.f32.mxu0 %v1484
        %1666 = vmatmul.mubr.f32.gmra.mrb[0].mxu0 %v1483
        %v1667 = vpop.f32.mrb[0].mxu0
        %v1668 = vadd.f32 %v1532, %v1667
        %v1669 = vpop.f32.mrb[0].mxu0
        %v1670 = vadd.f32 %v1532, %v1669
        %1671 = vdwg.mxu0
        %1672 = vmatprep.subr.mxu0 %v1447
        %1673 = vmatpush1.msra.mxu0 %v1446
        %1674 = vmatprep.subr.mxu0 %v1451
        %1675 = vmatpush1.msra.mxu0 %v1450
        %1676 = vmatprep.subr.mxu0 %v1455
        %1677 = vmatpush1.msra.mxu0 %v1454
        %1678 = vmatprep.subr.mxu0 %v1459
        %1679 = vmatpush1.msra.mxu0 %v1458
        %1680 = vmatprep.subr.mxu0 0.0
        %1681 = vmatpush1.msra.mxu0 0.0
        %1682 = vmatprep.subr.mxu0 0.0
        %1683 = vmatpush1.msra.mxu0 0.0
        %1684 = vmatprep.subr.mxu0 0.0
        %1685 = vmatpush1.msra.mxu0 0.0
        %1686 = vmatprep.subr.mxu0 0.0
        %1687 = vmatpush1.msra.mxu0 0.0
        %1688 = vmatprep.subr.mxu0 0.0
        %1689 = vmatpush1.msra.mxu0 0.0
        %1690 = vmatprep.subr.mxu0 0.0
        %1691 = vmatpush1.msra.mxu0 0.0
        %1692 = vmatprep.subr.mxu0 0.0
        %1693 = vmatpush1.msra.mxu0 0.0
        %1694 = vmatprep.subr.mxu0 0.0
        %1695 = vmatpush1.msra.mxu0 0.0
        %1696 = vmatprep.subr.mxu0 0.0
        %1697 = vmatpush1.msra.mxu0 0.0
        %1698 = vmatprep.subr.mxu0 0.0
        %1699 = vmatpush1.msra.mxu0 0.0
        %1700 = vmatprep.subr.mxu0 0.0
        %1701 = vmatpush1.msra.mxu0 0.0
        %1702 = vmatprep.subr.mxu0 0.0
        %1703 = vmatpush1.msra.mxu0 0.0
        %1704 = vmatprep.subr.mxu0 0.0
        %1705 = vmatpush1.msra.mxu0 0.0
        %1706 = vmatprep.subr.mxu0 0.0
        %1707 = vmatpush1.msra.mxu0 0.0
        %1708 = vmatprep.subr.mxu0 0.0
        %1709 = vmatpush1.msra.mxu0 0.0
        %1710 = vmatprep.subr.mxu0 0.0
        %1711 = vmatpush1.msra.mxu0 0.0
        %1712 = vmatprep.subr.mxu0 0.0
        %1713 = vmatpush1.msra.mxu0 0.0
        %1714 = vmatprep.subr.mxu0 0.0
        %1715 = vmatpush1.msra.mxu0 0.0
        %1716 = vmatprep.subr.mxu0 0.0
        %1717 = vmatpush1.msra.mxu0 0.0
        %1718 = vmatprep.subr.mxu0 0.0
        %1719 = vmatpush1.msra.mxu0 0.0
        %1720 = vmatprep.subr.mxu0 0.0
        %1721 = vmatpush1.msra.mxu0 0.0
        %1722 = vmatprep.subr.mxu0 0.0
        %1723 = vmatpush1.msra.mxu0 0.0
        %1724 = vmatprep.subr.mxu0 0.0
        %1725 = vmatpush1.msra.mxu0 0.0
        %1726 = vmatprep.subr.mxu0 0.0
        %1727 = vmatpush1.msra.mxu0 0.0
        %1728 = vmatprep.subr.mxu0 0.0
        %1729 = vmatpush1.msra.mxu0 0.0
        %1730 = vmatprep.subr.mxu0 0.0
        %1731 = vmatpush1.msra.mxu0 0.0
        %1732 = vmatprep.subr.mxu0 0.0
        %1733 = vmatpush1.msra.mxu0 0.0
        %1734 = vmatprep.subr.mxu0 0.0
        %1735 = vmatpush1.msra.mxu0 0.0
        %1736 = vmatprep.mubr.f32.mxu0 0.0
        %1737 = vmatmul.mubr.f32.gmra.mrb[0].mxu0 %v1536
        %v1738 = vpop.f32.mrb[0].mxu0
        %v1739 = vadd.f32 %v1626, %v1738
        %v1740 = vpop.f32.mrb[0].mxu0
        %v1741 = vadd.f32 %v1628, %v1740
        %1742 = vmatprep.mubr.f32.mxu0 0.0
        %1743 = vmatmul.mubr.f32.gmra.mrb[0].mxu0 %v1539
        %v1744 = vpop.f32.mrb[0].mxu0
        %v1745 = vadd.f32 %v1632, %v1744
        %v1746 = vpop.f32.mrb[0].mxu0
        %v1747 = vadd.f32 %v1634, %v1746
        %1748 = vmatprep.mubr.f32.mxu0 0.0
        %1749 = vmatmul.mubr.f32.gmra.mrb[0].mxu0 %v1542
        %v1750 = vpop.f32.mrb[0].mxu0
        %v1751 = vadd.f32 %v1638, %v1750
        %v1752 = vpop.f32.mrb[0].mxu0
        %v1753 = vadd.f32 %v1640, %v1752
        %1754 = vmatprep.mubr.f32.mxu0 0.0
        %1755 = vmatmul.mubr.f32.gmra.mrb[0].mxu0 %v1545
        %v1756 = vpop.f32.mrb[0].mxu0
        %v1757 = vadd.f32 %v1644, %v1756
        %v1758 = vpop.f32.mrb[0].mxu0
        %v1759 = vadd.f32 %v1646, %v1758
        %1760 = vmatprep.mubr.f32.mxu0 0.0
        %1761 = vmatmul.mubr.f32.gmra.mrb[0].mxu0 %v1548
        %v1762 = vpop.f32.mrb[0].mxu0
        %v1763 = vadd.f32 %v1650, %v1762
        %v1764 = vpop.f32.mrb[0].mxu0
        %v1765 = vadd.f32 %v1652, %v1764
        %1766 = vmatprep.mubr.f32.mxu0 0.0
        %1767 = vmatmul.mubr.f32.gmra.mrb[0].mxu0 %v1551
        %v1768 = vpop.f32.mrb[0].mxu0
        %v1769 = vadd.f32 %v1656, %v1768
        %v1770 = vpop.f32.mrb[0].mxu0
        %v1771 = vadd.f32 %v1658, %v1770
        %1772 = vmatprep.mubr.f32.mxu0 0.0
        %1773 = vmatmul.mubr.f32.gmra.mrb[0].mxu0 %v1554
        %v1774 = vpop.f32.mrb[0].mxu0
        %v1775 = vadd.f32 %v1662, %v1774
        %v1776 = vpop.f32.mrb[0].mxu0
        %v1777 = vadd.f32 %v1664, %v1776
        %1778 = vmatprep.mubr.f32.mxu0 0.0
        %1779 = vmatmul.mubr.f32.gmra.mrb[0].mxu0 %v1557
        %v1780 = vpop.f32.mrb[0].mxu0
        %v1781 = vadd.f32 %v1668, %v1780
        %v1782 = vpop.f32.mrb[0].mxu0
        %v1783 = vadd.f32 %v1670, %v1782
        %1784 = vdwg.mxu0
        %1785 = vmatprep.subr.mxu0 %v1001
        %1786 = vmatpush1.msra.mxu0 %v1000
        %1787 = vmatprep.subr.mxu0 %v1005
        %1788 = vmatpush1.msra.mxu0 %v1004
        %1789 = vmatprep.subr.mxu0 %v1009
        %1790 = vmatpush1.msra.mxu0 %v1008
        %1791 = vmatprep.subr.mxu0 %v1013
        %1792 = vmatpush1.msra.mxu0 %v1012
        %1793 = vmatprep.subr.mxu0 %v1065
        %1794 = vmatpush1.msra.mxu0 %v1064
        %1795 = vmatprep.subr.mxu0 %v1069
        %1796 = vmatpush1.msra.mxu0 %v1068
        %1797 = vmatprep.subr.mxu0 %v1073
        %1798 = vmatpush1.msra.mxu0 %v1072
        %1799 = vmatprep.subr.mxu0 %v1077
        %1800 = vmatpush1.msra.mxu0 %v1076
        %1801 = vmatprep.subr.mxu0 %v1129
        %1802 = vmatpush1.msra.mxu0 %v1128
        %1803 = vmatprep.subr.mxu0 %v1133
        %1804 = vmatpush1.msra.mxu0 %v1132
        %1805 = vmatprep.subr.mxu0 %v1137
        %1806 = vmatpush1.msra.mxu0 %v1136
        %1807 = vmatprep.subr.mxu0 %v1141
        %1808 = vmatpush1.msra.mxu0 %v1140
        %1809 = vmatprep.subr.mxu0 %v1193
        %1810 = vmatpush1.msra.mxu0 %v1192
        %1811 = vmatprep.subr.mxu0 %v1197
        %1812 = vmatpush1.msra.mxu0 %v1196
        %1813 = vmatprep.subr.mxu0 %v1201
        %1814 = vmatpush1.msra.mxu0 %v1200
        %1815 = vmatprep.subr.mxu0 %v1205
        %1816 = vmatpush1.msra.mxu0 %v1204
        %1817 = vmatprep.subr.mxu0 %v937
        %1818 = vmatpush1.msra.mxu0 %v936
        %1819 = vmatprep.subr.mxu0 %v941
        %1820 = vmatpush1.msra.mxu0 %v940
        %1821 = vmatprep.subr.mxu0 %v945
        %1822 = vmatpush1.msra.mxu0 %v944
        %1823 = vmatprep.subr.mxu0 %v949
        %1824 = vmatpush1.msra.mxu0 %v948
        %1825 = vmatprep.subr.mxu0 %v1257
        %1826 = vmatpush1.msra.mxu0 %v1256
        %1827 = vmatprep.subr.mxu0 %v1261
        %1828 = vmatpush1.msra.mxu0 %v1260
        %1829 = vmatprep.subr.mxu0 %v1265
        %1830 = vmatpush1.msra.mxu0 %v1264
        %1831 = vmatprep.subr.mxu0 %v1269
        %1832 = vmatpush1.msra.mxu0 %v1268
        %1833 = vmatprep.subr.mxu0 %v1321
        %1834 = vmatpush1.msra.mxu0 %v1320
        %1835 = vmatprep.subr.mxu0 %v1325
        %1836 = vmatpush1.msra.mxu0 %v1324
        %1837 = vmatprep.subr.mxu0 %v1329
        %1838 = vmatpush1.msra.mxu0 %v1328
        %1839 = vmatprep.subr.mxu0 %v1333
        %1840 = vmatpush1.msra.mxu0 %v1332
        %1841 = vmatprep.subr.mxu0 %v1385
        %1842 = vmatpush1.msra.mxu0 %v1384
        %1843 = vmatprep.subr.mxu0 %v1389
        %1844 = vmatpush1.msra.mxu0 %v1388
        %1845 = vmatprep.subr.mxu0 %v1393
        %1846 = vmatpush1.msra.mxu0 %v1392
        %1847 = vmatprep.subr.mxu0 %v1397
        %1848 = vmatpush1.msra.mxu0 %v1396
        %1849 = vmatprep.mubr.f32.mxu0 %v1463
        %1850 = vmatmul.mubr.f32.gmra.mrb[0].mxu0 %v1462
        %v1851 = vpop.f32.mrb[0].mxu0
        %v1852 = vadd.f32 %v1497, %v1851
        %v1853 = vpop.f32.mrb[0].mxu0
        %v1854 = vadd.f32 %v1497, %v1853
        %1855 = vmatprep.mubr.f32.mxu0 %v1466
        %1856 = vmatmul.mubr.f32.gmra.mrb[0].mxu0 %v1465
        %v1857 = vpop.f32.mrb[0].mxu0
        %v1858 = vadd.f32 %v1502, %v1857
        %v1859 = vpop.f32.mrb[0].mxu0
        %v1860 = vadd.f32 %v1502, %v1859
        %1861 = vmatprep.mubr.f32.mxu0 %v1469
        %1862 = vmatmul.mubr.f32.gmra.mrb[0].mxu0 %v1468
        %v1863 = vpop.f32.mrb[0].mxu0
        %v1864 = vadd.f32 %v1507, %v1863
        %v1865 = vpop.f32.mrb[0].mxu0
        %v1866 = vadd.f32 %v1507, %v1865
        %1867 = vmatprep.mubr.f32.mxu0 %v1472
        %1868 = vmatmul.mubr.f32.gmra.mrb[0].mxu0 %v1471
        %v1869 = vpop.f32.mrb[0].mxu0
        %v1870 = vadd.f32 %v1512, %v1869
        %v1871 = vpop.f32.mrb[0].mxu0
        %v1872 = vadd.f32 %v1512, %v1871
        %1873 = vmatprep.mubr.f32.mxu0 %v1475
        %1874 = vmatmul.mubr.f32.gmra.mrb[0].mxu0 %v1474
        %v1875 = vpop.f32.mrb[0].mxu0
        %v1876 = vadd.f32 %v1517, %v1875
        %v1877 = vpop.f32.mrb[0].mxu0
        %v1878 = vadd.f32 %v1517, %v1877
        %1879 = vmatprep.mubr.f32.mxu0 %v1478
        %1880 = vmatmul.mubr.f32.gmra.mrb[0].mxu0 %v1477
        %v1881 = vpop.f32.mrb[0].mxu0
        %v1882 = vadd.f32 %v1522, %v1881
        %v1883 = vpop.f32.mrb[0].mxu0
        %v1884 = vadd.f32 %v1522, %v1883
        %1885 = vmatprep.mubr.f32.mxu0 %v1481
        %1886 = vmatmul.mubr.f32.gmra.mrb[0].mxu0 %v1480
        %v1887 = vpop.f32.mrb[0].mxu0
        %v1888 = vadd.f32 %v1527, %v1887
        %v1889 = vpop.f32.mrb[0].mxu0
        %v1890 = vadd.f32 %v1527, %v1889
        %1891 = vmatprep.mubr.f32.mxu0 %v1484
        %1892 = vmatmul.mubr.f32.gmra.mrb[0].mxu0 %v1483
        %v1893 = vpop.f32.mrb[0].mxu0
        %v1894 = vadd.f32 %v1532, %v1893
        %v1895 = vpop.f32.mrb[0].mxu0
        %v1896 = vadd.f32 %v1532, %v1895
        %1897 = vdwg.mxu0
        %1898 = vmatprep.subr.mxu0 %v1449
        %1899 = vmatpush1.msra.mxu0 %v1448
        %1900 = vmatprep.subr.mxu0 %v1453
        %1901 = vmatpush1.msra.mxu0 %v1452
        %1902 = vmatprep.subr.mxu0 %v1457
        %1903 = vmatpush1.msra.mxu0 %v1456
        %1904 = vmatprep.subr.mxu0 %v1461
        %1905 = vmatpush1.msra.mxu0 %v1460
        %1906 = vmatprep.subr.mxu0 0.0
        %1907 = vmatpush1.msra.mxu0 0.0
        %1908 = vmatprep.subr.mxu0 0.0
        %1909 = vmatpush1.msra.mxu0 0.0
        %1910 = vmatprep.subr.mxu0 0.0
        %1911 = vmatpush1.msra.mxu0 0.0
        %1912 = vmatprep.subr.mxu0 0.0
        %1913 = vmatpush1.msra.mxu0 0.0
        %1914 = vmatprep.subr.mxu0 0.0
        %1915 = vmatpush1.msra.mxu0 0.0
        %1916 = vmatprep.subr.mxu0 0.0
        %1917 = vmatpush1.msra.mxu0 0.0
        %1918 = vmatprep.subr.mxu0 0.0
        %1919 = vmatpush1.msra.mxu0 0.0
        %1920 = vmatprep.subr.mxu0 0.0
        %1921 = vmatpush1.msra.mxu0 0.0
        %1922 = vmatprep.subr.mxu0 0.0
        %1923 = vmatpush1.msra.mxu0 0.0
        %1924 = vmatprep.subr.mxu0 0.0
        %1925 = vmatpush1.msra.mxu0 0.0
        %1926 = vmatprep.subr.mxu0 0.0
        %1927 = vmatpush1.msra.mxu0 0.0
        %1928 = vmatprep.subr.mxu0 0.0
        %1929 = vmatpush1.msra.mxu0 0.0
        %1930 = vmatprep.subr.mxu0 0.0
        %1931 = vmatpush1.msra.mxu0 0.0
        %1932 = vmatprep.subr.mxu0 0.0
        %1933 = vmatpush1.msra.mxu0 0.0
        %1934 = vmatprep.subr.mxu0 0.0
        %1935 = vmatpush1.msra.mxu0 0.0
        %1936 = vmatprep.subr.mxu0 0.0
        %1937 = vmatpush1.msra.mxu0 0.0
        %1938 = vmatprep.subr.mxu0 0.0
        %1939 = vmatpush1.msra.mxu0 0.0
        %1940 = vmatprep.subr.mxu0 0.0
        %1941 = vmatpush1.msra.mxu0 0.0
        %1942 = vmatprep.subr.mxu0 0.0
        %1943 = vmatpush1.msra.mxu0 0.0
        %1944 = vmatprep.subr.mxu0 0.0
        %1945 = vmatpush1.msra.mxu0 0.0
        %1946 = vmatprep.subr.mxu0 0.0
        %1947 = vmatpush1.msra.mxu0 0.0
        %1948 = vmatprep.subr.mxu0 0.0
        %1949 = vmatpush1.msra.mxu0 0.0
        %1950 = vmatprep.subr.mxu0 0.0
        %1951 = vmatpush1.msra.mxu0 0.0
        %1952 = vmatprep.subr.mxu0 0.0
        %1953 = vmatpush1.msra.mxu0 0.0
        %1954 = vmatprep.subr.mxu0 0.0
        %1955 = vmatpush1.msra.mxu0 0.0
        %1956 = vmatprep.subr.mxu0 0.0
        %1957 = vmatpush1.msra.mxu0 0.0
        %1958 = vmatprep.subr.mxu0 0.0
        %1959 = vmatpush1.msra.mxu0 0.0
        %1960 = vmatprep.subr.mxu0 0.0
        %1961 = vmatpush1.msra.mxu0 0.0
        %1962 = vmatprep.mubr.f32.mxu0 0.0
        %1963 = vmatmul.mubr.f32.gmra.mrb[0].mxu0 %v1536
        %v1964 = vpop.f32.mrb[0].mxu0
        %v1965 = vadd.f32 %v1852, %v1964
        %v1966 = vpop.f32.mrb[0].mxu0
        %v1967 = vadd.f32 %v1854, %v1966
        %1968 = vmatprep.mubr.f32.mxu0 0.0
        %1969 = vmatmul.mubr.f32.gmra.mrb[0].mxu0 %v1539
        %v1970 = vpop.f32.mrb[0].mxu0
        %v1971 = vadd.f32 %v1858, %v1970
        %v1972 = vpop.f32.mrb[0].mxu0
        %v1973 = vadd.f32 %v1860, %v1972
        %1974 = vmatprep.mubr.f32.mxu0 0.0
        %1975 = vmatmul.mubr.f32.gmra.mrb[0].mxu0 %v1542
        %v1976 = vpop.f32.mrb[0].mxu0
        %v1977 = vadd.f32 %v1864, %v1976
        %v1978 = vpop.f32.mrb[0].mxu0
        %v1979 = vadd.f32 %v1866, %v1978
        %1980 = vmatprep.mubr.f32.mxu0 0.0
        %1981 = vmatmul.mubr.f32.gmra.mrb[0].mxu0 %v1545
        %v1982 = vpop.f32.mrb[0].mxu0
        %v1983 = vadd.f32 %v1870, %v1982
        %v1984 = vpop.f32.mrb[0].mxu0
        %v1985 = vadd.f32 %v1872, %v1984
        %1986 = vmatprep.mubr.f32.mxu0 0.0
        %1987 = vmatmul.mubr.f32.gmra.mrb[0].mxu0 %v1548
        %v1988 = vpop.f32.mrb[0].mxu0
        %v1989 = vadd.f32 %v1876, %v1988
        %v1990 = vpop.f32.mrb[0].mxu0
        %v1991 = vadd.f32 %v1878, %v1990
        %1992 = vmatprep.mubr.f32.mxu0 0.0
        %1993 = vmatmul.mubr.f32.gmra.mrb[0].mxu0 %v1551
        %v1994 = vpop.f32.mrb[0].mxu0
        %v1995 = vadd.f32 %v1882, %v1994
        %v1996 = vpop.f32.mrb[0].mxu0
        %v1997 = vadd.f32 %v1884, %v1996
        %1998 = vmatprep.mubr.f32.mxu0 0.0
        %1999 = vmatmul.mubr.f32.gmra.mrb[0].mxu0 %v1554
        %v2000 = vpop.f32.mrb[0].mxu0
        %v2001 = vadd.f32 %v1888, %v2000
        %v2002 = vpop.f32.mrb[0].mxu0
        %v2003 = vadd.f32 %v1890, %v2002
        %2004 = vmatprep.mubr.f32.mxu0 0.0
        %2005 = vmatmul.mubr.f32.gmra.mrb[0].mxu0 %v1557
        %v2006 = vpop.f32.mrb[0].mxu0
        %v2007 = vadd.f32 %v1894, %v2006
        %v2008 = vpop.f32.mrb[0].mxu0
        %v2009 = vadd.f32 %v1896, %v2008
        %2010 = vdwg.mxu0
        %v2011 = vmax.f32 %v1739, 0.0
        %v2012 = vmax.f32 %v1741, 0.0
        %v2013 = vmax.f32 %v1965, 0.0
        %v2014 = vmax.f32 %v1967, 0.0
        %v2015 = vmax.f32 %v1745, 0.0
        %v2016 = vmax.f32 %v1747, 0.0
        %v2017 = vmax.f32 %v1971, 0.0
        %v2018 = vmax.f32 %v1973, 0.0
        %v2019 = vmax.f32 %v1751, 0.0
        %v2020 = vmax.f32 %v1753, 0.0
        %v2021 = vmax.f32 %v1977, 0.0
        %v2022 = vmax.f32 %v1979, 0.0
        %v2023 = vmax.f32 %v1757, 0.0
        %v2024 = vmax.f32 %v1759, 0.0
        %v2025 = vmax.f32 %v1983, 0.0
        %v2026 = vmax.f32 %v1985, 0.0
        %v2027 = vmax.f32 %v1763, 0.0
        %v2028 = vmax.f32 %v1765, 0.0
        %v2029 = vmax.f32 %v1989, 0.0
        %v2030 = vmax.f32 %v1991, 0.0
        %v2031 = vmax.f32 %v1769, 0.0
        %v2032 = vmax.f32 %v1771, 0.0
        %v2033 = vmax.f32 %v1995, 0.0
        %v2034 = vmax.f32 %v1997, 0.0
        %v2035 = vmax.f32 %v1775, 0.0
        %v2036 = vmax.f32 %v1777, 0.0
        %v2037 = vmax.f32 %v2001, 0.0
        %v2038 = vmax.f32 %v2003, 0.0
        %v2039 = vmax.f32 %v1781, 0.0
        %v2040 = vmax.f32 %v1783, 0.0
        %v2041 = vmax.f32 %v2007, 0.0
        %v2042 = vmax.f32 %v2009, 0.0
        %2043 = vrot.lane.b32.xlu0 %v2011, 17
        %v2044 = vpop.permute.xlu0 %2043
        %2045 = vrot.lane.b32.xlu0 %v2015, 17
        %v2046 = vpop.permute.xlu0 %2045
        %2047 = vrot.lane.b32.xlu0 %v2019, 17
        %v2048 = vpop.permute.xlu0 %2047
        %2049 = vrot.lane.b32.xlu0 %v2023, 17
        %v2050 = vpop.permute.xlu0 %2049
        %2051 = vrot.lane.b32.xlu0 %v2027, 17
        %v2052 = vpop.permute.xlu0 %2051
        %2053 = vrot.lane.b32.xlu0 %v2031, 17
        %v2054 = vpop.permute.xlu0 %2053
        %2055 = vrot.lane.b32.xlu0 %v2035, 17
        %v2056 = vpop.permute.xlu0 %2055
        %2057 = vrot.lane.b32.xlu0 %v2039, 17
        %v2058 = vpop.permute.xlu0 %2057
        %2059 = vrot.lane.b32.xlu0 %v2012, 17
        %v2060 = vpop.permute.xlu0 %2059
        %2061 = vrot.lane.b32.xlu0 %v2016, 17
        %v2062 = vpop.permute.xlu0 %2061
        %2063 = vrot.lane.b32.xlu0 %v2020, 17
        %v2064 = vpop.permute.xlu0 %2063
        %2065 = vrot.lane.b32.xlu0 %v2024, 17
        %v2066 = vpop.permute.xlu0 %2065
        %2067 = vrot.lane.b32.xlu0 %v2028, 17
        %v2068 = vpop.permute.xlu0 %2067
        %2069 = vrot.lane.b32.xlu0 %v2032, 17
        %v2070 = vpop.permute.xlu0 %2069
        %2071 = vrot.lane.b32.xlu0 %v2036, 17
        %v2072 = vpop.permute.xlu0 %2071
        %2073 = vrot.lane.b32.xlu0 %v2040, 17
        %v2074 = vpop.permute.xlu0 %2073
        %2075 = vrot.lane.b32.xlu0 %v2013, 17
        %v2076 = vpop.permute.xlu0 %2075
        %2077 = vrot.lane.b32.xlu0 %v2017, 17
        %v2078 = vpop.permute.xlu0 %2077
        %2079 = vrot.lane.b32.xlu0 %v2021, 17
        %v2080 = vpop.permute.xlu0 %2079
        %2081 = vrot.lane.b32.xlu0 %v2025, 17
        %v2082 = vpop.permute.xlu0 %2081
        %2083 = vrot.lane.b32.xlu0 %v2029, 17
        %v2084 = vpop.permute.xlu0 %2083
        %2085 = vrot.lane.b32.xlu0 %v2033, 17
        %v2086 = vpop.permute.xlu0 %2085
        %2087 = vrot.lane.b32.xlu0 %v2037, 17
        %v2088 = vpop.permute.xlu0 %2087
        %2089 = vrot.lane.b32.xlu0 %v2041, 17
        %v2090 = vpop.permute.xlu0 %2089
        %2091 = vrot.lane.b32.xlu0 %v2014, 17
        %v2092 = vpop.permute.xlu0 %2091
        %2093 = vrot.lane.b32.xlu0 %v2018, 17
        %v2094 = vpop.permute.xlu0 %2093
        %2095 = vrot.lane.b32.xlu0 %v2022, 17
        %v2096 = vpop.permute.xlu0 %2095
        %2097 = vrot.lane.b32.xlu0 %v2026, 17
        %v2098 = vpop.permute.xlu0 %2097
        %2099 = vrot.lane.b32.xlu0 %v2030, 17
        %v2100 = vpop.permute.xlu0 %2099
        %2101 = vrot.lane.b32.xlu0 %v2034, 17
        %v2102 = vpop.permute.xlu0 %2101
        %2103 = vrot.lane.b32.xlu0 %v2038, 17
        %v2104 = vpop.permute.xlu0 %2103
        %2105 = vrot.lane.b32.xlu0 %v2042, 17
        %v2106 = vpop.permute.xlu0 %2105
        %v2107 = vsel %vm404, %v2076, %v2092
        %v2108 = vsel %vm404, %v2078, %v2094
        %v2109 = vsel %vm404, %v2080, %v2096
        %v2110 = vsel %vm404, %v2082, %v2098
        %v2111 = vsel %vm404, %v2084, %v2100
        %v2112 = vsel %vm404, %v2086, %v2102
        %v2113 = vsel %vm404, %v2088, %v2104
        %v2114 = vsel %vm404, %v2090, %v2106
        %v2115 = vsel %vm404, %v2060, %v2076
        %v2116 = vsel %vm404, %v2062, %v2078
        %v2117 = vsel %vm404, %v2064, %v2080
        %v2118 = vsel %vm404, %v2066, %v2082
        %v2119 = vsel %vm404, %v2068, %v2084
        %v2120 = vsel %vm404, %v2070, %v2086
        %v2121 = vsel %vm404, %v2072, %v2088
        %v2122 = vsel %vm404, %v2074, %v2090
        %v2123 = vsel %vm404, %v2044, %v2060
        %v2124 = vsel %vm404, %v2046, %v2062
        %v2125 = vsel %vm404, %v2048, %v2064
        %v2126 = vsel %vm404, %v2050, %v2066
        %v2127 = vsel %vm404, %v2052, %v2068
        %v2128 = vsel %vm404, %v2054, %v2070
        %v2129 = vsel %vm404, %v2056, %v2072
        %v2130 = vsel %vm404, %v2058, %v2074
        %v2131 = vsel %vm404, %v2092, %v2044
        %v2132 = vsel %vm404, %v2094, %v2046
        %v2133 = vsel %vm404, %v2096, %v2048
        %v2134 = vsel %vm404, %v2098, %v2050
        %v2135 = vsel %vm404, %v2100, %v2052
        %v2136 = vsel %vm404, %v2102, %v2054
        %v2137 = vsel %vm404, %v2104, %v2056
        %v2138 = vsel %vm404, %v2106, %v2058
        %v2139 = vmul.f32 %v2131, %v414
        %v2140 = vmul.f32 %v2123, %v418
        %v2141 = vmul.f32 %v2115, %v422
        %v2142 = vmul.f32 %v2107, %v426
        %v2143 = vmul.f32 %v2132, %v414
        %v2144 = vmul.f32 %v2124, %v418
        %v2145 = vmul.f32 %v2116, %v422
        %v2146 = vmul.f32 %v2108, %v426
        %v2147 = vmul.f32 %v2133, %v414
        %v2148 = vmul.f32 %v2125, %v418
        %v2149 = vmul.f32 %v2117, %v422
        %v2150 = vmul.f32 %v2109, %v426
        %v2151 = vmul.f32 %v2134, %v414
        %v2152 = vmul.f32 %v2126, %v418
        %v2153 = vmul.f32 %v2118, %v422
        %v2154 = vmul.f32 %v2110, %v426
        %v2155 = vmul.f32 %v2135, %v414
        %v2156 = vmul.f32 %v2127, %v418
        %v2157 = vmul.f32 %v2119, %v422
        %v2158 = vmul.f32 %v2111, %v426
        %v2159 = vmul.f32 %v2136, %v414
        %v2160 = vmul.f32 %v2128, %v418
        %v2161 = vmul.f32 %v2120, %v422
        %v2162 = vmul.f32 %v2112, %v426
        %v2163 = vmul.f32 %v2137, %v414
        %v2164 = vmul.f32 %v2129, %v418
        %v2165 = vmul.f32 %v2121, %v422
        %v2166 = vmul.f32 %v2113, %v426
        %v2167 = vmul.f32 %v2138, %v414
        %v2168 = vmul.f32 %v2130, %v418
        %v2169 = vmul.f32 %v2122, %v422
        %v2170 = vmul.f32 %v2114, %v426
        %2171 = vrot.lane.b32.xlu0 %v2011, 16
        %v2172 = vpop.permute.xlu0 %2171
        %2173 = vrot.lane.b32.xlu0 %v2015, 16
        %v2174 = vpop.permute.xlu0 %2173
        %2175 = vrot.lane.b32.xlu0 %v2019, 16
        %v2176 = vpop.permute.xlu0 %2175
        %2177 = vrot.lane.b32.xlu0 %v2023, 16
        %v2178 = vpop.permute.xlu0 %2177
        %2179 = vrot.lane.b32.xlu0 %v2027, 16
        %v2180 = vpop.permute.xlu0 %2179
        %2181 = vrot.lane.b32.xlu0 %v2031, 16
        %v2182 = vpop.permute.xlu0 %2181
        %2183 = vrot.lane.b32.xlu0 %v2035, 16
        %v2184 = vpop.permute.xlu0 %2183
        %2185 = vrot.lane.b32.xlu0 %v2039, 16
        %v2186 = vpop.permute.xlu0 %2185
        %2187 = vrot.lane.b32.xlu0 %v2012, 16
        %v2188 = vpop.permute.xlu0 %2187
        %2189 = vrot.lane.b32.xlu0 %v2016, 16
        %v2190 = vpop.permute.xlu0 %2189
        %2191 = vrot.lane.b32.xlu0 %v2020, 16
        %v2192 = vpop.permute.xlu0 %2191
        %2193 = vrot.lane.b32.xlu0 %v2024, 16
        %v2194 = vpop.permute.xlu0 %2193
        %2195 = vrot.lane.b32.xlu0 %v2028, 16
        %v2196 = vpop.permute.xlu0 %2195
        %2197 = vrot.lane.b32.xlu0 %v2032, 16
        %v2198 = vpop.permute.xlu0 %2197
        %2199 = vrot.lane.b32.xlu0 %v2036, 16
        %v2200 = vpop.permute.xlu0 %2199
        %2201 = vrot.lane.b32.xlu0 %v2040, 16
        %v2202 = vpop.permute.xlu0 %2201
        %2203 = vrot.lane.b32.xlu0 %v2013, 16
        %v2204 = vpop.permute.xlu0 %2203
        %2205 = vrot.lane.b32.xlu0 %v2017, 16
        %v2206 = vpop.permute.xlu0 %2205
        %2207 = vrot.lane.b32.xlu0 %v2021, 16
        %v2208 = vpop.permute.xlu0 %2207
        %2209 = vrot.lane.b32.xlu0 %v2025, 16
        %v2210 = vpop.permute.xlu0 %2209
        %2211 = vrot.lane.b32.xlu0 %v2029, 16
        %v2212 = vpop.permute.xlu0 %2211
        %2213 = vrot.lane.b32.xlu0 %v2033, 16
        %v2214 = vpop.permute.xlu0 %2213
        %2215 = vrot.lane.b32.xlu0 %v2037, 16
        %v2216 = vpop.permute.xlu0 %2215
        %2217 = vrot.lane.b32.xlu0 %v2041, 16
        %v2218 = vpop.permute.xlu0 %2217
        %2219 = vrot.lane.b32.xlu0 %v2014, 16
        %v2220 = vpop.permute.xlu0 %2219
        %2221 = vrot.lane.b32.xlu0 %v2018, 16
        %v2222 = vpop.permute.xlu0 %2221
        %2223 = vrot.lane.b32.xlu0 %v2022, 16
        %v2224 = vpop.permute.xlu0 %2223
        %2225 = vrot.lane.b32.xlu0 %v2026, 16
        %v2226 = vpop.permute.xlu0 %2225
        %2227 = vrot.lane.b32.xlu0 %v2030, 16
        %v2228 = vpop.permute.xlu0 %2227
        %2229 = vrot.lane.b32.xlu0 %v2034, 16
        %v2230 = vpop.permute.xlu0 %2229
        %2231 = vrot.lane.b32.xlu0 %v2038, 16
        %v2232 = vpop.permute.xlu0 %2231
        %2233 = vrot.lane.b32.xlu0 %v2042, 16
        %v2234 = vpop.permute.xlu0 %2233
        %v2235 = vsel %vm443, %v2204, %v2220
        %v2236 = vsel %vm443, %v2206, %v2222
        %v2237 = vsel %vm443, %v2208, %v2224
        %v2238 = vsel %vm443, %v2210, %v2226
        %v2239 = vsel %vm443, %v2212, %v2228
        %v2240 = vsel %vm443, %v2214, %v2230
        %v2241 = vsel %vm443, %v2216, %v2232
        %v2242 = vsel %vm443, %v2218, %v2234
        %v2243 = vsel %vm443, %v2188, %v2204
        %v2244 = vsel %vm443, %v2190, %v2206
        %v2245 = vsel %vm443, %v2192, %v2208
        %v2246 = vsel %vm443, %v2194, %v2210
        %v2247 = vsel %vm443, %v2196, %v2212
        %v2248 = vsel %vm443, %v2198, %v2214
        %v2249 = vsel %vm443, %v2200, %v2216
        %v2250 = vsel %vm443, %v2202, %v2218
        %v2251 = vsel %vm443, %v2172, %v2188
        %v2252 = vsel %vm443, %v2174, %v2190
        %v2253 = vsel %vm443, %v2176, %v2192
        %v2254 = vsel %vm443, %v2178, %v2194
        %v2255 = vsel %vm443, %v2180, %v2196
        %v2256 = vsel %vm443, %v2182, %v2198
        %v2257 = vsel %vm443, %v2184, %v2200
        %v2258 = vsel %vm443, %v2186, %v2202
        %v2259 = vsel %vm443, %v2220, %v2172
        %v2260 = vsel %vm443, %v2222, %v2174
        %v2261 = vsel %vm443, %v2224, %v2176
        %v2262 = vsel %vm443, %v2226, %v2178
        %v2263 = vsel %vm443, %v2228, %v2180
        %v2264 = vsel %vm443, %v2230, %v2182
        %v2265 = vsel %vm443, %v2232, %v2184
        %v2266 = vsel %vm443, %v2234, %v2186
        %v2267 = vmul.f32 %v2259, %v454
        %v2268 = vmul.f32 %v2251, %v458
        %v2269 = vmul.f32 %v2243, %v462
        %v2270 = vmul.f32 %v2235, %v466
        %v2271 = vmul.f32 %v2260, %v454
        %v2272 = vmul.f32 %v2252, %v458
        %v2273 = vmul.f32 %v2244, %v462
        %v2274 = vmul.f32 %v2236, %v466
        %v2275 = vmul.f32 %v2261, %v454
        %v2276 = vmul.f32 %v2253, %v458
        %v2277 = vmul.f32 %v2245, %v462
        %v2278 = vmul.f32 %v2237, %v466
        %v2279 = vmul.f32 %v2262, %v454
        %v2280 = vmul.f32 %v2254, %v458
        %v2281 = vmul.f32 %v2246, %v462
        %v2282 = vmul.f32 %v2238, %v466
        %v2283 = vmul.f32 %v2263, %v454
        %v2284 = vmul.f32 %v2255, %v458
        %v2285 = vmul.f32 %v2247, %v462
        %v2286 = vmul.f32 %v2239, %v466
        %v2287 = vmul.f32 %v2264, %v454
        %v2288 = vmul.f32 %v2256, %v458
        %v2289 = vmul.f32 %v2248, %v462
        %v2290 = vmul.f32 %v2240, %v466
        %v2291 = vmul.f32 %v2265, %v454
        %v2292 = vmul.f32 %v2257, %v458
        %v2293 = vmul.f32 %v2249, %v462
        %v2294 = vmul.f32 %v2241, %v466
        %v2295 = vmul.f32 %v2266, %v454
        %v2296 = vmul.f32 %v2258, %v458
        %v2297 = vmul.f32 %v2250, %v462
        %v2298 = vmul.f32 %v2242, %v466
        %2299 = vrot.lane.b32.xlu0 %v2011, 15
        %v2300 = vpop.permute.xlu0 %2299
        %2301 = vrot.lane.b32.xlu0 %v2015, 15
        %v2302 = vpop.permute.xlu0 %2301
        %2303 = vrot.lane.b32.xlu0 %v2019, 15
        %v2304 = vpop.permute.xlu0 %2303
        %2305 = vrot.lane.b32.xlu0 %v2023, 15
        %v2306 = vpop.permute.xlu0 %2305
        %2307 = vrot.lane.b32.xlu0 %v2027, 15
        %v2308 = vpop.permute.xlu0 %2307
        %2309 = vrot.lane.b32.xlu0 %v2031, 15
        %v2310 = vpop.permute.xlu0 %2309
        %2311 = vrot.lane.b32.xlu0 %v2035, 15
        %v2312 = vpop.permute.xlu0 %2311
        %2313 = vrot.lane.b32.xlu0 %v2039, 15
        %v2314 = vpop.permute.xlu0 %2313
        %2315 = vrot.lane.b32.xlu0 %v2012, 15
        %v2316 = vpop.permute.xlu0 %2315
        %2317 = vrot.lane.b32.xlu0 %v2016, 15
        %v2318 = vpop.permute.xlu0 %2317
        %2319 = vrot.lane.b32.xlu0 %v2020, 15
        %v2320 = vpop.permute.xlu0 %2319
        %2321 = vrot.lane.b32.xlu0 %v2024, 15
        %v2322 = vpop.permute.xlu0 %2321
        %2323 = vrot.lane.b32.xlu0 %v2028, 15
        %v2324 = vpop.permute.xlu0 %2323
        %2325 = vrot.lane.b32.xlu0 %v2032, 15
        %v2326 = vpop.permute.xlu0 %2325
        %2327 = vrot.lane.b32.xlu0 %v2036, 15
        %v2328 = vpop.permute.xlu0 %2327
        %2329 = vrot.lane.b32.xlu0 %v2040, 15
        %v2330 = vpop.permute.xlu0 %2329
        %2331 = vrot.lane.b32.xlu0 %v2013, 15
        %v2332 = vpop.permute.xlu0 %2331
        %2333 = vrot.lane.b32.xlu0 %v2017, 15
        %v2334 = vpop.permute.xlu0 %2333
        %2335 = vrot.lane.b32.xlu0 %v2021, 15
        %v2336 = vpop.permute.xlu0 %2335
        %2337 = vrot.lane.b32.xlu0 %v2025, 15
        %v2338 = vpop.permute.xlu0 %2337
        %2339 = vrot.lane.b32.xlu0 %v2029, 15
        %v2340 = vpop.permute.xlu0 %2339
        %2341 = vrot.lane.b32.xlu0 %v2033, 15
        %v2342 = vpop.permute.xlu0 %2341
        %2343 = vrot.lane.b32.xlu0 %v2037, 15
        %v2344 = vpop.permute.xlu0 %2343
        %2345 = vrot.lane.b32.xlu0 %v2041, 15
        %v2346 = vpop.permute.xlu0 %2345
        %2347 = vrot.lane.b32.xlu0 %v2014, 15
        %v2348 = vpop.permute.xlu0 %2347
        %2349 = vrot.lane.b32.xlu0 %v2018, 15
        %v2350 = vpop.permute.xlu0 %2349
        %2351 = vrot.lane.b32.xlu0 %v2022, 15
        %v2352 = vpop.permute.xlu0 %2351
        %2353 = vrot.lane.b32.xlu0 %v2026, 15
        %v2354 = vpop.permute.xlu0 %2353
        %2355 = vrot.lane.b32.xlu0 %v2030, 15
        %v2356 = vpop.permute.xlu0 %2355
        %2357 = vrot.lane.b32.xlu0 %v2034, 15
        %v2358 = vpop.permute.xlu0 %2357
        %2359 = vrot.lane.b32.xlu0 %v2038, 15
        %v2360 = vpop.permute.xlu0 %2359
        %2361 = vrot.lane.b32.xlu0 %v2042, 15
        %v2362 = vpop.permute.xlu0 %2361
        %v2363 = vsel %vm483, %v2332, %v2348
        %v2364 = vsel %vm483, %v2334, %v2350
        %v2365 = vsel %vm483, %v2336, %v2352
        %v2366 = vsel %vm483, %v2338, %v2354
        %v2367 = vsel %vm483, %v2340, %v2356
        %v2368 = vsel %vm483, %v2342, %v2358
        %v2369 = vsel %vm483, %v2344, %v2360
        %v2370 = vsel %vm483, %v2346, %v2362
        %v2371 = vsel %vm483, %v2316, %v2332
        %v2372 = vsel %vm483, %v2318, %v2334
        %v2373 = vsel %vm483, %v2320, %v2336
        %v2374 = vsel %vm483, %v2322, %v2338
        %v2375 = vsel %vm483, %v2324, %v2340
        %v2376 = vsel %vm483, %v2326, %v2342
        %v2377 = vsel %vm483, %v2328, %v2344
        %v2378 = vsel %vm483, %v2330, %v2346
        %v2379 = vsel %vm483, %v2300, %v2316
        %v2380 = vsel %vm483, %v2302, %v2318
        %v2381 = vsel %vm483, %v2304, %v2320
        %v2382 = vsel %vm483, %v2306, %v2322
        %v2383 = vsel %vm483, %v2308, %v2324
        %v2384 = vsel %vm483, %v2310, %v2326
        %v2385 = vsel %vm483, %v2312, %v2328
        %v2386 = vsel %vm483, %v2314, %v2330
        %v2387 = vsel %vm483, %v2348, %v2300
        %v2388 = vsel %vm483, %v2350, %v2302
        %v2389 = vsel %vm483, %v2352, %v2304
        %v2390 = vsel %vm483, %v2354, %v2306
        %v2391 = vsel %vm483, %v2356, %v2308
        %v2392 = vsel %vm483, %v2358, %v2310
        %v2393 = vsel %vm483, %v2360, %v2312
        %v2394 = vsel %vm483, %v2362, %v2314
        %v2395 = vmul.f32 %v2387, %v494
        %v2396 = vmul.f32 %v2379, %v498
        %v2397 = vmul.f32 %v2371, %v502
        %v2398 = vmul.f32 %v2363, %v506
        %v2399 = vmul.f32 %v2388, %v494
        %v2400 = vmul.f32 %v2380, %v498
        %v2401 = vmul.f32 %v2372, %v502
        %v2402 = vmul.f32 %v2364, %v506
        %v2403 = vmul.f32 %v2389, %v494
        %v2404 = vmul.f32 %v2381, %v498
        %v2405 = vmul.f32 %v2373, %v502
        %v2406 = vmul.f32 %v2365, %v506
        %v2407 = vmul.f32 %v2390, %v494
        %v2408 = vmul.f32 %v2382, %v498
        %v2409 = vmul.f32 %v2374, %v502
        %v2410 = vmul.f32 %v2366, %v506
        %v2411 = vmul.f32 %v2391, %v494
        %v2412 = vmul.f32 %v2383, %v498
        %v2413 = vmul.f32 %v2375, %v502
        %v2414 = vmul.f32 %v2367, %v506
        %v2415 = vmul.f32 %v2392, %v494
        %v2416 = vmul.f32 %v2384, %v498
        %v2417 = vmul.f32 %v2376, %v502
        %v2418 = vmul.f32 %v2368, %v506
        %v2419 = vmul.f32 %v2393, %v494
        %v2420 = vmul.f32 %v2385, %v498
        %v2421 = vmul.f32 %v2377, %v502
        %v2422 = vmul.f32 %v2369, %v506
        %v2423 = vmul.f32 %v2394, %v494
        %v2424 = vmul.f32 %v2386, %v498
        %v2425 = vmul.f32 %v2378, %v502
        %v2426 = vmul.f32 %v2370, %v506
        %2427 = vrot.lane.b32.xlu0 %v2011, 1
        %v2428 = vpop.permute.xlu0 %2427
        %2429 = vrot.lane.b32.xlu0 %v2015, 1
        %v2430 = vpop.permute.xlu0 %2429
        %2431 = vrot.lane.b32.xlu0 %v2019, 1
        %v2432 = vpop.permute.xlu0 %2431
        %2433 = vrot.lane.b32.xlu0 %v2023, 1
        %v2434 = vpop.permute.xlu0 %2433
        %2435 = vrot.lane.b32.xlu0 %v2027, 1
        %v2436 = vpop.permute.xlu0 %2435
        %2437 = vrot.lane.b32.xlu0 %v2031, 1
        %v2438 = vpop.permute.xlu0 %2437
        %2439 = vrot.lane.b32.xlu0 %v2035, 1
        %v2440 = vpop.permute.xlu0 %2439
        %2441 = vrot.lane.b32.xlu0 %v2039, 1
        %v2442 = vpop.permute.xlu0 %2441
        %2443 = vrot.lane.b32.xlu0 %v2012, 1
        %v2444 = vpop.permute.xlu0 %2443
        %2445 = vrot.lane.b32.xlu0 %v2016, 1
        %v2446 = vpop.permute.xlu0 %2445
        %2447 = vrot.lane.b32.xlu0 %v2020, 1
        %v2448 = vpop.permute.xlu0 %2447
        %2449 = vrot.lane.b32.xlu0 %v2024, 1
        %v2450 = vpop.permute.xlu0 %2449
        %2451 = vrot.lane.b32.xlu0 %v2028, 1
        %v2452 = vpop.permute.xlu0 %2451
        %2453 = vrot.lane.b32.xlu0 %v2032, 1
        %v2454 = vpop.permute.xlu0 %2453
        %2455 = vrot.lane.b32.xlu0 %v2036, 1
        %v2456 = vpop.permute.xlu0 %2455
        %2457 = vrot.lane.b32.xlu0 %v2040, 1
        %v2458 = vpop.permute.xlu0 %2457
        %2459 = vrot.lane.b32.xlu0 %v2013, 1
        %v2460 = vpop.permute.xlu0 %2459
        %2461 = vrot.lane.b32.xlu0 %v2017, 1
        %v2462 = vpop.permute.xlu0 %2461
        %2463 = vrot.lane.b32.xlu0 %v2021, 1
        %v2464 = vpop.permute.xlu0 %2463
        %2465 = vrot.lane.b32.xlu0 %v2025, 1
        %v2466 = vpop.permute.xlu0 %2465
        %2467 = vrot.lane.b32.xlu0 %v2029, 1
        %v2468 = vpop.permute.xlu0 %2467
        %2469 = vrot.lane.b32.xlu0 %v2033, 1
        %v2470 = vpop.permute.xlu0 %2469
        %2471 = vrot.lane.b32.xlu0 %v2037, 1
        %v2472 = vpop.permute.xlu0 %2471
        %2473 = vrot.lane.b32.xlu0 %v2041, 1
        %v2474 = vpop.permute.xlu0 %2473
        %2475 = vrot.lane.b32.xlu0 %v2014, 1
        %v2476 = vpop.permute.xlu0 %2475
        %2477 = vrot.lane.b32.xlu0 %v2018, 1
        %v2478 = vpop.permute.xlu0 %2477
        %2479 = vrot.lane.b32.xlu0 %v2022, 1
        %v2480 = vpop.permute.xlu0 %2479
        %2481 = vrot.lane.b32.xlu0 %v2026, 1
        %v2482 = vpop.permute.xlu0 %2481
        %2483 = vrot.lane.b32.xlu0 %v2030, 1
        %v2484 = vpop.permute.xlu0 %2483
        %2485 = vrot.lane.b32.xlu0 %v2034, 1
        %v2486 = vpop.permute.xlu0 %2485
        %2487 = vrot.lane.b32.xlu0 %v2038, 1
        %v2488 = vpop.permute.xlu0 %2487
        %2489 = vrot.lane.b32.xlu0 %v2042, 1
        %v2490 = vpop.permute.xlu0 %2489
        %v2491 = vsel %vm523, %v2460, %v2476
        %v2492 = vsel %vm523, %v2462, %v2478
        %v2493 = vsel %vm523, %v2464, %v2480
        %v2494 = vsel %vm523, %v2466, %v2482
        %v2495 = vsel %vm523, %v2468, %v2484
        %v2496 = vsel %vm523, %v2470, %v2486
        %v2497 = vsel %vm523, %v2472, %v2488
        %v2498 = vsel %vm523, %v2474, %v2490
        %v2499 = vsel %vm523, %v2444, %v2460
        %v2500 = vsel %vm523, %v2446, %v2462
        %v2501 = vsel %vm523, %v2448, %v2464
        %v2502 = vsel %vm523, %v2450, %v2466
        %v2503 = vsel %vm523, %v2452, %v2468
        %v2504 = vsel %vm523, %v2454, %v2470
        %v2505 = vsel %vm523, %v2456, %v2472
        %v2506 = vsel %vm523, %v2458, %v2474
        %v2507 = vsel %vm523, %v2428, %v2444
        %v2508 = vsel %vm523, %v2430, %v2446
        %v2509 = vsel %vm523, %v2432, %v2448
        %v2510 = vsel %vm523, %v2434, %v2450
        %v2511 = vsel %vm523, %v2436, %v2452
        %v2512 = vsel %vm523, %v2438, %v2454
        %v2513 = vsel %vm523, %v2440, %v2456
        %v2514 = vsel %vm523, %v2442, %v2458
        %v2515 = vsel %vm523, %v2476, %v2428
        %v2516 = vsel %vm523, %v2478, %v2430
        %v2517 = vsel %vm523, %v2480, %v2432
        %v2518 = vsel %vm523, %v2482, %v2434
        %v2519 = vsel %vm523, %v2484, %v2436
        %v2520 = vsel %vm523, %v2486, %v2438
        %v2521 = vsel %vm523, %v2488, %v2440
        %v2522 = vsel %vm523, %v2490, %v2442
        %v2523 = vmul.f32 %v2515, %v534
        %v2524 = vmul.f32 %v2507, %v538
        %v2525 = vmul.f32 %v2499, %v542
        %v2526 = vmul.f32 %v2491, %v546
        %v2527 = vmul.f32 %v2516, %v534
        %v2528 = vmul.f32 %v2508, %v538
        %v2529 = vmul.f32 %v2500, %v542
        %v2530 = vmul.f32 %v2492, %v546
        %v2531 = vmul.f32 %v2517, %v534
        %v2532 = vmul.f32 %v2509, %v538
        %v2533 = vmul.f32 %v2501, %v542
        %v2534 = vmul.f32 %v2493, %v546
        %v2535 = vmul.f32 %v2518, %v534
        %v2536 = vmul.f32 %v2510, %v538
        %v2537 = vmul.f32 %v2502, %v542
        %v2538 = vmul.f32 %v2494, %v546
        %v2539 = vmul.f32 %v2519, %v534
        %v2540 = vmul.f32 %v2511, %v538
        %v2541 = vmul.f32 %v2503, %v542
        %v2542 = vmul.f32 %v2495, %v546
        %v2543 = vmul.f32 %v2520, %v534
        %v2544 = vmul.f32 %v2512, %v538
        %v2545 = vmul.f32 %v2504, %v542
        %v2546 = vmul.f32 %v2496, %v546
        %v2547 = vmul.f32 %v2521, %v534
        %v2548 = vmul.f32 %v2513, %v538
        %v2549 = vmul.f32 %v2505, %v542
        %v2550 = vmul.f32 %v2497, %v546
        %v2551 = vmul.f32 %v2522, %v534
        %v2552 = vmul.f32 %v2514, %v538
        %v2553 = vmul.f32 %v2506, %v542
        %v2554 = vmul.f32 %v2498, %v546
        %2555 = vrot.lane.b32.xlu0 %v2011, 127
        %v2556 = vpop.permute.xlu0 %2555
        %2557 = vrot.lane.b32.xlu0 %v2015, 127
        %v2558 = vpop.permute.xlu0 %2557
        %2559 = vrot.lane.b32.xlu0 %v2019, 127
        %v2560 = vpop.permute.xlu0 %2559
        %2561 = vrot.lane.b32.xlu0 %v2023, 127
        %v2562 = vpop.permute.xlu0 %2561
        %2563 = vrot.lane.b32.xlu0 %v2027, 127
        %v2564 = vpop.permute.xlu0 %2563
        %2565 = vrot.lane.b32.xlu0 %v2031, 127
        %v2566 = vpop.permute.xlu0 %2565
        %2567 = vrot.lane.b32.xlu0 %v2035, 127
        %v2568 = vpop.permute.xlu0 %2567
        %2569 = vrot.lane.b32.xlu0 %v2039, 127
        %v2570 = vpop.permute.xlu0 %2569
        %2571 = vrot.lane.b32.xlu0 %v2012, 127
        %v2572 = vpop.permute.xlu0 %2571
        %2573 = vrot.lane.b32.xlu0 %v2016, 127
        %v2574 = vpop.permute.xlu0 %2573
        %2575 = vrot.lane.b32.xlu0 %v2020, 127
        %v2576 = vpop.permute.xlu0 %2575
        %2577 = vrot.lane.b32.xlu0 %v2024, 127
        %v2578 = vpop.permute.xlu0 %2577
        %2579 = vrot.lane.b32.xlu0 %v2028, 127
        %v2580 = vpop.permute.xlu0 %2579
        %2581 = vrot.lane.b32.xlu0 %v2032, 127
        %v2582 = vpop.permute.xlu0 %2581
        %2583 = vrot.lane.b32.xlu0 %v2036, 127
        %v2584 = vpop.permute.xlu0 %2583
        %2585 = vrot.lane.b32.xlu0 %v2040, 127
        %v2586 = vpop.permute.xlu0 %2585
        %2587 = vrot.lane.b32.xlu0 %v2013, 127
        %v2588 = vpop.permute.xlu0 %2587
        %2589 = vrot.lane.b32.xlu0 %v2017, 127
        %v2590 = vpop.permute.xlu0 %2589
        %2591 = vrot.lane.b32.xlu0 %v2021, 127
        %v2592 = vpop.permute.xlu0 %2591
        %2593 = vrot.lane.b32.xlu0 %v2025, 127
        %v2594 = vpop.permute.xlu0 %2593
        %2595 = vrot.lane.b32.xlu0 %v2029, 127
        %v2596 = vpop.permute.xlu0 %2595
        %2597 = vrot.lane.b32.xlu0 %v2033, 127
        %v2598 = vpop.permute.xlu0 %2597
        %2599 = vrot.lane.b32.xlu0 %v2037, 127
        %v2600 = vpop.permute.xlu0 %2599
        %2601 = vrot.lane.b32.xlu0 %v2041, 127
        %v2602 = vpop.permute.xlu0 %2601
        %2603 = vrot.lane.b32.xlu0 %v2014, 127
        %v2604 = vpop.permute.xlu0 %2603
        %2605 = vrot.lane.b32.xlu0 %v2018, 127
        %v2606 = vpop.permute.xlu0 %2605
        %2607 = vrot.lane.b32.xlu0 %v2022, 127
        %v2608 = vpop.permute.xlu0 %2607
        %2609 = vrot.lane.b32.xlu0 %v2026, 127
        %v2610 = vpop.permute.xlu0 %2609
        %2611 = vrot.lane.b32.xlu0 %v2030, 127
        %v2612 = vpop.permute.xlu0 %2611
        %2613 = vrot.lane.b32.xlu0 %v2034, 127
        %v2614 = vpop.permute.xlu0 %2613
        %2615 = vrot.lane.b32.xlu0 %v2038, 127
        %v2616 = vpop.permute.xlu0 %2615
        %2617 = vrot.lane.b32.xlu0 %v2042, 127
        %v2618 = vpop.permute.xlu0 %2617
        %v2619 = vsel %vm563, %v2588, %v2604
        %v2620 = vsel %vm563, %v2590, %v2606
        %v2621 = vsel %vm563, %v2592, %v2608
        %v2622 = vsel %vm563, %v2594, %v2610
        %v2623 = vsel %vm563, %v2596, %v2612
        %v2624 = vsel %vm563, %v2598, %v2614
        %v2625 = vsel %vm563, %v2600, %v2616
        %v2626 = vsel %vm563, %v2602, %v2618
        %v2627 = vsel %vm563, %v2572, %v2588
        %v2628 = vsel %vm563, %v2574, %v2590
        %v2629 = vsel %vm563, %v2576, %v2592
        %v2630 = vsel %vm563, %v2578, %v2594
        %v2631 = vsel %vm563, %v2580, %v2596
        %v2632 = vsel %vm563, %v2582, %v2598
        %v2633 = vsel %vm563, %v2584, %v2600
        %v2634 = vsel %vm563, %v2586, %v2602
        %v2635 = vsel %vm563, %v2556, %v2572
        %v2636 = vsel %vm563, %v2558, %v2574
        %v2637 = vsel %vm563, %v2560, %v2576
        %v2638 = vsel %vm563, %v2562, %v2578
        %v2639 = vsel %vm563, %v2564, %v2580
        %v2640 = vsel %vm563, %v2566, %v2582
        %v2641 = vsel %vm563, %v2568, %v2584
        %v2642 = vsel %vm563, %v2570, %v2586
        %v2643 = vsel %vm563, %v2604, %v2556
        %v2644 = vsel %vm563, %v2606, %v2558
        %v2645 = vsel %vm563, %v2608, %v2560
        %v2646 = vsel %vm563, %v2610, %v2562
        %v2647 = vsel %vm563, %v2612, %v2564
        %v2648 = vsel %vm563, %v2614, %v2566
        %v2649 = vsel %vm563, %v2616, %v2568
        %v2650 = vsel %vm563, %v2618, %v2570
        %v2651 = vmul.f32 %v2635, %v574
        %v2652 = vmul.f32 %v2627, %v578
        %v2653 = vmul.f32 %v2619, %v582
        %v2654 = vmul.f32 %v2643, %v586
        %v2655 = vmul.f32 %v2636, %v574
        %v2656 = vmul.f32 %v2628, %v578
        %v2657 = vmul.f32 %v2620, %v582
        %v2658 = vmul.f32 %v2644, %v586
        %v2659 = vmul.f32 %v2637, %v574
        %v2660 = vmul.f32 %v2629, %v578
        %v2661 = vmul.f32 %v2621, %v582
        %v2662 = vmul.f32 %v2645, %v586
        %v2663 = vmul.f32 %v2638, %v574
        %v2664 = vmul.f32 %v2630, %v578
        %v2665 = vmul.f32 %v2622, %v582
        %v2666 = vmul.f32 %v2646, %v586
        %v2667 = vmul.f32 %v2639, %v574
        %v2668 = vmul.f32 %v2631, %v578
        %v2669 = vmul.f32 %v2623, %v582
        %v2670 = vmul.f32 %v2647, %v586
        %v2671 = vmul.f32 %v2640, %v574
        %v2672 = vmul.f32 %v2632, %v578
        %v2673 = vmul.f32 %v2624, %v582
        %v2674 = vmul.f32 %v2648, %v586
        %v2675 = vmul.f32 %v2641, %v574
        %v2676 = vmul.f32 %v2633, %v578
        %v2677 = vmul.f32 %v2625, %v582
        %v2678 = vmul.f32 %v2649, %v586
        %v2679 = vmul.f32 %v2642, %v574
        %v2680 = vmul.f32 %v2634, %v578
        %v2681 = vmul.f32 %v2626, %v582
        %v2682 = vmul.f32 %v2650, %v586
        %2683 = vrot.lane.b32.xlu0 %v2011, 113
        %v2684 = vpop.permute.xlu0 %2683
        %2685 = vrot.lane.b32.xlu0 %v2015, 113
        %v2686 = vpop.permute.xlu0 %2685
        %2687 = vrot.lane.b32.xlu0 %v2019, 113
        %v2688 = vpop.permute.xlu0 %2687
        %2689 = vrot.lane.b32.xlu0 %v2023, 113
        %v2690 = vpop.permute.xlu0 %2689
        %2691 = vrot.lane.b32.xlu0 %v2027, 113
        %v2692 = vpop.permute.xlu0 %2691
        %2693 = vrot.lane.b32.xlu0 %v2031, 113
        %v2694 = vpop.permute.xlu0 %2693
        %2695 = vrot.lane.b32.xlu0 %v2035, 113
        %v2696 = vpop.permute.xlu0 %2695
        %2697 = vrot.lane.b32.xlu0 %v2039, 113
        %v2698 = vpop.permute.xlu0 %2697
        %2699 = vrot.lane.b32.xlu0 %v2012, 113
        %v2700 = vpop.permute.xlu0 %2699
        %2701 = vrot.lane.b32.xlu0 %v2016, 113
        %v2702 = vpop.permute.xlu0 %2701
        %2703 = vrot.lane.b32.xlu0 %v2020, 113
        %v2704 = vpop.permute.xlu0 %2703
        %2705 = vrot.lane.b32.xlu0 %v2024, 113
        %v2706 = vpop.permute.xlu0 %2705
        %2707 = vrot.lane.b32.xlu0 %v2028, 113
        %v2708 = vpop.permute.xlu0 %2707
        %2709 = vrot.lane.b32.xlu0 %v2032, 113
        %v2710 = vpop.permute.xlu0 %2709
        %2711 = vrot.lane.b32.xlu0 %v2036, 113
        %v2712 = vpop.permute.xlu0 %2711
        %2713 = vrot.lane.b32.xlu0 %v2040, 113
        %v2714 = vpop.permute.xlu0 %2713
        %2715 = vrot.lane.b32.xlu0 %v2013, 113
        %v2716 = vpop.permute.xlu0 %2715
        %2717 = vrot.lane.b32.xlu0 %v2017, 113
        %v2718 = vpop.permute.xlu0 %2717
        %2719 = vrot.lane.b32.xlu0 %v2021, 113
        %v2720 = vpop.permute.xlu0 %2719
        %2721 = vrot.lane.b32.xlu0 %v2025, 113
        %v2722 = vpop.permute.xlu0 %2721
        %2723 = vrot.lane.b32.xlu0 %v2029, 113
        %v2724 = vpop.permute.xlu0 %2723
        %2725 = vrot.lane.b32.xlu0 %v2033, 113
        %v2726 = vpop.permute.xlu0 %2725
        %2727 = vrot.lane.b32.xlu0 %v2037, 113
        %v2728 = vpop.permute.xlu0 %2727
        %2729 = vrot.lane.b32.xlu0 %v2041, 113
        %v2730 = vpop.permute.xlu0 %2729
        %2731 = vrot.lane.b32.xlu0 %v2014, 113
        %v2732 = vpop.permute.xlu0 %2731
        %2733 = vrot.lane.b32.xlu0 %v2018, 113
        %v2734 = vpop.permute.xlu0 %2733
        %2735 = vrot.lane.b32.xlu0 %v2022, 113
        %v2736 = vpop.permute.xlu0 %2735
        %2737 = vrot.lane.b32.xlu0 %v2026, 113
        %v2738 = vpop.permute.xlu0 %2737
        %2739 = vrot.lane.b32.xlu0 %v2030, 113
        %v2740 = vpop.permute.xlu0 %2739
        %2741 = vrot.lane.b32.xlu0 %v2034, 113
        %v2742 = vpop.permute.xlu0 %2741
        %2743 = vrot.lane.b32.xlu0 %v2038, 113
        %v2744 = vpop.permute.xlu0 %2743
        %2745 = vrot.lane.b32.xlu0 %v2042, 113
        %v2746 = vpop.permute.xlu0 %2745
        %v2747 = vsel %vm603, %v2716, %v2732
        %v2748 = vsel %vm603, %v2718, %v2734
        %v2749 = vsel %vm603, %v2720, %v2736
        %v2750 = vsel %vm603, %v2722, %v2738
        %v2751 = vsel %vm603, %v2724, %v2740
        %v2752 = vsel %vm603, %v2726, %v2742
        %v2753 = vsel %vm603, %v2728, %v2744
        %v2754 = vsel %vm603, %v2730, %v2746
        %v2755 = vsel %vm603, %v2700, %v2716
        %v2756 = vsel %vm603, %v2702, %v2718
        %v2757 = vsel %vm603, %v2704, %v2720
        %v2758 = vsel %vm603, %v2706, %v2722
        %v2759 = vsel %vm603, %v2708, %v2724
        %v2760 = vsel %vm603, %v2710, %v2726
        %v2761 = vsel %vm603, %v2712, %v2728
        %v2762 = vsel %vm603, %v2714, %v2730
        %v2763 = vsel %vm603, %v2684, %v2700
        %v2764 = vsel %vm603, %v2686, %v2702
        %v2765 = vsel %vm603, %v2688, %v2704
        %v2766 = vsel %vm603, %v2690, %v2706
        %v2767 = vsel %vm603, %v2692, %v2708
        %v2768 = vsel %vm603, %v2694, %v2710
        %v2769 = vsel %vm603, %v2696, %v2712
        %v2770 = vsel %vm603, %v2698, %v2714
        %v2771 = vsel %vm603, %v2732, %v2684
        %v2772 = vsel %vm603, %v2734, %v2686
        %v2773 = vsel %vm603, %v2736, %v2688
        %v2774 = vsel %vm603, %v2738, %v2690
        %v2775 = vsel %vm603, %v2740, %v2692
        %v2776 = vsel %vm603, %v2742, %v2694
        %v2777 = vsel %vm603, %v2744, %v2696
        %v2778 = vsel %vm603, %v2746, %v2698
        %v2779 = vmul.f32 %v2763, %v614
        %v2780 = vmul.f32 %v2755, %v618
        %v2781 = vmul.f32 %v2747, %v622
        %v2782 = vmul.f32 %v2771, %v626
        %v2783 = vmul.f32 %v2764, %v614
        %v2784 = vmul.f32 %v2756, %v618
        %v2785 = vmul.f32 %v2748, %v622
        %v2786 = vmul.f32 %v2772, %v626
        %v2787 = vmul.f32 %v2765, %v614
        %v2788 = vmul.f32 %v2757, %v618
        %v2789 = vmul.f32 %v2749, %v622
        %v2790 = vmul.f32 %v2773, %v626
        %v2791 = vmul.f32 %v2766, %v614
        %v2792 = vmul.f32 %v2758, %v618
        %v2793 = vmul.f32 %v2750, %v622
        %v2794 = vmul.f32 %v2774, %v626
        %v2795 = vmul.f32 %v2767, %v614
        %v2796 = vmul.f32 %v2759, %v618
        %v2797 = vmul.f32 %v2751, %v622
        %v2798 = vmul.f32 %v2775, %v626
        %v2799 = vmul.f32 %v2768, %v614
        %v2800 = vmul.f32 %v2760, %v618
        %v2801 = vmul.f32 %v2752, %v622
        %v2802 = vmul.f32 %v2776, %v626
        %v2803 = vmul.f32 %v2769, %v614
        %v2804 = vmul.f32 %v2761, %v618
        %v2805 = vmul.f32 %v2753, %v622
        %v2806 = vmul.f32 %v2777, %v626
        %v2807 = vmul.f32 %v2770, %v614
        %v2808 = vmul.f32 %v2762, %v618
        %v2809 = vmul.f32 %v2754, %v622
        %v2810 = vmul.f32 %v2778, %v626
        %2811 = vrot.lane.b32.xlu0 %v2011, 112
        %v2812 = vpop.permute.xlu0 %2811
        %2813 = vrot.lane.b32.xlu0 %v2015, 112
        %v2814 = vpop.permute.xlu0 %2813
        %2815 = vrot.lane.b32.xlu0 %v2019, 112
        %v2816 = vpop.permute.xlu0 %2815
        %2817 = vrot.lane.b32.xlu0 %v2023, 112
        %v2818 = vpop.permute.xlu0 %2817
        %2819 = vrot.lane.b32.xlu0 %v2027, 112
        %v2820 = vpop.permute.xlu0 %2819
        %2821 = vrot.lane.b32.xlu0 %v2031, 112
        %v2822 = vpop.permute.xlu0 %2821
        %2823 = vrot.lane.b32.xlu0 %v2035, 112
        %v2824 = vpop.permute.xlu0 %2823
        %2825 = vrot.lane.b32.xlu0 %v2039, 112
        %v2826 = vpop.permute.xlu0 %2825
        %2827 = vrot.lane.b32.xlu0 %v2012, 112
        %v2828 = vpop.permute.xlu0 %2827
        %2829 = vrot.lane.b32.xlu0 %v2016, 112
        %v2830 = vpop.permute.xlu0 %2829
        %2831 = vrot.lane.b32.xlu0 %v2020, 112
        %v2832 = vpop.permute.xlu0 %2831
        %2833 = vrot.lane.b32.xlu0 %v2024, 112
        %v2834 = vpop.permute.xlu0 %2833
        %2835 = vrot.lane.b32.xlu0 %v2028, 112
        %v2836 = vpop.permute.xlu0 %2835
        %2837 = vrot.lane.b32.xlu0 %v2032, 112
        %v2838 = vpop.permute.xlu0 %2837
        %2839 = vrot.lane.b32.xlu0 %v2036, 112
        %v2840 = vpop.permute.xlu0 %2839
        %2841 = vrot.lane.b32.xlu0 %v2040, 112
        %v2842 = vpop.permute.xlu0 %2841
        %2843 = vrot.lane.b32.xlu0 %v2013, 112
        %v2844 = vpop.permute.xlu0 %2843
        %2845 = vrot.lane.b32.xlu0 %v2017, 112
        %v2846 = vpop.permute.xlu0 %2845
        %2847 = vrot.lane.b32.xlu0 %v2021, 112
        %v2848 = vpop.permute.xlu0 %2847
        %2849 = vrot.lane.b32.xlu0 %v2025, 112
        %v2850 = vpop.permute.xlu0 %2849
        %2851 = vrot.lane.b32.xlu0 %v2029, 112
        %v2852 = vpop.permute.xlu0 %2851
        %2853 = vrot.lane.b32.xlu0 %v2033, 112
        %v2854 = vpop.permute.xlu0 %2853
        %2855 = vrot.lane.b32.xlu0 %v2037, 112
        %v2856 = vpop.permute.xlu0 %2855
        %2857 = vrot.lane.b32.xlu0 %v2041, 112
        %v2858 = vpop.permute.xlu0 %2857
        %2859 = vrot.lane.b32.xlu0 %v2014, 112
        %v2860 = vpop.permute.xlu0 %2859
        %2861 = vrot.lane.b32.xlu0 %v2018, 112
        %v2862 = vpop.permute.xlu0 %2861
        %2863 = vrot.lane.b32.xlu0 %v2022, 112
        %v2864 = vpop.permute.xlu0 %2863
        %2865 = vrot.lane.b32.xlu0 %v2026, 112
        %v2866 = vpop.permute.xlu0 %2865
        %2867 = vrot.lane.b32.xlu0 %v2030, 112
        %v2868 = vpop.permute.xlu0 %2867
        %2869 = vrot.lane.b32.xlu0 %v2034, 112
        %v2870 = vpop.permute.xlu0 %2869
        %2871 = vrot.lane.b32.xlu0 %v2038, 112
        %v2872 = vpop.permute.xlu0 %2871
        %2873 = vrot.lane.b32.xlu0 %v2042, 112
        %v2874 = vpop.permute.xlu0 %2873
        %v2875 = vsel %vm643, %v2844, %v2860
        %v2876 = vsel %vm643, %v2846, %v2862
        %v2877 = vsel %vm643, %v2848, %v2864
        %v2878 = vsel %vm643, %v2850, %v2866
        %v2879 = vsel %vm643, %v2852, %v2868
        %v2880 = vsel %vm643, %v2854, %v2870
        %v2881 = vsel %vm643, %v2856, %v2872
        %v2882 = vsel %vm643, %v2858, %v2874
        %v2883 = vsel %vm643, %v2828, %v2844
        %v2884 = vsel %vm643, %v2830, %v2846
        %v2885 = vsel %vm643, %v2832, %v2848
        %v2886 = vsel %vm643, %v2834, %v2850
        %v2887 = vsel %vm643, %v2836, %v2852
        %v2888 = vsel %vm643, %v2838, %v2854
        %v2889 = vsel %vm643, %v2840, %v2856
        %v2890 = vsel %vm643, %v2842, %v2858
        %v2891 = vsel %vm643, %v2812, %v2828
        %v2892 = vsel %vm643, %v2814, %v2830
        %v2893 = vsel %vm643, %v2816, %v2832
        %v2894 = vsel %vm643, %v2818, %v2834
        %v2895 = vsel %vm643, %v2820, %v2836
        %v2896 = vsel %vm643, %v2822, %v2838
        %v2897 = vsel %vm643, %v2824, %v2840
        %v2898 = vsel %vm643, %v2826, %v2842
        %v2899 = vsel %vm643, %v2860, %v2812
        %v2900 = vsel %vm643, %v2862, %v2814
        %v2901 = vsel %vm643, %v2864, %v2816
        %v2902 = vsel %vm643, %v2866, %v2818
        %v2903 = vsel %vm643, %v2868, %v2820
        %v2904 = vsel %vm643, %v2870, %v2822
        %v2905 = vsel %vm643, %v2872, %v2824
        %v2906 = vsel %vm643, %v2874, %v2826
        %v2907 = vmul.f32 %v2891, %v654
        %v2908 = vmul.f32 %v2883, %v658
        %v2909 = vmul.f32 %v2875, %v662
        %v2910 = vmul.f32 %v2899, %v666
        %v2911 = vmul.f32 %v2892, %v654
        %v2912 = vmul.f32 %v2884, %v658
        %v2913 = vmul.f32 %v2876, %v662
        %v2914 = vmul.f32 %v2900, %v666
        %v2915 = vmul.f32 %v2893, %v654
        %v2916 = vmul.f32 %v2885, %v658
        %v2917 = vmul.f32 %v2877, %v662
        %v2918 = vmul.f32 %v2901, %v666
        %v2919 = vmul.f32 %v2894, %v654
        %v2920 = vmul.f32 %v2886, %v658
        %v2921 = vmul.f32 %v2878, %v662
        %v2922 = vmul.f32 %v2902, %v666
        %v2923 = vmul.f32 %v2895, %v654
        %v2924 = vmul.f32 %v2887, %v658
        %v2925 = vmul.f32 %v2879, %v662
        %v2926 = vmul.f32 %v2903, %v666
        %v2927 = vmul.f32 %v2896, %v654
        %v2928 = vmul.f32 %v2888, %v658
        %v2929 = vmul.f32 %v2880, %v662
        %v2930 = vmul.f32 %v2904, %v666
        %v2931 = vmul.f32 %v2897, %v654
        %v2932 = vmul.f32 %v2889, %v658
        %v2933 = vmul.f32 %v2881, %v662
        %v2934 = vmul.f32 %v2905, %v666
        %v2935 = vmul.f32 %v2898, %v654
        %v2936 = vmul.f32 %v2890, %v658
        %v2937 = vmul.f32 %v2882, %v662
        %v2938 = vmul.f32 %v2906, %v666
        %2939 = vrot.lane.b32.xlu0 %v2011, 111
        %v2940 = vpop.permute.xlu0 %2939
        %2941 = vrot.lane.b32.xlu0 %v2015, 111
        %v2942 = vpop.permute.xlu0 %2941
        %2943 = vrot.lane.b32.xlu0 %v2019, 111
        %v2944 = vpop.permute.xlu0 %2943
        %2945 = vrot.lane.b32.xlu0 %v2023, 111
        %v2946 = vpop.permute.xlu0 %2945
        %2947 = vrot.lane.b32.xlu0 %v2027, 111
        %v2948 = vpop.permute.xlu0 %2947
        %2949 = vrot.lane.b32.xlu0 %v2031, 111
        %v2950 = vpop.permute.xlu0 %2949
        %2951 = vrot.lane.b32.xlu0 %v2035, 111
        %v2952 = vpop.permute.xlu0 %2951
        %2953 = vrot.lane.b32.xlu0 %v2039, 111
        %v2954 = vpop.permute.xlu0 %2953
        %2955 = vrot.lane.b32.xlu0 %v2012, 111
        %v2956 = vpop.permute.xlu0 %2955
        %2957 = vrot.lane.b32.xlu0 %v2016, 111
        %v2958 = vpop.permute.xlu0 %2957
        %2959 = vrot.lane.b32.xlu0 %v2020, 111
        %v2960 = vpop.permute.xlu0 %2959
        %2961 = vrot.lane.b32.xlu0 %v2024, 111
        %v2962 = vpop.permute.xlu0 %2961
        %2963 = vrot.lane.b32.xlu0 %v2028, 111
        %v2964 = vpop.permute.xlu0 %2963
        %2965 = vrot.lane.b32.xlu0 %v2032, 111
        %v2966 = vpop.permute.xlu0 %2965
        %2967 = vrot.lane.b32.xlu0 %v2036, 111
        %v2968 = vpop.permute.xlu0 %2967
        %2969 = vrot.lane.b32.xlu0 %v2040, 111
        %v2970 = vpop.permute.xlu0 %2969
        %2971 = vrot.lane.b32.xlu0 %v2013, 111
        %v2972 = vpop.permute.xlu0 %2971
        %2973 = vrot.lane.b32.xlu0 %v2017, 111
        %v2974 = vpop.permute.xlu0 %2973
        %2975 = vrot.lane.b32.xlu0 %v2021, 111
        %v2976 = vpop.permute.xlu0 %2975
        %2977 = vrot.lane.b32.xlu0 %v2025, 111
        %v2978 = vpop.permute.xlu0 %2977
        %2979 = vrot.lane.b32.xlu0 %v2029, 111
        %v2980 = vpop.permute.xlu0 %2979
        %2981 = vrot.lane.b32.xlu0 %v2033, 111
        %v2982 = vpop.permute.xlu0 %2981
        %2983 = vrot.lane.b32.xlu0 %v2037, 111
        %v2984 = vpop.permute.xlu0 %2983
        %2985 = vrot.lane.b32.xlu0 %v2041, 111
        %v2986 = vpop.permute.xlu0 %2985
        %2987 = vrot.lane.b32.xlu0 %v2014, 111
        %v2988 = vpop.permute.xlu0 %2987
        %2989 = vrot.lane.b32.xlu0 %v2018, 111
        %v2990 = vpop.permute.xlu0 %2989
        %2991 = vrot.lane.b32.xlu0 %v2022, 111
        %v2992 = vpop.permute.xlu0 %2991
        %2993 = vrot.lane.b32.xlu0 %v2026, 111
        %v2994 = vpop.permute.xlu0 %2993
        %2995 = vrot.lane.b32.xlu0 %v2030, 111
        %v2996 = vpop.permute.xlu0 %2995
        %2997 = vrot.lane.b32.xlu0 %v2034, 111
        %v2998 = vpop.permute.xlu0 %2997
        %2999 = vrot.lane.b32.xlu0 %v2038, 111
        %v3000 = vpop.permute.xlu0 %2999
        %3001 = vrot.lane.b32.xlu0 %v2042, 111
        %v3002 = vpop.permute.xlu0 %3001
        %v3003 = vsel %vm683, %v2972, %v2988
        %v3004 = vsel %vm683, %v2974, %v2990
        %v3005 = vsel %vm683, %v2976, %v2992
        %v3006 = vsel %vm683, %v2978, %v2994
        %v3007 = vsel %vm683, %v2980, %v2996
        %v3008 = vsel %vm683, %v2982, %v2998
        %v3009 = vsel %vm683, %v2984, %v3000
        %v3010 = vsel %vm683, %v2986, %v3002
        %v3011 = vsel %vm683, %v2956, %v2972
        %v3012 = vsel %vm683, %v2958, %v2974
        %v3013 = vsel %vm683, %v2960, %v2976
        %v3014 = vsel %vm683, %v2962, %v2978
        %v3015 = vsel %vm683, %v2964, %v2980
        %v3016 = vsel %vm683, %v2966, %v2982
        %v3017 = vsel %vm683, %v2968, %v2984
        %v3018 = vsel %vm683, %v2970, %v2986
        %v3019 = vsel %vm683, %v2940, %v2956
        %v3020 = vsel %vm683, %v2942, %v2958
        %v3021 = vsel %vm683, %v2944, %v2960
        %v3022 = vsel %vm683, %v2946, %v2962
        %v3023 = vsel %vm683, %v2948, %v2964
        %v3024 = vsel %vm683, %v2950, %v2966
        %v3025 = vsel %vm683, %v2952, %v2968
        %v3026 = vsel %vm683, %v2954, %v2970
        %v3027 = vsel %vm683, %v2988, %v2940
        %v3028 = vsel %vm683, %v2990, %v2942
        %v3029 = vsel %vm683, %v2992, %v2944
        %v3030 = vsel %vm683, %v2994, %v2946
        %v3031 = vsel %vm683, %v2996, %v2948
        %v3032 = vsel %vm683, %v2998, %v2950
        %v3033 = vsel %vm683, %v3000, %v2952
        %v3034 = vsel %vm683, %v3002, %v2954
        %v3035 = vmul.f32 %v3019, %v694
        %v3036 = vmul.f32 %v3011, %v698
        %v3037 = vmul.f32 %v3003, %v702
        %v3038 = vmul.f32 %v3027, %v706
        %v3039 = vmul.f32 %v3020, %v694
        %v3040 = vmul.f32 %v3012, %v698
        %v3041 = vmul.f32 %v3004, %v702
        %v3042 = vmul.f32 %v3028, %v706
        %v3043 = vmul.f32 %v3021, %v694
        %v3044 = vmul.f32 %v3013, %v698
        %v3045 = vmul.f32 %v3005, %v702
        %v3046 = vmul.f32 %v3029, %v706
        %v3047 = vmul.f32 %v3022, %v694
        %v3048 = vmul.f32 %v3014, %v698
        %v3049 = vmul.f32 %v3006, %v702
        %v3050 = vmul.f32 %v3030, %v706
        %v3051 = vmul.f32 %v3023, %v694
        %v3052 = vmul.f32 %v3015, %v698
        %v3053 = vmul.f32 %v3007, %v702
        %v3054 = vmul.f32 %v3031, %v706
        %v3055 = vmul.f32 %v3024, %v694
        %v3056 = vmul.f32 %v3016, %v698
        %v3057 = vmul.f32 %v3008, %v702
        %v3058 = vmul.f32 %v3032, %v706
        %v3059 = vmul.f32 %v3025, %v694
        %v3060 = vmul.f32 %v3017, %v698
        %v3061 = vmul.f32 %v3009, %v702
        %v3062 = vmul.f32 %v3033, %v706
        %v3063 = vmul.f32 %v3026, %v694
        %v3064 = vmul.f32 %v3018, %v698
        %v3065 = vmul.f32 %v3010, %v702
        %v3066 = vmul.f32 %v3034, %v706
        %v3067 = vld [vmem:[#allocation6] sm:$0xff]
        %v3068 = vld [vmem:[#allocation6 + $0x8] sm:$0xff]
        %v3069 = vld [vmem:[#allocation6 + $0x10] sm:$0xff]
        %v3070 = vld [vmem:[#allocation6 + $0x18] sm:$0xff]
        %v3071 = vld [vmem:[#allocation6 + $0x20] sm:$0xff]
        %v3072 = vld [vmem:[#allocation6 + $0x28] sm:$0xff]
        %v3073 = vld [vmem:[#allocation6 + $0x30] sm:$0xff]
        %v3074 = vld [vmem:[#allocation6 + $0x38] sm:$0xff]
        %v3075 = vld [vmem:[#allocation6 + $0x40] sm:$0xff]
        %v3076 = vld [vmem:[#allocation6 + $0x48] sm:$0xff]
        %v3077 = vld [vmem:[#allocation6 + $0x50] sm:$0xff]
        %v3078 = vld [vmem:[#allocation6 + $0x58] sm:$0xff]
        %v3079 = vld [vmem:[#allocation6 + $0x60] sm:$0xff]
        %v3080 = vld [vmem:[#allocation6 + $0x68] sm:$0xff]
        %v3081 = vld [vmem:[#allocation6 + $0x70] sm:$0xff]
        %v3082 = vld [vmem:[#allocation6 + $0x78] sm:$0xff]
        %v3083 = vld [vmem:[#allocation6 + $0x80] sm:$0xff]
        %v3084 = vld [vmem:[#allocation6 + $0x88] sm:$0xff]
        %v3085 = vld [vmem:[#allocation6 + $0x90] sm:$0xff]
        %v3086 = vld [vmem:[#allocation6 + $0x98] sm:$0xff]
        %v3087 = vld [vmem:[%s7] sm:$0xff]
        %v3088 = vld [vmem:[%s7 + $0x8] sm:$0xff]
        %v3089 = vld [vmem:[%s7 + $0x10] sm:$0xff]
        %v3090 = vld [vmem:[%s7 + $0x18] sm:$0xff]
        %3092 = vset.pattern.permute.xlu0 0
        %3093 = vperm.xlu0 %3092, %v3087
        %v3094 = vpop.permute.xlu0 %3093
        %3097 = vset.pattern.permute.xlu0 0
        %3098 = vperm.xlu0 %3097, %v3088
        %v3099 = vpop.permute.xlu0 %3098
        %3102 = vset.pattern.permute.xlu0 0
        %3103 = vperm.xlu0 %3102, %v3089
        %v3104 = vpop.permute.xlu0 %3103
        %3107 = vset.pattern.permute.xlu0 0
        %3108 = vperm.xlu0 %3107, %v3090
        %v3109 = vpop.permute.xlu0 %3108
        %vm3111 = vcmask 523264
        %v3113 = vsel %vm3111, %v3071, 0
        %v3116 = vsel %vm3111, %v3076, 0
        %v3119 = vsel %vm3111, %v3081, 0
        %v3122 = vsel %vm3111, %v3086, 0
        %3124 = vmatprep.subr.mxu0 %v2140
        %3125 = vmatpush1.msra.mxu0 %v2139
        %3126 = vmatprep.subr.mxu0 %v2144
        %3127 = vmatpush1.msra.mxu0 %v2143
        %3128 = vmatprep.subr.mxu0 %v2148
        %3129 = vmatpush1.msra.mxu0 %v2147
        %3130 = vmatprep.subr.mxu0 %v2152
        %3131 = vmatpush1.msra.mxu0 %v2151
        %3132 = vmatprep.subr.mxu0 %v2156
        %3133 = vmatpush1.msra.mxu0 %v2155
        %3134 = vmatprep.subr.mxu0 %v2160
        %3135 = vmatpush1.msra.mxu0 %v2159
        %3136 = vmatprep.subr.mxu0 %v2164
        %3137 = vmatpush1.msra.mxu0 %v2163
        %3138 = vmatprep.subr.mxu0 %v2168
        %3139 = vmatpush1.msra.mxu0 %v2167
        %3140 = vmatprep.subr.mxu0 %v2268
        %3141 = vmatpush1.msra.mxu0 %v2267
        %3142 = vmatprep.subr.mxu0 %v2272
        %3143 = vmatpush1.msra.mxu0 %v2271
        %3144 = vmatprep.subr.mxu0 %v2276
        %3145 = vmatpush1.msra.mxu0 %v2275
        %3146 = vmatprep.subr.mxu0 %v2280
        %3147 = vmatpush1.msra.mxu0 %v2279
        %3148 = vmatprep.subr.mxu0 %v2284
        %3149 = vmatpush1.msra.mxu0 %v2283
        %3150 = vmatprep.subr.mxu0 %v2288
        %3151 = vmatpush1.msra.mxu0 %v2287
        %3152 = vmatprep.subr.mxu0 %v2292
        %3153 = vmatpush1.msra.mxu0 %v2291
        %3154 = vmatprep.subr.mxu0 %v2296
        %3155 = vmatpush1.msra.mxu0 %v2295
        %3156 = vmatprep.subr.mxu0 %v2396
        %3157 = vmatpush1.msra.mxu0 %v2395
        %3158 = vmatprep.subr.mxu0 %v2400
        %3159 = vmatpush1.msra.mxu0 %v2399
        %3160 = vmatprep.subr.mxu0 %v2404
        %3161 = vmatpush1.msra.mxu0 %v2403
        %3162 = vmatprep.subr.mxu0 %v2408
        %3163 = vmatpush1.msra.mxu0 %v2407
        %3164 = vmatprep.subr.mxu0 %v2412
        %3165 = vmatpush1.msra.mxu0 %v2411
        %3166 = vmatprep.subr.mxu0 %v2416
        %3167 = vmatpush1.msra.mxu0 %v2415
        %3168 = vmatprep.subr.mxu0 %v2420
        %3169 = vmatpush1.msra.mxu0 %v2419
        %3170 = vmatprep.subr.mxu0 %v2424
        %3171 = vmatpush1.msra.mxu0 %v2423
        %3172 = vmatprep.subr.mxu0 %v2524
        %3173 = vmatpush1.msra.mxu0 %v2523
        %3174 = vmatprep.subr.mxu0 %v2528
        %3175 = vmatpush1.msra.mxu0 %v2527
        %3176 = vmatprep.subr.mxu0 %v2532
        %3177 = vmatpush1.msra.mxu0 %v2531
        %3178 = vmatprep.subr.mxu0 %v2536
        %3179 = vmatpush1.msra.mxu0 %v2535
        %3180 = vmatprep.subr.mxu0 %v2540
        %3181 = vmatpush1.msra.mxu0 %v2539
        %3182 = vmatprep.subr.mxu0 %v2544
        %3183 = vmatpush1.msra.mxu0 %v2543
        %3184 = vmatprep.subr.mxu0 %v2548
        %3185 = vmatpush1.msra.mxu0 %v2547
        %3186 = vmatprep.subr.mxu0 %v2552
        %3187 = vmatpush1.msra.mxu0 %v2551
        %3188 = vmatprep.mubr.f32.mxu0 %v3068
        %3189 = vmatmul.mubr.f32.gmra.mrb[0].mxu0 %v3067
        %v3190 = vpop.f32.mrb[0].mxu0
        %v3191 = vadd.f32 %v3094, %v3190
        %v3192 = vpop.f32.mrb[0].mxu0
        %v3193 = vadd.f32 %v3094, %v3192
        %3194 = vmatprep.mubr.f32.mxu0 %v3073
        %3195 = vmatmul.mubr.f32.gmra.mrb[0].mxu0 %v3072
        %v3196 = vpop.f32.mrb[0].mxu0
        %v3197 = vadd.f32 %v3099, %v3196
        %v3198 = vpop.f32.mrb[0].mxu0
        %v3199 = vadd.f32 %v3099, %v3198
        %3200 = vmatprep.mubr.f32.mxu0 %v3078
        %3201 = vmatmul.mubr.f32.gmra.mrb[0].mxu0 %v3077
        %v3202 = vpop.f32.mrb[0].mxu0
        %v3203 = vadd.f32 %v3104, %v3202
        %v3204 = vpop.f32.mrb[0].mxu0
        %v3205 = vadd.f32 %v3104, %v3204
        %3206 = vmatprep.mubr.f32.mxu0 %v3083
        %3207 = vmatmul.mubr.f32.gmra.mrb[0].mxu0 %v3082
        %v3208 = vpop.f32.mrb[0].mxu0
        %v3209 = vadd.f32 %v3109, %v3208
        %v3210 = vpop.f32.mrb[0].mxu0
        %v3211 = vadd.f32 %v3109, %v3210
        %3212 = vdwg.mxu0
        %3213 = vmatprep.subr.mxu0 %v2012
        %3214 = vmatpush1.msra.mxu0 %v2011
        %3215 = vmatprep.subr.mxu0 %v2016
        %3216 = vmatpush1.msra.mxu0 %v2015
        %3217 = vmatprep.subr.mxu0 %v2020
        %3218 = vmatpush1.msra.mxu0 %v2019
        %3219 = vmatprep.subr.mxu0 %v2024
        %3220 = vmatpush1.msra.mxu0 %v2023
        %3221 = vmatprep.subr.mxu0 %v2028
        %3222 = vmatpush1.msra.mxu0 %v2027
        %3223 = vmatprep.subr.mxu0 %v2032
        %3224 = vmatpush1.msra.mxu0 %v2031
        %3225 = vmatprep.subr.mxu0 %v2036
        %3226 = vmatpush1.msra.mxu0 %v2035
        %3227 = vmatprep.subr.mxu0 %v2040
        %3228 = vmatpush1.msra.mxu0 %v2039
        %3229 = vmatprep.subr.mxu0 %v2652
        %3230 = vmatpush1.msra.mxu0 %v2651
        %3231 = vmatprep.subr.mxu0 %v2656
        %3232 = vmatpush1.msra.mxu0 %v2655
        %3233 = vmatprep.subr.mxu0 %v2660
        %3234 = vmatpush1.msra.mxu0 %v2659
        %3235 = vmatprep.subr.mxu0 %v2664
        %3236 = vmatpush1.msra.mxu0 %v2663
        %3237 = vmatprep.subr.mxu0 %v2668
        %3238 = vmatpush1.msra.mxu0 %v2667
        %3239 = vmatprep.subr.mxu0 %v2672
        %3240 = vmatpush1.msra.mxu0 %v2671
        %3241 = vmatprep.subr.mxu0 %v2676
        %3242 = vmatpush1.msra.mxu0 %v2675
        %3243 = vmatprep.subr.mxu0 %v2680
        %3244 = vmatpush1.msra.mxu0 %v2679
        %3245 = vmatprep.subr.mxu0 %v2780
        %3246 = vmatpush1.msra.mxu0 %v2779
        %3247 = vmatprep.subr.mxu0 %v2784
        %3248 = vmatpush1.msra.mxu0 %v2783
        %3249 = vmatprep.subr.mxu0 %v2788
        %3250 = vmatpush1.msra.mxu0 %v2787
        %3251 = vmatprep.subr.mxu0 %v2792
        %3252 = vmatpush1.msra.mxu0 %v2791
        %3253 = vmatprep.subr.mxu0 %v2796
        %3254 = vmatpush1.msra.mxu0 %v2795
        %3255 = vmatprep.subr.mxu0 %v2800
        %3256 = vmatpush1.msra.mxu0 %v2799
        %3257 = vmatprep.subr.mxu0 %v2804
        %3258 = vmatpush1.msra.mxu0 %v2803
        %3259 = vmatprep.subr.mxu0 %v2808
        %3260 = vmatpush1.msra.mxu0 %v2807
        %3261 = vmatprep.subr.mxu0 %v2908
        %3262 = vmatpush1.msra.mxu0 %v2907
        %3263 = vmatprep.subr.mxu0 %v2912
        %3264 = vmatpush1.msra.mxu0 %v2911
        %3265 = vmatprep.subr.mxu0 %v2916
        %3266 = vmatpush1.msra.mxu0 %v2915
        %3267 = vmatprep.subr.mxu0 %v2920
        %3268 = vmatpush1.msra.mxu0 %v2919
        %3269 = vmatprep.subr.mxu0 %v2924
        %3270 = vmatpush1.msra.mxu0 %v2923
        %3271 = vmatprep.subr.mxu0 %v2928
        %3272 = vmatpush1.msra.mxu0 %v2927
        %3273 = vmatprep.subr.mxu0 %v2932
        %3274 = vmatpush1.msra.mxu0 %v2931
        %3275 = vmatprep.subr.mxu0 %v2936
        %3276 = vmatpush1.msra.mxu0 %v2935
        %3277 = vmatprep.mubr.f32.mxu0 %v3070
        %3278 = vmatmul.mubr.f32.gmra.mrb[0].mxu0 %v3069
        %v3279 = vpop.f32.mrb[0].mxu0
        %v3280 = vadd.f32 %v3191, %v3279
        %v3281 = vpop.f32.mrb[0].mxu0
        %v3282 = vadd.f32 %v3193, %v3281
        %3283 = vmatprep.mubr.f32.mxu0 %v3075
        %3284 = vmatmul.mubr.f32.gmra.mrb[0].mxu0 %v3074
        %v3285 = vpop.f32.mrb[0].mxu0
        %v3286 = vadd.f32 %v3197, %v3285
        %v3287 = vpop.f32.mrb[0].mxu0
        %v3288 = vadd.f32 %v3199, %v3287
        %3289 = vmatprep.mubr.f32.mxu0 %v3080
        %3290 = vmatmul.mubr.f32.gmra.mrb[0].mxu0 %v3079
        %v3291 = vpop.f32.mrb[0].mxu0
        %v3292 = vadd.f32 %v3203, %v3291
        %v3293 = vpop.f32.mrb[0].mxu0
        %v3294 = vadd.f32 %v3205, %v3293
        %3295 = vmatprep.mubr.f32.mxu0 %v3085
        %3296 = vmatmul.mubr.f32.gmra.mrb[0].mxu0 %v3084
        %v3297 = vpop.f32.mrb[0].mxu0
        %v3298 = vadd.f32 %v3209, %v3297
        %v3299 = vpop.f32.mrb[0].mxu0
        %v3300 = vadd.f32 %v3211, %v3299
        %3301 = vdwg.mxu0
        %3302 = vmatprep.subr.mxu0 %v3036
        %3303 = vmatpush1.msra.mxu0 %v3035
        %3304 = vmatprep.subr.mxu0 %v3040
        %3305 = vmatpush1.msra.mxu0 %v3039
        %3306 = vmatprep.subr.mxu0 %v3044
        %3307 = vmatpush1.msra.mxu0 %v3043
        %3308 = vmatprep.subr.mxu0 %v3048
        %3309 = vmatpush1.msra.mxu0 %v3047
        %3310 = vmatprep.subr.mxu0 %v3052
        %3311 = vmatpush1.msra.mxu0 %v3051
        %3312 = vmatprep.subr.mxu0 %v3056
        %3313 = vmatpush1.msra.mxu0 %v3055
        %3314 = vmatprep.subr.mxu0 %v3060
        %3315 = vmatpush1.msra.mxu0 %v3059
        %3316 = vmatprep.subr.mxu0 %v3064
        %3317 = vmatpush1.msra.mxu0 %v3063
        %3318 = vmatprep.subr.mxu0 0.0
        %3319 = vmatpush1.msra.mxu0 0.0
        %3320 = vmatprep.subr.mxu0 0.0
        %3321 = vmatpush1.msra.mxu0 0.0
        %3322 = vmatprep.subr.mxu0 0.0
        %3323 = vmatpush1.msra.mxu0 0.0
        %3324 = vmatprep.subr.mxu0 0.0
        %3325 = vmatpush1.msra.mxu0 0.0
        %3326 = vmatprep.subr.mxu0 0.0
        %3327 = vmatpush1.msra.mxu0 0.0
        %3328 = vmatprep.subr.mxu0 0.0
        %3329 = vmatpush1.msra.mxu0 0.0
        %3330 = vmatprep.subr.mxu0 0.0
        %3331 = vmatpush1.msra.mxu0 0.0
        %3332 = vmatprep.subr.mxu0 0.0
        %3333 = vmatpush1.msra.mxu0 0.0
        %3334 = vmatprep.subr.mxu0 0.0
        %3335 = vmatpush1.msra.mxu0 0.0
        %3336 = vmatprep.subr.mxu0 0.0
        %3337 = vmatpush1.msra.mxu0 0.0
        %3338 = vmatprep.subr.mxu0 0.0
        %3339 = vmatpush1.msra.mxu0 0.0
        %3340 = vmatprep.subr.mxu0 0.0
        %3341 = vmatpush1.msra.mxu0 0.0
        %3342 = vmatprep.subr.mxu0 0.0
        %3343 = vmatpush1.msra.mxu0 0.0
        %3344 = vmatprep.subr.mxu0 0.0
        %3345 = vmatpush1.msra.mxu0 0.0
        %3346 = vmatprep.subr.mxu0 0.0
        %3347 = vmatpush1.msra.mxu0 0.0
        %3348 = vmatprep.subr.mxu0 0.0
        %3349 = vmatpush1.msra.mxu0 0.0
        %3350 = vmatprep.subr.mxu0 0.0
        %3351 = vmatpush1.msra.mxu0 0.0
        %3352 = vmatprep.subr.mxu0 0.0
        %3353 = vmatpush1.msra.mxu0 0.0
        %3354 = vmatprep.subr.mxu0 0.0
        %3355 = vmatpush1.msra.mxu0 0.0
        %3356 = vmatprep.subr.mxu0 0.0
        %3357 = vmatpush1.msra.mxu0 0.0
        %3358 = vmatprep.subr.mxu0 0.0
        %3359 = vmatpush1.msra.mxu0 0.0
        %3360 = vmatprep.subr.mxu0 0.0
        %3361 = vmatpush1.msra.mxu0 0.0
        %3362 = vmatprep.subr.mxu0 0.0
        %3363 = vmatpush1.msra.mxu0 0.0
        %3364 = vmatprep.subr.mxu0 0.0
        %3365 = vmatpush1.msra.mxu0 0.0
        %3366 = vmatprep.mubr.f32.mxu0 0.0
        %3367 = vmatmul.mubr.f32.gmra.mrb[0].mxu0 %v3113
        %v3368 = vpop.f32.mrb[0].mxu0
        %v3369 = vadd.f32 %v3280, %v3368
        %v3370 = vpop.f32.mrb[0].mxu0
        %v3371 = vadd.f32 %v3282, %v3370
        %3372 = vmatprep.mubr.f32.mxu0 0.0
        %3373 = vmatmul.mubr.f32.gmra.mrb[0].mxu0 %v3116
        %v3374 = vpop.f32.mrb[0].mxu0
        %v3375 = vadd.f32 %v3286, %v3374
        %v3376 = vpop.f32.mrb[0].mxu0
        %v3377 = vadd.f32 %v3288, %v3376
        %3378 = vmatprep.mubr.f32.mxu0 0.0
        %3379 = vmatmul.mubr.f32.gmra.mrb[0].mxu0 %v3119
        %v3380 = vpop.f32.mrb[0].mxu0
        %v3381 = vadd.f32 %v3292, %v3380
        %v3382 = vpop.f32.mrb[0].mxu0
        %v3383 = vadd.f32 %v3294, %v3382
        %3384 = vmatprep.mubr.f32.mxu0 0.0
        %3385 = vmatmul.mubr.f32.gmra.mrb[0].mxu0 %v3122
        %v3386 = vpop.f32.mrb[0].mxu0
        %v3387 = vadd.f32 %v3298, %v3386
        %v3388 = vpop.f32.mrb[0].mxu0
        %v3389 = vadd.f32 %v3300, %v3388
        %3390 = vdwg.mxu0
        %3391 = vmatprep.subr.mxu0 %v2142
        %3392 = vmatpush1.msra.mxu0 %v2141
        %3393 = vmatprep.subr.mxu0 %v2146
        %3394 = vmatpush1.msra.mxu0 %v2145
        %3395 = vmatprep.subr.mxu0 %v2150
        %3396 = vmatpush1.msra.mxu0 %v2149
        %3397 = vmatprep.subr.mxu0 %v2154
        %3398 = vmatpush1.msra.mxu0 %v2153
        %3399 = vmatprep.subr.mxu0 %v2158
        %3400 = vmatpush1.msra.mxu0 %v2157
        %3401 = vmatprep.subr.mxu0 %v2162
        %3402 = vmatpush1.msra.mxu0 %v2161
        %3403 = vmatprep.subr.mxu0 %v2166
        %3404 = vmatpush1.msra.mxu0 %v2165
        %3405 = vmatprep.subr.mxu0 %v2170
        %3406 = vmatpush1.msra.mxu0 %v2169
        %3407 = vmatprep.subr.mxu0 %v2270
        %3408 = vmatpush1.msra.mxu0 %v2269
        %3409 = vmatprep.subr.mxu0 %v2274
        %3410 = vmatpush1.msra.mxu0 %v2273
        %3411 = vmatprep.subr.mxu0 %v2278
        %3412 = vmatpush1.msra.mxu0 %v2277
        %3413 = vmatprep.subr.mxu0 %v2282
        %3414 = vmatpush1.msra.mxu0 %v2281
        %3415 = vmatprep.subr.mxu0 %v2286
        %3416 = vmatpush1.msra.mxu0 %v2285
        %3417 = vmatprep.subr.mxu0 %v2290
        %3418 = vmatpush1.msra.mxu0 %v2289
        %3419 = vmatprep.subr.mxu0 %v2294
        %3420 = vmatpush1.msra.mxu0 %v2293
        %3421 = vmatprep.subr.mxu0 %v2298
        %3422 = vmatpush1.msra.mxu0 %v2297
        %3423 = vmatprep.subr.mxu0 %v2398
        %3424 = vmatpush1.msra.mxu0 %v2397
        %3425 = vmatprep.subr.mxu0 %v2402
        %3426 = vmatpush1.msra.mxu0 %v2401
        %3427 = vmatprep.subr.mxu0 %v2406
        %3428 = vmatpush1.msra.mxu0 %v2405
        %3429 = vmatprep.subr.mxu0 %v2410
        %3430 = vmatpush1.msra.mxu0 %v2409
        %3431 = vmatprep.subr.mxu0 %v2414
        %3432 = vmatpush1.msra.mxu0 %v2413
        %3433 = vmatprep.subr.mxu0 %v2418
        %3434 = vmatpush1.msra.mxu0 %v2417
        %3435 = vmatprep.subr.mxu0 %v2422
        %3436 = vmatpush1.msra.mxu0 %v2421
        %3437 = vmatprep.subr.mxu0 %v2426
        %3438 = vmatpush1.msra.mxu0 %v2425
        %3439 = vmatprep.subr.mxu0 %v2526
        %3440 = vmatpush1.msra.mxu0 %v2525
        %3441 = vmatprep.subr.mxu0 %v2530
        %3442 = vmatpush1.msra.mxu0 %v2529
        %3443 = vmatprep.subr.mxu0 %v2534
        %3444 = vmatpush1.msra.mxu0 %v2533
        %3445 = vmatprep.subr.mxu0 %v2538
        %3446 = vmatpush1.msra.mxu0 %v2537
        %3447 = vmatprep.subr.mxu0 %v2542
        %3448 = vmatpush1.msra.mxu0 %v2541
        %3449 = vmatprep.subr.mxu0 %v2546
        %3450 = vmatpush1.msra.mxu0 %v2545
        %3451 = vmatprep.subr.mxu0 %v2550
        %3452 = vmatpush1.msra.mxu0 %v2549
        %3453 = vmatprep.subr.mxu0 %v2554
        %3454 = vmatpush1.msra.mxu0 %v2553
        %3455 = vmatprep.mubr.f32.mxu0 %v3068
        %3456 = vmatmul.mubr.f32.gmra.mrb[0].mxu0 %v3067
        %v3457 = vpop.f32.mrb[0].mxu0
        %v3458 = vadd.f32 %v3094, %v3457
        %v3459 = vpop.f32.mrb[0].mxu0
        %v3460 = vadd.f32 %v3094, %v3459
        %3461 = vmatprep.mubr.f32.mxu0 %v3073
        %3462 = vmatmul.mubr.f32.gmra.mrb[0].mxu0 %v3072
        %v3463 = vpop.f32.mrb[0].mxu0
        %v3464 = vadd.f32 %v3099, %v3463
        %v3465 = vpop.f32.mrb[0].mxu0
        %v3466 = vadd.f32 %v3099, %v3465
        %3467 = vmatprep.mubr.f32.mxu0 %v3078
        %3468 = vmatmul.mubr.f32.gmra.mrb[0].mxu0 %v3077
        %v3469 = vpop.f32.mrb[0].mxu0
        %v3470 = vadd.f32 %v3104, %v3469
        %v3471 = vpop.f32.mrb[0].mxu0
        %v3472 = vadd.f32 %v3104, %v3471
        %3473 = vmatprep.mubr.f32.mxu0 %v3083
        %3474 = vmatmul.mubr.f32.gmra.mrb[0].mxu0 %v3082
        %v3475 = vpop.f32.mrb[0].mxu0
        %v3476 = vadd.f32 %v3109, %v3475
        %v3477 = vpop.f32.mrb[0].mxu0
        %v3478 = vadd.f32 %v3109, %v3477
        %3479 = vdwg.mxu0
        %3480 = vmatprep.subr.mxu0 %v2014
        %3481 = vmatpush1.msra.mxu0 %v2013
        %3482 = vmatprep.subr.mxu0 %v2018
        %3483 = vmatpush1.msra.mxu0 %v2017
        %3484 = vmatprep.subr.mxu0 %v2022
        %3485 = vmatpush1.msra.mxu0 %v2021
        %3486 = vmatprep.subr.mxu0 %v2026
        %3487 = vmatpush1.msra.mxu0 %v2025
        %3488 = vmatprep.subr.mxu0 %v2030
        %3489 = vmatpush1.msra.mxu0 %v2029
        %3490 = vmatprep.subr.mxu0 %v2034
        %3491 = vmatpush1.msra.mxu0 %v2033
        %3492 = vmatprep.subr.mxu0 %v2038
        %3493 = vmatpush1.msra.mxu0 %v2037
        %3494 = vmatprep.subr.mxu0 %v2042
        %3495 = vmatpush1.msra.mxu0 %v2041
        %3496 = vmatprep.subr.mxu0 %v2654
        %3497 = vmatpush1.msra.mxu0 %v2653
        %3498 = vmatprep.subr.mxu0 %v2658
        %3499 = vmatpush1.msra.mxu0 %v2657
        %3500 = vmatprep.subr.mxu0 %v2662
        %3501 = vmatpush1.msra.mxu0 %v2661
        %3502 = vmatprep.subr.mxu0 %v2666
        %3503 = vmatpush1.msra.mxu0 %v2665
        %3504 = vmatprep.subr.mxu0 %v2670
        %3505 = vmatpush1.msra.mxu0 %v2669
        %3506 = vmatprep.subr.mxu0 %v2674
        %3507 = vmatpush1.msra.mxu0 %v2673
        %3508 = vmatprep.subr.mxu0 %v2678
        %3509 = vmatpush1.msra.mxu0 %v2677
        %3510 = vmatprep.subr.mxu0 %v2682
        %3511 = vmatpush1.msra.mxu0 %v2681
        %3512 = vmatprep.subr.mxu0 %v2782
        %3513 = vmatpush1.msra.mxu0 %v2781
        %3514 = vmatprep.subr.mxu0 %v2786
        %3515 = vmatpush1.msra.mxu0 %v2785
        %3516 = vmatprep.subr.mxu0 %v2790
        %3517 = vmatpush1.msra.mxu0 %v2789
        %3518 = vmatprep.subr.mxu0 %v2794
        %3519 = vmatpush1.msra.mxu0 %v2793
        %3520 = vmatprep.subr.mxu0 %v2798
        %3521 = vmatpush1.msra.mxu0 %v2797
        %3522 = vmatprep.subr.mxu0 %v2802
        %3523 = vmatpush1.msra.mxu0 %v2801
        %3524 = vmatprep.subr.mxu0 %v2806
        %3525 = vmatpush1.msra.mxu0 %v2805
        %3526 = vmatprep.subr.mxu0 %v2810
        %3527 = vmatpush1.msra.mxu0 %v2809
        %3528 = vmatprep.subr.mxu0 %v2910
        %3529 = vmatpush1.msra.mxu0 %v2909
        %3530 = vmatprep.subr.mxu0 %v2914
        %3531 = vmatpush1.msra.mxu0 %v2913
        %3532 = vmatprep.subr.mxu0 %v2918
        %3533 = vmatpush1.msra.mxu0 %v2917
        %3534 = vmatprep.subr.mxu0 %v2922
        %3535 = vmatpush1.msra.mxu0 %v2921
        %3536 = vmatprep.subr.mxu0 %v2926
        %3537 = vmatpush1.msra.mxu0 %v2925
        %3538 = vmatprep.subr.mxu0 %v2930
        %3539 = vmatpush1.msra.mxu0 %v2929
        %3540 = vmatprep.subr.mxu0 %v2934
        %3541 = vmatpush1.msra.mxu0 %v2933
        %3542 = vmatprep.subr.mxu0 %v2938
        %3543 = vmatpush1.msra.mxu0 %v2937
        %3544 = vmatprep.mubr.f32.mxu0 %v3070
        %3545 = vmatmul.mubr.f32.gmra.mrb[0].mxu0 %v3069
        %v3546 = vpop.f32.mrb[0].mxu0
        %v3547 = vadd.f32 %v3458, %v3546
        %v3548 = vpop.f32.mrb[0].mxu0
        %v3549 = vadd.f32 %v3460, %v3548
        %3550 = vmatprep.mubr.f32.mxu0 %v3075
        %3551 = vmatmul.mubr.f32.gmra.mrb[0].mxu0 %v3074
        %v3552 = vpop.f32.mrb[0].mxu0
        %v3553 = vadd.f32 %v3464, %v3552
        %v3554 = vpop.f32.mrb[0].mxu0
        %v3555 = vadd.f32 %v3466, %v3554
        %3556 = vmatprep.mubr.f32.mxu0 %v3080
        %3557 = vmatmul.mubr.f32.gmra.mrb[0].mxu0 %v3079
        %v3558 = vpop.f32.mrb[0].mxu0
        %v3559 = vadd.f32 %v3470, %v3558
        %v3560 = vpop.f32.mrb[0].mxu0
        %v3561 = vadd.f32 %v3472, %v3560
        %3562 = vmatprep.mubr.f32.mxu0 %v3085
        %3563 = vmatmul.mubr.f32.gmra.mrb[0].mxu0 %v3084
        %v3564 = vpop.f32.mrb[0].mxu0
        %v3565 = vadd.f32 %v3476, %v3564
        %v3566 = vpop.f32.mrb[0].mxu0
        %v3567 = vadd.f32 %v3478, %v3566
        %3568 = vdwg.mxu0
        %3569 = vmatprep.subr.mxu0 %v3038
        %3570 = vmatpush1.msra.mxu0 %v3037
        %3571 = vmatprep.subr.mxu0 %v3042
        %3572 = vmatpush1.msra.mxu0 %v3041
        %3573 = vmatprep.subr.mxu0 %v3046
        %3574 = vmatpush1.msra.mxu0 %v3045
        %3575 = vmatprep.subr.mxu0 %v3050
        %3576 = vmatpush1.msra.mxu0 %v3049
        %3577 = vmatprep.subr.mxu0 %v3054
        %3578 = vmatpush1.msra.mxu0 %v3053
        %3579 = vmatprep.subr.mxu0 %v3058
        %3580 = vmatpush1.msra.mxu0 %v3057
        %3581 = vmatprep.subr.mxu0 %v3062
        %3582 = vmatpush1.msra.mxu0 %v3061
        %3583 = vmatprep.subr.mxu0 %v3066
        %3584 = vmatpush1.msra.mxu0 %v3065
        %3585 = vmatprep.subr.mxu0 0.0
        %3586 = vmatpush1.msra.mxu0 0.0
        %3587 = vmatprep.subr.mxu0 0.0
        %3588 = vmatpush1.msra.mxu0 0.0
        %3589 = vmatprep.subr.mxu0 0.0
        %3590 = vmatpush1.msra.mxu0 0.0
        %3591 = vmatprep.subr.mxu0 0.0
        %3592 = vmatpush1.msra.mxu0 0.0
        %3593 = vmatprep.subr.mxu0 0.0
        %3594 = vmatpush1.msra.mxu0 0.0
        %3595 = vmatprep.subr.mxu0 0.0
        %3596 = vmatpush1.msra.mxu0 0.0
        %3597 = vmatprep.subr.mxu0 0.0
        %3598 = vmatpush1.msra.mxu0 0.0
        %3599 = vmatprep.subr.mxu0 0.0
        %3600 = vmatpush1.msra.mxu0 0.0
        %3601 = vmatprep.subr.mxu0 0.0
        %3602 = vmatpush1.msra.mxu0 0.0
        %3603 = vmatprep.subr.mxu0 0.0
        %3604 = vmatpush1.msra.mxu0 0.0
        %3605 = vmatprep.subr.mxu0 0.0
        %3606 = vmatpush1.msra.mxu0 0.0
        %3607 = vmatprep.subr.mxu0 0.0
        %3608 = vmatpush1.msra.mxu0 0.0
        %3609 = vmatprep.subr.mxu0 0.0
        %3610 = vmatpush1.msra.mxu0 0.0
        %3611 = vmatprep.subr.mxu0 0.0
        %3612 = vmatpush1.msra.mxu0 0.0
        %3613 = vmatprep.subr.mxu0 0.0
        %3614 = vmatpush1.msra.mxu0 0.0
        %3615 = vmatprep.subr.mxu0 0.0
        %3616 = vmatpush1.msra.mxu0 0.0
        %3617 = vmatprep.subr.mxu0 0.0
        %3618 = vmatpush1.msra.mxu0 0.0
        %3619 = vmatprep.subr.mxu0 0.0
        %3620 = vmatpush1.msra.mxu0 0.0
        %3621 = vmatprep.subr.mxu0 0.0
        %3622 = vmatpush1.msra.mxu0 0.0
        %3623 = vmatprep.subr.mxu0 0.0
        %3624 = vmatpush1.msra.mxu0 0.0
        %3625 = vmatprep.subr.mxu0 0.0
        %3626 = vmatpush1.msra.mxu0 0.0
        %3627 = vmatprep.subr.mxu0 0.0
        %3628 = vmatpush1.msra.mxu0 0.0
        %3629 = vmatprep.subr.mxu0 0.0
        %3630 = vmatpush1.msra.mxu0 0.0
        %3631 = vmatprep.subr.mxu0 0.0
        %3632 = vmatpush1.msra.mxu0 0.0
        %3633 = vmatprep.mubr.f32.mxu0 0.0
        %3634 = vmatmul.mubr.f32.gmra.mrb[0].mxu0 %v3113
        %v3635 = vpop.f32.mrb[0].mxu0
        %v3636 = vadd.f32 %v3547, %v3635
        %v3637 = vpop.f32.mrb[0].mxu0
        %v3638 = vadd.f32 %v3549, %v3637
        %3639 = vmatprep.mubr.f32.mxu0 0.0
        %3640 = vmatmul.mubr.f32.gmra.mrb[0].mxu0 %v3116
        %v3641 = vpop.f32.mrb[0].mxu0
        %v3642 = vadd.f32 %v3553, %v3641
        %v3643 = vpop.f32.mrb[0].mxu0
        %v3644 = vadd.f32 %v3555, %v3643
        %3645 = vmatprep.mubr.f32.mxu0 0.0
        %3646 = vmatmul.mubr.f32.gmra.mrb[0].mxu0 %v3119
        %v3647 = vpop.f32.mrb[0].mxu0
        %v3648 = vadd.f32 %v3559, %v3647
        %v3649 = vpop.f32.mrb[0].mxu0
        %v3650 = vadd.f32 %v3561, %v3649
        %3651 = vmatprep.mubr.f32.mxu0 0.0
        %3652 = vmatmul.mubr.f32.gmra.mrb[0].mxu0 %v3122
        %v3653 = vpop.f32.mrb[0].mxu0
        %v3654 = vadd.f32 %v3565, %v3653
        %v3655 = vpop.f32.mrb[0].mxu0
        %v3656 = vadd.f32 %v3567, %v3655
        %3657 = vdwg.mxu0
        %v3658 = vmax.f32 %v3369, 0.0
        %v3659 = vmax.f32 %v3371, 0.0
        %v3660 = vmax.f32 %v3636, 0.0
        %v3661 = vmax.f32 %v3638, 0.0
        %v3662 = vmax.f32 %v3375, 0.0
        %v3663 = vmax.f32 %v3377, 0.0
        %v3664 = vmax.f32 %v3642, 0.0
        %v3665 = vmax.f32 %v3644, 0.0
        %v3666 = vmax.f32 %v3381, 0.0
        %v3667 = vmax.f32 %v3383, 0.0
        %v3668 = vmax.f32 %v3648, 0.0
        %v3669 = vmax.f32 %v3650, 0.0
        %v3670 = vmax.f32 %v3387, 0.0
        %v3671 = vmax.f32 %v3389, 0.0
        %v3672 = vmax.f32 %v3654, 0.0
        %v3673 = vmax.f32 %v3656, 0.0
        %3674 = vrot.lane.b32.xlu0 %v3658, 17
        %v3675 = vpop.permute.xlu0 %3674
        %3676 = vrot.lane.b32.xlu0 %v3662, 17
        %v3677 = vpop.permute.xlu0 %3676
        %3678 = vrot.lane.b32.xlu0 %v3666, 17
        %v3679 = vpop.permute.xlu0 %3678
        %3680 = vrot.lane.b32.xlu0 %v3670, 17
        %v3681 = vpop.permute.xlu0 %3680
        %3682 = vrot.lane.b32.xlu0 %v3659, 17
        %v3683 = vpop.permute.xlu0 %3682
        %3684 = vrot.lane.b32.xlu0 %v3663, 17
        %v3685 = vpop.permute.xlu0 %3684
        %3686 = vrot.lane.b32.xlu0 %v3667, 17
        %v3687 = vpop.permute.xlu0 %3686
        %3688 = vrot.lane.b32.xlu0 %v3671, 17
        %v3689 = vpop.permute.xlu0 %3688
        %3690 = vrot.lane.b32.xlu0 %v3660, 17
        %v3691 = vpop.permute.xlu0 %3690
        %3692 = vrot.lane.b32.xlu0 %v3664, 17
        %v3693 = vpop.permute.xlu0 %3692
        %3694 = vrot.lane.b32.xlu0 %v3668, 17
        %v3695 = vpop.permute.xlu0 %3694
        %3696 = vrot.lane.b32.xlu0 %v3672, 17
        %v3697 = vpop.permute.xlu0 %3696
        %3698 = vrot.lane.b32.xlu0 %v3661, 17
        %v3699 = vpop.permute.xlu0 %3698
        %3700 = vrot.lane.b32.xlu0 %v3665, 17
        %v3701 = vpop.permute.xlu0 %3700
        %3702 = vrot.lane.b32.xlu0 %v3669, 17
        %v3703 = vpop.permute.xlu0 %3702
        %3704 = vrot.lane.b32.xlu0 %v3673, 17
        %v3705 = vpop.permute.xlu0 %3704
        %v3706 = vsel %vm404, %v3691, %v3699
        %v3707 = vsel %vm404, %v3693, %v3701
        %v3708 = vsel %vm404, %v3695, %v3703
        %v3709 = vsel %vm404, %v3697, %v3705
        %v3710 = vsel %vm404, %v3683, %v3691
        %v3711 = vsel %vm404, %v3685, %v3693
        %v3712 = vsel %vm404, %v3687, %v3695
        %v3713 = vsel %vm404, %v3689, %v3697
        %v3714 = vsel %vm404, %v3675, %v3683
        %v3715 = vsel %vm404, %v3677, %v3685
        %v3716 = vsel %vm404, %v3679, %v3687
        %v3717 = vsel %vm404, %v3681, %v3689
        %v3718 = vsel %vm404, %v3699, %v3675
        %v3719 = vsel %vm404, %v3701, %v3677
        %v3720 = vsel %vm404, %v3703, %v3679
        %v3721 = vsel %vm404, %v3705, %v3681
        %v3722 = vmul.f32 %v3718, %v414
        %v3723 = vmul.f32 %v3714, %v418
        %v3724 = vmul.f32 %v3710, %v422
        %v3725 = vmul.f32 %v3706, %v426
        %v3726 = vmul.f32 %v3719, %v414
        %v3727 = vmul.f32 %v3715, %v418
        %v3728 = vmul.f32 %v3711, %v422
        %v3729 = vmul.f32 %v3707, %v426
        %v3730 = vmul.f32 %v3720, %v414
        %v3731 = vmul.f32 %v3716, %v418
        %v3732 = vmul.f32 %v3712, %v422
        %v3733 = vmul.f32 %v3708, %v426
        %v3734 = vmul.f32 %v3721, %v414
        %v3735 = vmul.f32 %v3717, %v418
        %v3736 = vmul.f32 %v3713, %v422
        %v3737 = vmul.f32 %v3709, %v426
        %3738 = vrot.lane.b32.xlu0 %v3658, 16
        %v3739 = vpop.permute.xlu0 %3738
        %3740 = vrot.lane.b32.xlu0 %v3662, 16
        %v3741 = vpop.permute.xlu0 %3740
        %3742 = vrot.lane.b32.xlu0 %v3666, 16
        %v3743 = vpop.permute.xlu0 %3742
        %3744 = vrot.lane.b32.xlu0 %v3670, 16
        %v3745 = vpop.permute.xlu0 %3744
        %3746 = vrot.lane.b32.xlu0 %v3659, 16
        %v3747 = vpop.permute.xlu0 %3746
        %3748 = vrot.lane.b32.xlu0 %v3663, 16
        %v3749 = vpop.permute.xlu0 %3748
        %3750 = vrot.lane.b32.xlu0 %v3667, 16
        %v3751 = vpop.permute.xlu0 %3750
        %3752 = vrot.lane.b32.xlu0 %v3671, 16
        %v3753 = vpop.permute.xlu0 %3752
        %3754 = vrot.lane.b32.xlu0 %v3660, 16
        %v3755 = vpop.permute.xlu0 %3754
        %3756 = vrot.lane.b32.xlu0 %v3664, 16
        %v3757 = vpop.permute.xlu0 %3756
        %3758 = vrot.lane.b32.xlu0 %v3668, 16
        %v3759 = vpop.permute.xlu0 %3758
        %3760 = vrot.lane.b32.xlu0 %v3672, 16
        %v3761 = vpop.permute.xlu0 %3760
        %3762 = vrot.lane.b32.xlu0 %v3661, 16
        %v3763 = vpop.permute.xlu0 %3762
        %3764 = vrot.lane.b32.xlu0 %v3665, 16
        %v3765 = vpop.permute.xlu0 %3764
        %3766 = vrot.lane.b32.xlu0 %v3669, 16
        %v3767 = vpop.permute.xlu0 %3766
        %3768 = vrot.lane.b32.xlu0 %v3673, 16
        %v3769 = vpop.permute.xlu0 %3768
        %v3770 = vsel %vm443, %v3755, %v3763
        %v3771 = vsel %vm443, %v3757, %v3765
        %v3772 = vsel %vm443, %v3759, %v3767
        %v3773 = vsel %vm443, %v3761, %v3769
        %v3774 = vsel %vm443, %v3747, %v3755
        %v3775 = vsel %vm443, %v3749, %v3757
        %v3776 = vsel %vm443, %v3751, %v3759
        %v3777 = vsel %vm443, %v3753, %v3761
        %v3778 = vsel %vm443, %v3739, %v3747
        %v3779 = vsel %vm443, %v3741, %v3749
        %v3780 = vsel %vm443, %v3743, %v3751
        %v3781 = vsel %vm443, %v3745, %v3753
        %v3782 = vsel %vm443, %v3763, %v3739
        %v3783 = vsel %vm443, %v3765, %v3741
        %v3784 = vsel %vm443, %v3767, %v3743
        %v3785 = vsel %vm443, %v3769, %v3745
        %v3786 = vmul.f32 %v3782, %v454
        %v3787 = vmul.f32 %v3778, %v458
        %v3788 = vmul.f32 %v3774, %v462
        %v3789 = vmul.f32 %v3770, %v466
        %v3790 = vmul.f32 %v3783, %v454
        %v3791 = vmul.f32 %v3779, %v458
        %v3792 = vmul.f32 %v3775, %v462
        %v3793 = vmul.f32 %v3771, %v466
        %v3794 = vmul.f32 %v3784, %v454
        %v3795 = vmul.f32 %v3780, %v458
        %v3796 = vmul.f32 %v3776, %v462
        %v3797 = vmul.f32 %v3772, %v466
        %v3798 = vmul.f32 %v3785, %v454
        %v3799 = vmul.f32 %v3781, %v458
        %v3800 = vmul.f32 %v3777, %v462
        %v3801 = vmul.f32 %v3773, %v466
        %3802 = vrot.lane.b32.xlu0 %v3658, 15
        %v3803 = vpop.permute.xlu0 %3802
        %3804 = vrot.lane.b32.xlu0 %v3662, 15
        %v3805 = vpop.permute.xlu0 %3804
        %3806 = vrot.lane.b32.xlu0 %v3666, 15
        %v3807 = vpop.permute.xlu0 %3806
        %3808 = vrot.lane.b32.xlu0 %v3670, 15
        %v3809 = vpop.permute.xlu0 %3808
        %3810 = vrot.lane.b32.xlu0 %v3659, 15
        %v3811 = vpop.permute.xlu0 %3810
        %3812 = vrot.lane.b32.xlu0 %v3663, 15
        %v3813 = vpop.permute.xlu0 %3812
        %3814 = vrot.lane.b32.xlu0 %v3667, 15
        %v3815 = vpop.permute.xlu0 %3814
        %3816 = vrot.lane.b32.xlu0 %v3671, 15
        %v3817 = vpop.permute.xlu0 %3816
        %3818 = vrot.lane.b32.xlu0 %v3660, 15
        %v3819 = vpop.permute.xlu0 %3818
        %3820 = vrot.lane.b32.xlu0 %v3664, 15
        %v3821 = vpop.permute.xlu0 %3820
        %3822 = vrot.lane.b32.xlu0 %v3668, 15
        %v3823 = vpop.permute.xlu0 %3822
        %3824 = vrot.lane.b32.xlu0 %v3672, 15
        %v3825 = vpop.permute.xlu0 %3824
        %3826 = vrot.lane.b32.xlu0 %v3661, 15
        %v3827 = vpop.permute.xlu0 %3826
        %3828 = vrot.lane.b32.xlu0 %v3665, 15
        %v3829 = vpop.permute.xlu0 %3828
        %3830 = vrot.lane.b32.xlu0 %v3669, 15
        %v3831 = vpop.permute.xlu0 %3830
        %3832 = vrot.lane.b32.xlu0 %v3673, 15
        %v3833 = vpop.permute.xlu0 %3832
        %v3834 = vsel %vm483, %v3819, %v3827
        %v3835 = vsel %vm483, %v3821, %v3829
        %v3836 = vsel %vm483, %v3823, %v3831
        %v3837 = vsel %vm483, %v3825, %v3833
        %v3838 = vsel %vm483, %v3811, %v3819
        %v3839 = vsel %vm483, %v3813, %v3821
        %v3840 = vsel %vm483, %v3815, %v3823
        %v3841 = vsel %vm483, %v3817, %v3825
        %v3842 = vsel %vm483, %v3803, %v3811
        %v3843 = vsel %vm483, %v3805, %v3813
        %v3844 = vsel %vm483, %v3807, %v3815
        %v3845 = vsel %vm483, %v3809, %v3817
        %v3846 = vsel %vm483, %v3827, %v3803
        %v3847 = vsel %vm483, %v3829, %v3805
        %v3848 = vsel %vm483, %v3831, %v3807
        %v3849 = vsel %vm483, %v3833, %v3809
        %v3850 = vmul.f32 %v3846, %v494
        %v3851 = vmul.f32 %v3842, %v498
        %v3852 = vmul.f32 %v3838, %v502
        %v3853 = vmul.f32 %v3834, %v506
        %v3854 = vmul.f32 %v3847, %v494
        %v3855 = vmul.f32 %v3843, %v498
        %v3856 = vmul.f32 %v3839, %v502
        %v3857 = vmul.f32 %v3835, %v506
        %v3858 = vmul.f32 %v3848, %v494
        %v3859 = vmul.f32 %v3844, %v498
        %v3860 = vmul.f32 %v3840, %v502
        %v3861 = vmul.f32 %v3836, %v506
        %v3862 = vmul.f32 %v3849, %v494
        %v3863 = vmul.f32 %v3845, %v498
        %v3864 = vmul.f32 %v3841, %v502
        %v3865 = vmul.f32 %v3837, %v506
        %3866 = vrot.lane.b32.xlu0 %v3658, 1
        %v3867 = vpop.permute.xlu0 %3866
        %3868 = vrot.lane.b32.xlu0 %v3662, 1
        %v3869 = vpop.permute.xlu0 %3868
        %3870 = vrot.lane.b32.xlu0 %v3666, 1
        %v3871 = vpop.permute.xlu0 %3870
        %3872 = vrot.lane.b32.xlu0 %v3670, 1
        %v3873 = vpop.permute.xlu0 %3872
        %3874 = vrot.lane.b32.xlu0 %v3659, 1
        %v3875 = vpop.permute.xlu0 %3874
        %3876 = vrot.lane.b32.xlu0 %v3663, 1
        %v3877 = vpop.permute.xlu0 %3876
        %3878 = vrot.lane.b32.xlu0 %v3667, 1
        %v3879 = vpop.permute.xlu0 %3878
        %3880 = vrot.lane.b32.xlu0 %v3671, 1
        %v3881 = vpop.permute.xlu0 %3880
        %3882 = vrot.lane.b32.xlu0 %v3660, 1
        %v3883 = vpop.permute.xlu0 %3882
        %3884 = vrot.lane.b32.xlu0 %v3664, 1
        %v3885 = vpop.permute.xlu0 %3884
        %3886 = vrot.lane.b32.xlu0 %v3668, 1
        %v3887 = vpop.permute.xlu0 %3886
        %3888 = vrot.lane.b32.xlu0 %v3672, 1
        %v3889 = vpop.permute.xlu0 %3888
        %3890 = vrot.lane.b32.xlu0 %v3661, 1
        %v3891 = vpop.permute.xlu0 %3890
        %3892 = vrot.lane.b32.xlu0 %v3665, 1
        %v3893 = vpop.permute.xlu0 %3892
        %3894 = vrot.lane.b32.xlu0 %v3669, 1
        %v3895 = vpop.permute.xlu0 %3894
        %3896 = vrot.lane.b32.xlu0 %v3673, 1
        %v3897 = vpop.permute.xlu0 %3896
        %v3898 = vsel %vm523, %v3883, %v3891
        %v3899 = vsel %vm523, %v3885, %v3893
        %v3900 = vsel %vm523, %v3887, %v3895
        %v3901 = vsel %vm523, %v3889, %v3897
        %v3902 = vsel %vm523, %v3875, %v3883
        %v3903 = vsel %vm523, %v3877, %v3885
        %v3904 = vsel %vm523, %v3879, %v3887
        %v3905 = vsel %vm523, %v3881, %v3889
        %v3906 = vsel %vm523, %v3867, %v3875
        %v3907 = vsel %vm523, %v3869, %v3877
        %v3908 = vsel %vm523, %v3871, %v3879
        %v3909 = vsel %vm523, %v3873, %v3881
        %v3910 = vsel %vm523, %v3891, %v3867
        %v3911 = vsel %vm523, %v3893, %v3869
        %v3912 = vsel %vm523, %v3895, %v3871
        %v3913 = vsel %vm523, %v3897, %v3873
        %v3914 = vmul.f32 %v3910, %v534
        %v3915 = vmul.f32 %v3906, %v538
        %v3916 = vmul.f32 %v3902, %v542
        %v3917 = vmul.f32 %v3898, %v546
        %v3918 = vmul.f32 %v3911, %v534
        %v3919 = vmul.f32 %v3907, %v538
        %v3920 = vmul.f32 %v3903, %v542
        %v3921 = vmul.f32 %v3899, %v546
        %v3922 = vmul.f32 %v3912, %v534
        %v3923 = vmul.f32 %v3908, %v538
        %v3924 = vmul.f32 %v3904, %v542
        %v3925 = vmul.f32 %v3900, %v546
        %v3926 = vmul.f32 %v3913, %v534
        %v3927 = vmul.f32 %v3909, %v538
        %v3928 = vmul.f32 %v3905, %v542
        %v3929 = vmul.f32 %v3901, %v546
        %3930 = vrot.lane.b32.xlu0 %v3658, 127
        %v3931 = vpop.permute.xlu0 %3930
        %3932 = vrot.lane.b32.xlu0 %v3662, 127
        %v3933 = vpop.permute.xlu0 %3932
        %3934 = vrot.lane.b32.xlu0 %v3666, 127
        %v3935 = vpop.permute.xlu0 %3934
        %3936 = vrot.lane.b32.xlu0 %v3670, 127
        %v3937 = vpop.permute.xlu0 %3936
        %3938 = vrot.lane.b32.xlu0 %v3659, 127
        %v3939 = vpop.permute.xlu0 %3938
        %3940 = vrot.lane.b32.xlu0 %v3663, 127
        %v3941 = vpop.permute.xlu0 %3940
        %3942 = vrot.lane.b32.xlu0 %v3667, 127
        %v3943 = vpop.permute.xlu0 %3942
        %3944 = vrot.lane.b32.xlu0 %v3671, 127
        %v3945 = vpop.permute.xlu0 %3944
        %3946 = vrot.lane.b32.xlu0 %v3660, 127
        %v3947 = vpop.permute.xlu0 %3946
        %3948 = vrot.lane.b32.xlu0 %v3664, 127
        %v3949 = vpop.permute.xlu0 %3948
        %3950 = vrot.lane.b32.xlu0 %v3668, 127
        %v3951 = vpop.permute.xlu0 %3950
        %3952 = vrot.lane.b32.xlu0 %v3672, 127
        %v3953 = vpop.permute.xlu0 %3952
        %3954 = vrot.lane.b32.xlu0 %v3661, 127
        %v3955 = vpop.permute.xlu0 %3954
        %3956 = vrot.lane.b32.xlu0 %v3665, 127
        %v3957 = vpop.permute.xlu0 %3956
        %3958 = vrot.lane.b32.xlu0 %v3669, 127
        %v3959 = vpop.permute.xlu0 %3958
        %3960 = vrot.lane.b32.xlu0 %v3673, 127
        %v3961 = vpop.permute.xlu0 %3960
        %v3962 = vsel %vm563, %v3947, %v3955
        %v3963 = vsel %vm563, %v3949, %v3957
        %v3964 = vsel %vm563, %v3951, %v3959
        %v3965 = vsel %vm563, %v3953, %v3961
        %v3966 = vsel %vm563, %v3939, %v3947
        %v3967 = vsel %vm563, %v3941, %v3949
        %v3968 = vsel %vm563, %v3943, %v3951
        %v3969 = vsel %vm563, %v3945, %v3953
        %v3970 = vsel %vm563, %v3931, %v3939
        %v3971 = vsel %vm563, %v3933, %v3941
        %v3972 = vsel %vm563, %v3935, %v3943
        %v3973 = vsel %vm563, %v3937, %v3945
        %v3974 = vsel %vm563, %v3955, %v3931
        %v3975 = vsel %vm563, %v3957, %v3933
        %v3976 = vsel %vm563, %v3959, %v3935
        %v3977 = vsel %vm563, %v3961, %v3937
        %v3978 = vmul.f32 %v3970, %v574
        %v3979 = vmul.f32 %v3966, %v578
        %v3980 = vmul.f32 %v3962, %v582
        %v3981 = vmul.f32 %v3974, %v586
        %v3982 = vmul.f32 %v3971, %v574
        %v3983 = vmul.f32 %v3967, %v578
        %v3984 = vmul.f32 %v3963, %v582
        %v3985 = vmul.f32 %v3975, %v586
        %v3986 = vmul.f32 %v3972, %v574
        %v3987 = vmul.f32 %v3968, %v578
        %v3988 = vmul.f32 %v3964, %v582
        %v3989 = vmul.f32 %v3976, %v586
        %v3990 = vmul.f32 %v3973, %v574
        %v3991 = vmul.f32 %v3969, %v578
        %v3992 = vmul.f32 %v3965, %v582
        %v3993 = vmul.f32 %v3977, %v586
        %3994 = vrot.lane.b32.xlu0 %v3658, 113
        %v3995 = vpop.permute.xlu0 %3994
        %3996 = vrot.lane.b32.xlu0 %v3662, 113
        %v3997 = vpop.permute.xlu0 %3996
        %3998 = vrot.lane.b32.xlu0 %v3666, 113
        %v3999 = vpop.permute.xlu0 %3998
        %4000 = vrot.lane.b32.xlu0 %v3670, 113
        %v4001 = vpop.permute.xlu0 %4000
        %4002 = vrot.lane.b32.xlu0 %v3659, 113
        %v4003 = vpop.permute.xlu0 %4002
        %4004 = vrot.lane.b32.xlu0 %v3663, 113
        %v4005 = vpop.permute.xlu0 %4004
        %4006 = vrot.lane.b32.xlu0 %v3667, 113
        %v4007 = vpop.permute.xlu0 %4006
        %4008 = vrot.lane.b32.xlu0 %v3671, 113
        %v4009 = vpop.permute.xlu0 %4008
        %4010 = vrot.lane.b32.xlu0 %v3660, 113
        %v4011 = vpop.permute.xlu0 %4010
        %4012 = vrot.lane.b32.xlu0 %v3664, 113
        %v4013 = vpop.permute.xlu0 %4012
        %4014 = vrot.lane.b32.xlu0 %v3668, 113
        %v4015 = vpop.permute.xlu0 %4014
        %4016 = vrot.lane.b32.xlu0 %v3672, 113
        %v4017 = vpop.permute.xlu0 %4016
        %4018 = vrot.lane.b32.xlu0 %v3661, 113
        %v4019 = vpop.permute.xlu0 %4018
        %4020 = vrot.lane.b32.xlu0 %v3665, 113
        %v4021 = vpop.permute.xlu0 %4020
        %4022 = vrot.lane.b32.xlu0 %v3669, 113
        %v4023 = vpop.permute.xlu0 %4022
        %4024 = vrot.lane.b32.xlu0 %v3673, 113
        %v4025 = vpop.permute.xlu0 %4024
        %v4026 = vsel %vm603, %v4011, %v4019
        %v4027 = vsel %vm603, %v4013, %v4021
        %v4028 = vsel %vm603, %v4015, %v4023
        %v4029 = vsel %vm603, %v4017, %v4025
        %v4030 = vsel %vm603, %v4003, %v4011
        %v4031 = vsel %vm603, %v4005, %v4013
        %v4032 = vsel %vm603, %v4007, %v4015
        %v4033 = vsel %vm603, %v4009, %v4017
        %v4034 = vsel %vm603, %v3995, %v4003
        %v4035 = vsel %vm603, %v3997, %v4005
        %v4036 = vsel %vm603, %v3999, %v4007
        %v4037 = vsel %vm603, %v4001, %v4009
        %v4038 = vsel %vm603, %v4019, %v3995
        %v4039 = vsel %vm603, %v4021, %v3997
        %v4040 = vsel %vm603, %v4023, %v3999
        %v4041 = vsel %vm603, %v4025, %v4001
        %v4042 = vmul.f32 %v4034, %v614
        %v4043 = vmul.f32 %v4030, %v618
        %v4044 = vmul.f32 %v4026, %v622
        %v4045 = vmul.f32 %v4038, %v626
        %v4046 = vmul.f32 %v4035, %v614
        %v4047 = vmul.f32 %v4031, %v618
        %v4048 = vmul.f32 %v4027, %v622
        %v4049 = vmul.f32 %v4039, %v626
        %v4050 = vmul.f32 %v4036, %v614
        %v4051 = vmul.f32 %v4032, %v618
        %v4052 = vmul.f32 %v4028, %v622
        %v4053 = vmul.f32 %v4040, %v626
        %v4054 = vmul.f32 %v4037, %v614
        %v4055 = vmul.f32 %v4033, %v618
        %v4056 = vmul.f32 %v4029, %v622
        %v4057 = vmul.f32 %v4041, %v626
        %4058 = vrot.lane.b32.xlu0 %v3658, 112
        %v4059 = vpop.permute.xlu0 %4058
        %4060 = vrot.lane.b32.xlu0 %v3662, 112
        %v4061 = vpop.permute.xlu0 %4060
        %4062 = vrot.lane.b32.xlu0 %v3666, 112
        %v4063 = vpop.permute.xlu0 %4062
        %4064 = vrot.lane.b32.xlu0 %v3670, 112
        %v4065 = vpop.permute.xlu0 %4064
        %4066 = vrot.lane.b32.xlu0 %v3659, 112
        %v4067 = vpop.permute.xlu0 %4066
        %4068 = vrot.lane.b32.xlu0 %v3663, 112
        %v4069 = vpop.permute.xlu0 %4068
        %4070 = vrot.lane.b32.xlu0 %v3667, 112
        %v4071 = vpop.permute.xlu0 %4070
        %4072 = vrot.lane.b32.xlu0 %v3671, 112
        %v4073 = vpop.permute.xlu0 %4072
        %4074 = vrot.lane.b32.xlu0 %v3660, 112
        %v4075 = vpop.permute.xlu0 %4074
        %4076 = vrot.lane.b32.xlu0 %v3664, 112
        %v4077 = vpop.permute.xlu0 %4076
        %4078 = vrot.lane.b32.xlu0 %v3668, 112
        %v4079 = vpop.permute.xlu0 %4078
        %4080 = vrot.lane.b32.xlu0 %v3672, 112
        %v4081 = vpop.permute.xlu0 %4080
        %4082 = vrot.lane.b32.xlu0 %v3661, 112
        %v4083 = vpop.permute.xlu0 %4082
        %4084 = vrot.lane.b32.xlu0 %v3665, 112
        %v4085 = vpop.permute.xlu0 %4084
        %4086 = vrot.lane.b32.xlu0 %v3669, 112
        %v4087 = vpop.permute.xlu0 %4086
        %4088 = vrot.lane.b32.xlu0 %v3673, 112
        %v4089 = vpop.permute.xlu0 %4088
        %v4090 = vsel %vm643, %v4075, %v4083
        %v4091 = vsel %vm643, %v4077, %v4085
        %v4092 = vsel %vm643, %v4079, %v4087
        %v4093 = vsel %vm643, %v4081, %v4089
        %v4094 = vsel %vm643, %v4067, %v4075
        %v4095 = vsel %vm643, %v4069, %v4077
        %v4096 = vsel %vm643, %v4071, %v4079
        %v4097 = vsel %vm643, %v4073, %v4081
        %v4098 = vsel %vm643, %v4059, %v4067
        %v4099 = vsel %vm643, %v4061, %v4069
        %v4100 = vsel %vm643, %v4063, %v4071
        %v4101 = vsel %vm643, %v4065, %v4073
        %v4102 = vsel %vm643, %v4083, %v4059
        %v4103 = vsel %vm643, %v4085, %v4061
        %v4104 = vsel %vm643, %v4087, %v4063
        %v4105 = vsel %vm643, %v4089, %v4065
        %v4106 = vmul.f32 %v4098, %v654
        %v4107 = vmul.f32 %v4094, %v658
        %v4108 = vmul.f32 %v4090, %v662
        %v4109 = vmul.f32 %v4102, %v666
        %v4110 = vmul.f32 %v4099, %v654
        %v4111 = vmul.f32 %v4095, %v658
        %v4112 = vmul.f32 %v4091, %v662
        %v4113 = vmul.f32 %v4103, %v666
        %v4114 = vmul.f32 %v4100, %v654
        %v4115 = vmul.f32 %v4096, %v658
        %v4116 = vmul.f32 %v4092, %v662
        %v4117 = vmul.f32 %v4104, %v666
        %v4118 = vmul.f32 %v4101, %v654
        %v4119 = vmul.f32 %v4097, %v658
        %v4120 = vmul.f32 %v4093, %v662
        %v4121 = vmul.f32 %v4105, %v666
        %4122 = vrot.lane.b32.xlu0 %v3658, 111
        %v4123 = vpop.permute.xlu0 %4122
        %4124 = vrot.lane.b32.xlu0 %v3662, 111
        %v4125 = vpop.permute.xlu0 %4124
        %4126 = vrot.lane.b32.xlu0 %v3666, 111
        %v4127 = vpop.permute.xlu0 %4126
        %4128 = vrot.lane.b32.xlu0 %v3670, 111
        %v4129 = vpop.permute.xlu0 %4128
        %4130 = vrot.lane.b32.xlu0 %v3659, 111
        %v4131 = vpop.permute.xlu0 %4130
        %4132 = vrot.lane.b32.xlu0 %v3663, 111
        %v4133 = vpop.permute.xlu0 %4132
        %4134 = vrot.lane.b32.xlu0 %v3667, 111
        %v4135 = vpop.permute.xlu0 %4134
        %4136 = vrot.lane.b32.xlu0 %v3671, 111
        %v4137 = vpop.permute.xlu0 %4136
        %4138 = vrot.lane.b32.xlu0 %v3660, 111
        %v4139 = vpop.permute.xlu0 %4138
        %4140 = vrot.lane.b32.xlu0 %v3664, 111
        %v4141 = vpop.permute.xlu0 %4140
        %4142 = vrot.lane.b32.xlu0 %v3668, 111
        %v4143 = vpop.permute.xlu0 %4142
        %4144 = vrot.lane.b32.xlu0 %v3672, 111
        %v4145 = vpop.permute.xlu0 %4144
        %4146 = vrot.lane.b32.xlu0 %v3661, 111
        %v4147 = vpop.permute.xlu0 %4146
        %4148 = vrot.lane.b32.xlu0 %v3665, 111
        %v4149 = vpop.permute.xlu0 %4148
        %4150 = vrot.lane.b32.xlu0 %v3669, 111
        %v4151 = vpop.permute.xlu0 %4150
        %4152 = vrot.lane.b32.xlu0 %v3673, 111
        %v4153 = vpop.permute.xlu0 %4152
        %v4154 = vsel %vm683, %v4139, %v4147
        %v4155 = vsel %vm683, %v4141, %v4149
        %v4156 = vsel %vm683, %v4143, %v4151
        %v4157 = vsel %vm683, %v4145, %v4153
        %v4158 = vsel %vm683, %v4131, %v4139
        %v4159 = vsel %vm683, %v4133, %v4141
        %v4160 = vsel %vm683, %v4135, %v4143
        %v4161 = vsel %vm683, %v4137, %v4145
        %v4162 = vsel %vm683, %v4123, %v4131
        %v4163 = vsel %vm683, %v4125, %v4133
        %v4164 = vsel %vm683, %v4127, %v4135
        %v4165 = vsel %vm683, %v4129, %v4137
        %v4166 = vsel %vm683, %v4147, %v4123
        %v4167 = vsel %vm683, %v4149, %v4125
        %v4168 = vsel %vm683, %v4151, %v4127
        %v4169 = vsel %vm683, %v4153, %v4129
        %v4170 = vmul.f32 %v4162, %v694
        %v4171 = vmul.f32 %v4158, %v698
        %v4172 = vmul.f32 %v4154, %v702
        %v4173 = vmul.f32 %v4166, %v706
        %v4174 = vmul.f32 %v4163, %v694
        %v4175 = vmul.f32 %v4159, %v698
        %v4176 = vmul.f32 %v4155, %v702
        %v4177 = vmul.f32 %v4167, %v706
        %v4178 = vmul.f32 %v4164, %v694
        %v4179 = vmul.f32 %v4160, %v698
        %v4180 = vmul.f32 %v4156, %v702
        %v4181 = vmul.f32 %v4168, %v706
        %v4182 = vmul.f32 %v4165, %v694
        %v4183 = vmul.f32 %v4161, %v698
        %v4184 = vmul.f32 %v4157, %v702
        %v4185 = vmul.f32 %v4169, %v706
        %v4186 = vld [vmem:[%s8] sm:$0x7]
        %v4187 = vld [vmem:[#allocation2] sm:$0x1]
        %4189 = vset.pattern.permute.xlu0 0
        %4190 = vperm.xlu0 %4189, %v4187
        %v4191 = vpop.permute.xlu0 %4190
        %v4193 = vlaneseq
        %v4194 = vshrl.u32 %v4193, 7
        %v4195 = vsub.s32 0, %v4194
        %v4196 = vrot.slane %v4191, %v4195
        %v4198 = vlaneseq
        %v4199 = vshrl.u32 %v4198, 7
        %v4200 = vsub.s32 0, %v4199
        %v4201 = vrot.slane %v4186, %v4200
        %v4202 = vlaneseq
        %v4203 = vshrl.u32 %v4202, 7
        %v4204 = vsub.s32 1, %v4203
        %v4205 = vrot.slane %v4186, %v4204
        %v4206 = vlaneseq
        %v4207 = vshrl.u32 %v4206, 7
        %v4208 = vsub.s32 2, %v4207
        %v4209 = vrot.slane %v4186, %v4208
        %v4212 = vsel %vm1534, %v4209, 0
        %4214 = vmatprep.subr.mxu0 %v3723
        %4215 = vmatpush1.msra.mxu0 %v3722
        %4216 = vmatprep.subr.mxu0 %v3727
        %4217 = vmatpush1.msra.mxu0 %v3726
        %4218 = vmatprep.subr.mxu0 %v3731
        %4219 = vmatpush1.msra.mxu0 %v3730
        %4220 = vmatprep.subr.mxu0 %v3735
        %4221 = vmatpush1.msra.mxu0 %v3734
        %4222 = vmatprep.subr.mxu0 %v3787
        %4223 = vmatpush1.msra.mxu0 %v3786
        %4224 = vmatprep.subr.mxu0 %v3791
        %4225 = vmatpush1.msra.mxu0 %v3790
        %4226 = vmatprep.subr.mxu0 %v3795
        %4227 = vmatpush1.msra.mxu0 %v3794
        %4228 = vmatprep.subr.mxu0 %v3799
        %4229 = vmatpush1.msra.mxu0 %v3798
        %4230 = vmatprep.subr.mxu0 %v3851
        %4231 = vmatpush1.msra.mxu0 %v3850
        %4232 = vmatprep.subr.mxu0 %v3855
        %4233 = vmatpush1.msra.mxu0 %v3854
        %4234 = vmatprep.subr.mxu0 %v3859
        %4235 = vmatpush1.msra.mxu0 %v3858
        %4236 = vmatprep.subr.mxu0 %v3863
        %4237 = vmatpush1.msra.mxu0 %v3862
        %4238 = vmatprep.subr.mxu0 %v3915
        %4239 = vmatpush1.msra.mxu0 %v3914
        %4240 = vmatprep.subr.mxu0 %v3919
        %4241 = vmatpush1.msra.mxu0 %v3918
        %4242 = vmatprep.subr.mxu0 %v3923
        %4243 = vmatpush1.msra.mxu0 %v3922
        %4244 = vmatprep.subr.mxu0 %v3927
        %4245 = vmatpush1.msra.mxu0 %v3926
        %4246 = vmatprep.subr.mxu0 %v3659
        %4247 = vmatpush1.msra.mxu0 %v3658
        %4248 = vmatprep.subr.mxu0 %v3663
        %4249 = vmatpush1.msra.mxu0 %v3662
        %4250 = vmatprep.subr.mxu0 %v3667
        %4251 = vmatpush1.msra.mxu0 %v3666
        %4252 = vmatprep.subr.mxu0 %v3671
        %4253 = vmatpush1.msra.mxu0 %v3670
        %4254 = vmatprep.subr.mxu0 %v3979
        %4255 = vmatpush1.msra.mxu0 %v3978
        %4256 = vmatprep.subr.mxu0 %v3983
        %4257 = vmatpush1.msra.mxu0 %v3982
        %4258 = vmatprep.subr.mxu0 %v3987
        %4259 = vmatpush1.msra.mxu0 %v3986
        %4260 = vmatprep.subr.mxu0 %v3991
        %4261 = vmatpush1.msra.mxu0 %v3990
        %4262 = vmatprep.subr.mxu0 %v4043
        %4263 = vmatpush1.msra.mxu0 %v4042
        %4264 = vmatprep.subr.mxu0 %v4047
        %4265 = vmatpush1.msra.mxu0 %v4046
        %4266 = vmatprep.subr.mxu0 %v4051
        %4267 = vmatpush1.msra.mxu0 %v4050
        %4268 = vmatprep.subr.mxu0 %v4055
        %4269 = vmatpush1.msra.mxu0 %v4054
        %4270 = vmatprep.subr.mxu0 %v4107
        %4271 = vmatpush1.msra.mxu0 %v4106
        %4272 = vmatprep.subr.mxu0 %v4111
        %4273 = vmatpush1.msra.mxu0 %v4110
        %4274 = vmatprep.subr.mxu0 %v4115
        %4275 = vmatpush1.msra.mxu0 %v4114
        %4276 = vmatprep.subr.mxu0 %v4119
        %4277 = vmatpush1.msra.mxu0 %v4118
        %4278 = vmatprep.mubr.f32.mxu0 %v4205
        %4279 = vmatmul.mubr.f32.gmra.mrb[0].mxu0 %v4201
        %v4280 = vpop.f32.mrb[0].mxu0
        %v4281 = vadd.f32 %v4196, %v4280
        %v4282 = vpop.f32.mrb[0].mxu0
        %v4283 = vadd.f32 %v4196, %v4282
        %4284 = vdwg.mxu0
        %4285 = vmatprep.subr.mxu0 %v4171
        %4286 = vmatpush1.msra.mxu0 %v4170
        %4287 = vmatprep.subr.mxu0 %v4175
        %4288 = vmatpush1.msra.mxu0 %v4174
        %4289 = vmatprep.subr.mxu0 %v4179
        %4290 = vmatpush1.msra.mxu0 %v4178
        %4291 = vmatprep.subr.mxu0 %v4183
        %4292 = vmatpush1.msra.mxu0 %v4182
        %4293 = vmatprep.subr.mxu0 0.0
        %4294 = vmatpush1.msra.mxu0 0.0
        %4295 = vmatprep.subr.mxu0 0.0
        %4296 = vmatpush1.msra.mxu0 0.0
        %4297 = vmatprep.subr.mxu0 0.0
        %4298 = vmatpush1.msra.mxu0 0.0
        %4299 = vmatprep.subr.mxu0 0.0
        %4300 = vmatpush1.msra.mxu0 0.0
        %4301 = vmatprep.subr.mxu0 0.0
        %4302 = vmatpush1.msra.mxu0 0.0
        %4303 = vmatprep.subr.mxu0 0.0
        %4304 = vmatpush1.msra.mxu0 0.0
        %4305 = vmatprep.subr.mxu0 0.0
        %4306 = vmatpush1.msra.mxu0 0.0
        %4307 = vmatprep.subr.mxu0 0.0
        %4308 = vmatpush1.msra.mxu0 0.0
        %4309 = vmatprep.subr.mxu0 0.0
        %4310 = vmatpush1.msra.mxu0 0.0
        %4311 = vmatprep.subr.mxu0 0.0
        %4312 = vmatpush1.msra.mxu0 0.0
        %4313 = vmatprep.subr.mxu0 0.0
        %4314 = vmatpush1.msra.mxu0 0.0
        %4315 = vmatprep.subr.mxu0 0.0
        %4316 = vmatpush1.msra.mxu0 0.0
        %4317 = vmatprep.subr.mxu0 0.0
        %4318 = vmatpush1.msra.mxu0 0.0
        %4319 = vmatprep.subr.mxu0 0.0
        %4320 = vmatpush1.msra.mxu0 0.0
        %4321 = vmatprep.subr.mxu0 0.0
        %4322 = vmatpush1.msra.mxu0 0.0
        %4323 = vmatprep.subr.mxu0 0.0
        %4324 = vmatpush1.msra.mxu0 0.0
        %4325 = vmatprep.subr.mxu0 0.0
        %4326 = vmatpush1.msra.mxu0 0.0
        %4327 = vmatprep.subr.mxu0 0.0
        %4328 = vmatpush1.msra.mxu0 0.0
        %4329 = vmatprep.subr.mxu0 0.0
        %4330 = vmatpush1.msra.mxu0 0.0
        %4331 = vmatprep.subr.mxu0 0.0
        %4332 = vmatpush1.msra.mxu0 0.0
        %4333 = vmatprep.subr.mxu0 0.0
        %4334 = vmatpush1.msra.mxu0 0.0
        %4335 = vmatprep.subr.mxu0 0.0
        %4336 = vmatpush1.msra.mxu0 0.0
        %4337 = vmatprep.subr.mxu0 0.0
        %4338 = vmatpush1.msra.mxu0 0.0
        %4339 = vmatprep.subr.mxu0 0.0
        %4340 = vmatpush1.msra.mxu0 0.0
        %4341 = vmatprep.subr.mxu0 0.0
        %4342 = vmatpush1.msra.mxu0 0.0
        %4343 = vmatprep.subr.mxu0 0.0
        %4344 = vmatpush1.msra.mxu0 0.0
        %4345 = vmatprep.subr.mxu0 0.0
        %4346 = vmatpush1.msra.mxu0 0.0
        %4347 = vmatprep.subr.mxu0 0.0
        %4348 = vmatpush1.msra.mxu0 0.0
        %4349 = vmatprep.mubr.f32.mxu0 0.0
        %4350 = vmatmul.mubr.f32.gmra.mrb[0].mxu0 %v4212
        %v4351 = vpop.f32.mrb[0].mxu0
        %v4352 = vadd.f32 %v4281, %v4351
        %v4353 = vpop.f32.mrb[0].mxu0
        %v4354 = vadd.f32 %v4283, %v4353
        %4355 = vdwg.mxu0
        %4356 = vmatprep.subr.mxu0 %v3725
        %4357 = vmatpush1.msra.mxu0 %v3724
        %4358 = vmatprep.subr.mxu0 %v3729
        %4359 = vmatpush1.msra.mxu0 %v3728
        %4360 = vmatprep.subr.mxu0 %v3733
        %4361 = vmatpush1.msra.mxu0 %v3732
        %4362 = vmatprep.subr.mxu0 %v3737
        %4363 = vmatpush1.msra.mxu0 %v3736
        %4364 = vmatprep.subr.mxu0 %v3789
        %4365 = vmatpush1.msra.mxu0 %v3788
        %4366 = vmatprep.subr.mxu0 %v3793
        %4367 = vmatpush1.msra.mxu0 %v3792
        %4368 = vmatprep.subr.mxu0 %v3797
        %4369 = vmatpush1.msra.mxu0 %v3796
        %4370 = vmatprep.subr.mxu0 %v3801
        %4371 = vmatpush1.msra.mxu0 %v3800
        %4372 = vmatprep.subr.mxu0 %v3853
        %4373 = vmatpush1.msra.mxu0 %v3852
        %4374 = vmatprep.subr.mxu0 %v3857
        %4375 = vmatpush1.msra.mxu0 %v3856
        %4376 = vmatprep.subr.mxu0 %v3861
        %4377 = vmatpush1.msra.mxu0 %v3860
        %4378 = vmatprep.subr.mxu0 %v3865
        %4379 = vmatpush1.msra.mxu0 %v3864
        %4380 = vmatprep.subr.mxu0 %v3917
        %4381 = vmatpush1.msra.mxu0 %v3916
        %4382 = vmatprep.subr.mxu0 %v3921
        %4383 = vmatpush1.msra.mxu0 %v3920
        %4384 = vmatprep.subr.mxu0 %v3925
        %4385 = vmatpush1.msra.mxu0 %v3924
        %4386 = vmatprep.subr.mxu0 %v3929
        %4387 = vmatpush1.msra.mxu0 %v3928
        %4388 = vmatprep.subr.mxu0 %v3661
        %4389 = vmatpush1.msra.mxu0 %v3660
        %4390 = vmatprep.subr.mxu0 %v3665
        %4391 = vmatpush1.msra.mxu0 %v3664
        %4392 = vmatprep.subr.mxu0 %v3669
        %4393 = vmatpush1.msra.mxu0 %v3668
        %4394 = vmatprep.subr.mxu0 %v3673
        %4395 = vmatpush1.msra.mxu0 %v3672
        %4396 = vmatprep.subr.mxu0 %v3981
        %4397 = vmatpush1.msra.mxu0 %v3980
        %4398 = vmatprep.subr.mxu0 %v3985
        %4399 = vmatpush1.msra.mxu0 %v3984
        %4400 = vmatprep.subr.mxu0 %v3989
        %4401 = vmatpush1.msra.mxu0 %v3988
        %4402 = vmatprep.subr.mxu0 %v3993
        %4403 = vmatpush1.msra.mxu0 %v3992
        %4404 = vmatprep.subr.mxu0 %v4045
        %4405 = vmatpush1.msra.mxu0 %v4044
        %4406 = vmatprep.subr.mxu0 %v4049
        %4407 = vmatpush1.msra.mxu0 %v4048
        %4408 = vmatprep.subr.mxu0 %v4053
        %4409 = vmatpush1.msra.mxu0 %v4052
        %4410 = vmatprep.subr.mxu0 %v4057
        %4411 = vmatpush1.msra.mxu0 %v4056
        %4412 = vmatprep.subr.mxu0 %v4109
        %4413 = vmatpush1.msra.mxu0 %v4108
        %4414 = vmatprep.subr.mxu0 %v4113
        %4415 = vmatpush1.msra.mxu0 %v4112
        %4416 = vmatprep.subr.mxu0 %v4117
        %4417 = vmatpush1.msra.mxu0 %v4116
        %4418 = vmatprep.subr.mxu0 %v4121
        %4419 = vmatpush1.msra.mxu0 %v4120
        %4420 = vmatprep.mubr.f32.mxu0 %v4205
        %4421 = vmatmul.mubr.f32.gmra.mrb[0].mxu0 %v4201
        %v4422 = vpop.f32.mrb[0].mxu0
        %v4423 = vadd.f32 %v4196, %v4422
        %v4424 = vpop.f32.mrb[0].mxu0
        %v4425 = vadd.f32 %v4196, %v4424
        %4426 = vdwg.mxu0
        %4427 = vmatprep.subr.mxu0 %v4173
        %4428 = vmatpush1.msra.mxu0 %v4172
        %4429 = vmatprep.subr.mxu0 %v4177
        %4430 = vmatpush1.msra.mxu0 %v4176
        %4431 = vmatprep.subr.mxu0 %v4181
        %4432 = vmatpush1.msra.mxu0 %v4180
        %4433 = vmatprep.subr.mxu0 %v4185
        %4434 = vmatpush1.msra.mxu0 %v4184
        %4435 = vmatprep.subr.mxu0 0.0
        %4436 = vmatpush1.msra.mxu0 0.0
        %4437 = vmatprep.subr.mxu0 0.0
        %4438 = vmatpush1.msra.mxu0 0.0
        %4439 = vmatprep.subr.mxu0 0.0
        %4440 = vmatpush1.msra.mxu0 0.0
        %4441 = vmatprep.subr.mxu0 0.0
        %4442 = vmatpush1.msra.mxu0 0.0
        %4443 = vmatprep.subr.mxu0 0.0
        %4444 = vmatpush1.msra.mxu0 0.0
        %4445 = vmatprep.subr.mxu0 0.0
        %4446 = vmatpush1.msra.mxu0 0.0
        %4447 = vmatprep.subr.mxu0 0.0
        %4448 = vmatpush1.msra.mxu0 0.0
        %4449 = vmatprep.subr.mxu0 0.0
        %4450 = vmatpush1.msra.mxu0 0.0
        %4451 = vmatprep.subr.mxu0 0.0
        %4452 = vmatpush1.msra.mxu0 0.0
        %4453 = vmatprep.subr.mxu0 0.0
        %4454 = vmatpush1.msra.mxu0 0.0
        %4455 = vmatprep.subr.mxu0 0.0
        %4456 = vmatpush1.msra.mxu0 0.0
        %4457 = vmatprep.subr.mxu0 0.0
        %4458 = vmatpush1.msra.mxu0 0.0
        %4459 = vmatprep.subr.mxu0 0.0
        %4460 = vmatpush1.msra.mxu0 0.0
        %4461 = vmatprep.subr.mxu0 0.0
        %4462 = vmatpush1.msra.mxu0 0.0
        %4463 = vmatprep.subr.mxu0 0.0
        %4464 = vmatpush1.msra.mxu0 0.0
        %4465 = vmatprep.subr.mxu0 0.0
        %4466 = vmatpush1.msra.mxu0 0.0
        %4467 = vmatprep.subr.mxu0 0.0
        %4468 = vmatpush1.msra.mxu0 0.0
        %4469 = vmatprep.subr.mxu0 0.0
        %4470 = vmatpush1.msra.mxu0 0.0
        %4471 = vmatprep.subr.mxu0 0.0
        %4472 = vmatpush1.msra.mxu0 0.0
        %4473 = vmatprep.subr.mxu0 0.0
        %4474 = vmatpush1.msra.mxu0 0.0
        %4475 = vmatprep.subr.mxu0 0.0
        %4476 = vmatpush1.msra.mxu0 0.0
        %4477 = vmatprep.subr.mxu0 0.0
        %4478 = vmatpush1.msra.mxu0 0.0
        %4479 = vmatprep.subr.mxu0 0.0
        %4480 = vmatpush1.msra.mxu0 0.0
        %4481 = vmatprep.subr.mxu0 0.0
        %4482 = vmatpush1.msra.mxu0 0.0
        %4483 = vmatprep.subr.mxu0 0.0
        %4484 = vmatpush1.msra.mxu0 0.0
        %4485 = vmatprep.subr.mxu0 0.0
        %4486 = vmatpush1.msra.mxu0 0.0
        %4487 = vmatprep.subr.mxu0 0.0
        %4488 = vmatpush1.msra.mxu0 0.0
        %4489 = vmatprep.subr.mxu0 0.0
        %4490 = vmatpush1.msra.mxu0 0.0
        %4491 = vmatprep.mubr.f32.mxu0 0.0
        %4492 = vmatmul.mubr.f32.gmra.mrb[0].mxu0 %v4212
        %v4493 = vpop.f32.mrb[0].mxu0
        %v4494 = vadd.f32 %v4423, %v4493
        %v4495 = vpop.f32.mrb[0].mxu0
        %v4496 = vadd.f32 %v4425, %v4495
        %4497 = vdwg.mxu0
        %v4502 = vcombine.low %v4352, %v4354
        %v4503 = vcombine.low %v4494, %v4496
        %v4505 = vunpack.c.l.s4 1966171168
        %v4506 = vunpack.c.0.s8 %v4505
        %v4507 = vlaneseq
        %v4508 = vshrl.u32 %v4507, 7
        %v4509 = vsub.s32 %v4506, %v4508
        %v4510 = vrot.slane %v4502, %v4509
        %v4512 = vunpack.c.l.s4 1966171168
        %v4513 = vunpack.c.0.s8 %v4512
        %v4514 = vlaneseq
        %v4515 = vshrl.u32 %v4514, 7
        %v4516 = vsub.s32 %v4513, %v4515
        %v4517 = vrot.slane %v4503, %v4516
        %v4518 = vcombine.low %v4510, %v4517
        %v4520 = vunpack.c.l.s4 1966171168
        %v4521 = vunpack.c.0.s8 %v4520
        %v4522 = vlaneseq
        %v4523 = vshrl.u32 %v4522, 7
        %v4524 = vsub.s32 %v4521, %v4523
        %v4525 = vrot.slane %v4518, %v4524
        %v4527 = vlaneseq
        %vm4528 = vcmp.ge.s32.totalorder %v4527, 0
        %vm4529 = vcmp.lt.s32.totalorder %v4527, 512
        %vm4530 = vmand %vm4528, %vm4529
        %4531 = vst.msk [vmem:[%s384] sm:$0xf] %vm4530, %v4525
        %s4532 = sand.u32 %s251, 1
        %s4533 = scalar_lea.sflag [#allocation5], %s4532
        %s4534 = sand.u32 %s251, 1
        %s4535 = smul.addr %s4534, 4
        %s4536 = scalar_lea.vmem [#allocation8], %s4535
        // Predicated region
        $region69: #{tpu_custom_call.1} parent=59 // pred_check
          %p4537 = pneg %p261
        $region70: #{tpu_custom_call.1} parent=59 // pred_check_branch
          %4539 = sbr.rel (%p4537) target = $region72
        $region71: #{tpu_custom_call.1} parent=59 // pred_region
          %s4541 = ssub.s32 64, 64
          %4542 = vsyncadd %s4533, %s4541
          %s4543 = smul.addr %s28, 4
          %s4544 = smul.addr %s4543, 16
          %s4545 = scalar_lea.hbm %s10, %s4544
          %s4547 = sshll.u32 %s4536, 4
          %s4548 = int_to_ptr.vmem [resolvable:$true] %s4547
          %4550 = dma.vmem_to_hbm [thread:$0]  %s4548, 64, %s4545, %s4533
        $region72: #{tpu_custom_call.1} parent=59 // pred_fallthru
          _
      $region60: #{tpu_custom_call.1} parent=5 // pred_fallthru
        _
      %p4551 = scmp.le.s32.totalorder 2, %s23
      // Predicated region
      $region73: #{tpu_custom_call.1} parent=5 // pred_check
        %p4552 = pneg %p4551
      $region74: #{tpu_custom_call.1} parent=5 // pred_check_branch
        %4554 = sbr.rel (%p4552) target = $region76
      $region75: #{tpu_custom_call.1} parent=5 // pred_region
        %s4555 = ssub.s32 %s23, 2
        // Predicated region
        $region77: #{tpu_custom_call.1} parent=75 // pred_check
          %p4556 = pneg %p267
        $region78: #{tpu_custom_call.1} parent=75 // pred_check_branch
          %4558 = sbr.rel (%p4556) target = $region80
        $region79: #{tpu_custom_call.1} parent=75 // pred_region
          %s4559 = sand.u32 %s252, 1
          %s4560 = scalar_lea.sflag [#allocation5], %s4559
          %s4561 = sand.u32 %s252, 1
          %s4562 = smul.addr %s4561, 4
          %s4563 = scalar_lea.vmem [#allocation8], %s4562
          %4564 = dma.done %s4560, 64
        $region80: #{tpu_custom_call.1} parent=75 // pred_fallthru
          _
      $region76: #{tpu_custom_call.1} parent=5 // pred_fallthru
        _
    $region6: #{tpu_custom_call.1} parent=1 // loop_footer
      %s27 = sadd.s32 1, %s23
    $region7: #{tpu_custom_call.1} parent=1 // loop_footer_branch
      %22 = sbr.rel target = $region3
    $region8: #{tpu_custom_call.1} parent=1 // loop_exit
      _
    %4565 = vsyncpa [#allocation4], 1
    %s4566 = scalar_lea.sflag [#allocation4], 1
    %4567 = vsyncpa %s4566, 1
    %4568 = vsyncpa [#allocation7], 1
    %4569 = vsyncpa [#allocation5], 1
    %s4570 = scalar_lea.sflag [#allocation5], 1
    %4571 = vsyncpa %s4570, 1

</llo_original>
